<compile_context>
chip_gen: v7x
topology: tpu7x:2x2x1
jax: 0.10.0
libtpu: 0.0.40
codegen_flags: <defaults>
</compile_context>

<pallas_src>
import functools

import jax
import jax.numpy as jnp
from jax import lax
from jax.experimental import pallas as pl
from jax.experimental.pallas import tpu as pltpu


# ------------------------------ Pallas kernel --------------------------------

def _attention_kernel(N, H, W, num_heads, key_dim, head_dim, bb,
                      x_ref, w_qkv, b_qkv, w_pe, b_pe, w_proj, b_proj,
                      o_ref, qkv_ref, att_ref):
    f32, bf16 = jnp.float32, jnp.bfloat16
    C = num_heads * head_dim
    M = bb * N
    v_off = num_heads * 2 * key_dim            # lane offset of the v block

    # ---- 1) fused qkv 1x1 conv: one full-width MXU matmul over the block ----
    xb = x_ref[...].reshape(M, C)                                   # bf16
    qkv_ref[...] = (jnp.dot(xb, w_qkv[...], preferred_element_type=f32)
                    + b_qkv[...])

    # ---- 2) depthwise 3x3 positional-encoding conv on v (all batch, heads) --
    # token n = y*W + x; neighbour (dy,dx) sits at n + dy*W + dx.  XLU rolls
    # along the token axis + edge masks replace the padded-concat/slice scheme.
    # Cross-image wraps inside the fused batch block are exactly the masked
    # (out-of-image) taps, so computing over all bb*N rows at once is safe.
    v_all = qkv_ref[:, v_off:v_off + C]                             # (M, C) f32
    n_loc = lax.broadcasted_iota(jnp.int32, (M, 1), 0) % N
    col = n_loc % W
    up_ok, dn_ok = n_loc >= W, n_loc < N - W
    lf_ok, rt_ok = col >= 1, col <= W - 2

    wpe = w_pe[...]                                                 # (9, C)
    pe = jnp.zeros((M, C), f32)
    for dy in (-1, 0, 1):
        for dx in (-1, 0, 1):
            off = dy * W + dx
            tap = (dy + 1) * 3 + (dx + 1)
            win = v_all if off == 0 else pltpu.roll(
                v_all, shift=(-off) % M, axis=0)
            contrib = win * wpe[tap:tap + 1, :]
            mask = None
            if dy == -1:
                mask = up_ok
            elif dy == 1:
                mask = dn_ok
            if dx == -1:
                mask = lf_ok if mask is None else jnp.logical_and(mask, lf_ok)
            elif dx == 1:
                mask = rt_ok if mask is None else jnp.logical_and(mask, rt_ok)
            if mask is not None:
                contrib = jnp.where(mask, contrib, 0.0)
            pe = pe + contrib
    # pe seeds the proj input; per-head attention results are added below.
    att_ref[...] = (pe + b_pe[...]).astype(bf16)

    # ---- 3) per-(batch, head) attention; live ranges bounded to one head ----
    for bi in range(bb):
        r0 = bi * N
        for h in range(num_heads):
            qk = qkv_ref[r0:r0 + N, h * 2 * key_dim:(h + 1) * 2 * key_dim]
            q = qk[:, :key_dim].astype(bf16)       # 1/sqrt(kd) folded in w_q
            k = qk[:, key_dim:].astype(bf16)
            v = qkv_ref[r0:r0 + N,
                        v_off + h * head_dim:v_off + (h + 1) * head_dim]

            # scores: bf16 operands, f32 accumulation (MXU-native)
            s = lax.dot_general(q, k, (((1,), (1,)), ((), ())),
                                preferred_element_type=f32)          # (N, N)
            m = jnp.max(s, axis=-1, keepdims=True)
            e = jnp.exp(s - m)                                       # unnormed
            denom = jnp.sum(e, axis=-1, keepdims=True)
            pv = jnp.dot(e.astype(bf16), v.astype(bf16),
                         preferred_element_type=f32)                 # (N, hd)
            attn_h = pv * pl.reciprocal(denom, approx=True)

            cols = slice(h * head_dim, (h + 1) * head_dim)
            att_ref[r0:r0 + N, cols] = (
                att_ref[r0:r0 + N, cols].astype(f32) + attn_h).astype(bf16)

    # ---- 4) fused output projection over the whole batch block --------------
    out = (jnp.dot(att_ref[...], w_proj[...], preferred_element_type=f32)
           + b_proj[...])
    o_ref[...] = out.reshape(bb, N, C).astype(o_ref.dtype)


# --------------------------------- wrapper -----------------------------------

def _device_kind():
    try:
        return jax.devices()[0].device_kind.lower()
    except Exception:
        return ""


def _default_batch_block(B, N, C, h_total):
    """v7x (2 TensorCores/chip): split the batch across the two cores.
    Single-TC chips (v5e/v6e): fuse as much batch as fits a few MiB of VMEM so
    the fused matmuls get a large M = bb*N."""
    kind = _device_kind()
    if ("v7" in kind or "7x" in kind):
        if B > 1 and B % 2 == 0:
            return B // 2
        return 1
    per_b = N * (h_total * 4 + C * 2 + 2 * C * 4 + 2 * C * 2)   # bytes / element
    budget = 8 * 1024 * 1024
    bb = max(1, min(B, budget // max(per_b, 1)))
    while B % bb:
        bb -= 1
    return bb


def _vmem_limit_bytes(bb, N, C, h_total):
    est = (2 * bb * N * C * 2            # x block, double-buffered bf16
           + bb * N * h_total * 4        # qkv scratch f32
           + bb * N * C * 2              # att scratch bf16
           + 2 * bb * N * C * 4          # out block, double-buffered f32
           + (C * h_total + C * C) * 2   # bf16 weights
           + (h_total + 2 * C + 9 * C) * 4
           + 4 * N * N * 4)              # score temporaries headroom
    cap = (56 * 1024 * 1024 if "v7" in _device_kind() else 100 * 1024 * 1024)
    return int(min(max(2 * est, 32 * 1024 * 1024), cap))


def attention_forward(x_nchw, kparams, *, num_heads, key_dim, head_dim,
                      batch_block=None):
    B, C, H, W = x_nchw.shape
    assert C == num_heads * head_dim
    N = H * W
    h_total = kparams["w_qkv"].shape[1]
    bb = batch_block if batch_block is not None else _default_batch_block(
        B, N, C, h_total)
    assert B % bb == 0

    # tokens-major, channels-last; bf16 activations for the MXU (f32 accum).
    # (The NCHW<->NHWC transposes are only needed to keep the module's NCHW
    #  interface; keep activations channels-last across the network to drop
    #  them entirely.)
    x_tok = jnp.transpose(x_nchw, (0, 2, 3, 1)).reshape(B, N, C)
    x_tok = x_tok.astype(jnp.bfloat16)

    weight_args = [kparams["w_qkv"], kparams["b_qkv"],
                   kparams["w_pe"], kparams["b_pe"],
                   kparams["w_proj"], kparams["b_proj"]]

    in_specs = [pl.BlockSpec((bb, N, C), lambda i: (i, 0, 0))]
    for w in weight_args:
        in_specs.append(pl.BlockSpec(w.shape, lambda i, nd=w.ndim: (0,) * nd))

    kernel = functools.partial(_attention_kernel, N, H, W,
                               num_heads, key_dim, head_dim, bb)

    out_tok = pl.pallas_call(
        kernel,
        out_shape=jax.ShapeDtypeStruct((B, N, C), jnp.float32),
        grid_spec=pltpu.PrefetchScalarGridSpec(
            num_scalar_prefetch=0,
            grid=(B // bb,),
            in_specs=in_specs,
            out_specs=pl.BlockSpec((bb, N, C), lambda i: (i, 0, 0)),
            scratch_shapes=[
                pltpu.VMEM((bb * N, h_total), jnp.float32),   # fused qkv
                pltpu.VMEM((bb * N, C), jnp.bfloat16),        # pe + attn heads
            ],
        ),
        compiler_params=pltpu.CompilerParams(
            dimension_semantics=("parallel",),
            vmem_limit_bytes=_vmem_limit_bytes(bb, N, C, h_total)),
    )(x_tok, *weight_args)

    return jnp.transpose(out_tok.reshape(B, H, W, C), (0, 3, 1, 2))


# ----------------------- deterministic parameter setup -----------------------

def _fold_bn(gamma, beta, mean, var, eps=1e-3):
    scale = gamma / jnp.sqrt(var + eps)
    return scale, beta - mean * scale


def _bn_stats(key, cout):
    kg, kb, km, kv = jax.random.split(key, 4)
    gamma = 1.0 + 0.1 * jax.random.normal(kg, (cout,), jnp.float32)
    beta = 0.1 * jax.random.normal(kb, (cout,), jnp.float32)
    mean = 0.1 * jax.random.normal(km, (cout,), jnp.float32)
    var = 1.0 + 0.1 * jnp.abs(jax.random.normal(kv, (cout,), jnp.float32))
    return gamma, beta, mean, var


def _conv1x1_folded(key, cin, cout):
    kw, kbn = jax.random.split(key)
    w = jax.random.normal(kw, (cin, cout), jnp.float32) / jnp.sqrt(cin)
    s, b = _fold_bn(*_bn_stats(kbn, cout))
    return w * s[None, :], b


def _dwconv3x3_folded(key, c):
    kw, kbn = jax.random.split(key)
    w = jax.random.normal(kw, (3, 3, c), jnp.float32) / 3.0
    s, b = _fold_bn(*_bn_stats(kbn, c))
    return w * s[None, None, :], b


def make_kernel_params(ref_params, *, num_heads, key_dim, head_dim,
                       matmul_dtype=jnp.bfloat16):
    """Host-side weight prep: pack one fused qkv weight with layout
    [q_h0|k_h0|q_h1|k_h1|...| v (head-major, = output channel order)],
    fold 1/sqrt(key_dim) into q, cast matmul weights to bf16."""
    w_qkv, b_qkv = ref_params["w_qkv"], ref_params["b_qkv"]
    per_head = 2 * key_dim + head_dim
    scale = key_dim ** (-0.5)
    qk_w, qk_b, v_w, v_b = [], [], [], []
    for h in range(num_heads):
        off = h * per_head
        qk_w.append(w_qkv[:, off:off + key_dim] * scale)
        qk_w.append(w_qkv[:, off + key_dim:off + 2 * key_dim])
        qk_b.append(b_qkv[off:off + key_dim] * scale)
        qk_b.append(b_qkv[off + key_dim:off + 2 * key_dim])
        v_w.append(w_qkv[:, off + 2 * key_dim:off + per_head])
        v_b.append(b_qkv[off + 2 * key_dim:off + per_head])

    C = num_heads * head_dim
    w_packed = jnp.concatenate(qk_w + v_w, axis=1)           # (C, h_total)
    b_packed = jnp.concatenate(qk_b + v_b, axis=0)[None, :]  # (1, h_total)

    return {
        "w_qkv": w_packed.astype(matmul_dtype),
        "b_qkv": b_packed.astype(jnp.float32),
        "w_pe": ref_params["w_pe"].reshape(9, C).astype(jnp.float32),
        "b_pe": ref_params["b_pe"][None, :].astype(jnp.float32),
        "w_proj": ref_params["w_proj"].astype(matmul_dtype),  # (C, C)
        "b_proj": ref_params["b_proj"][None, :].astype(jnp.float32),
    }


# ---------------------------- pure-JAX reference ------------------------------

def attention_reference(x_nchw, ref_params, *, num_heads, key_dim, head_dim):
    B, C, H, W = x_nchw.shape
    N = H * W
    x = jnp.transpose(x_nchw, (0, 2, 3, 1)).reshape(B, N, C)
    qkv = x @ ref_params["w_qkv"] + ref_params["b_qkv"]
    per_head = 2 * key_dim + head_dim
    scale = key_dim ** (-0.5)
    outs, vs = [], []
    for h in range(num_heads):
        off = h * per_head
        q = qkv[..., off:off + key_dim]
        k = qkv[..., off + key_dim:off + 2 * key_dim]
        v = qkv[..., off + 2 * key_dim:off + per_head]
        attn = jnp.einsum("bnd,bmd->bnm", q, k) * scale
        attn = jax.nn.softmax(attn, axis=-1)
        outs.append(jnp.einsum("bnm,bmd->bnd", attn, v))
        vs.append(v)
    attn_out = jnp.concatenate(outs, axis=-1)
    v_full = jnp.concatenate(vs, axis=-1)

    v_sp = v_full.reshape(B, H, W, C)
    w_pe = ref_params["w_pe"].reshape(3, 3, 1, C)
    pe = lax.conv_general_dilated(
        v_sp, w_pe, (1, 1), "SAME",
        dimension_numbers=("NHWC", "HWIO", "NHWC"),
        feature_group_count=C) + ref_params["b_pe"]

    att = attn_out + pe.reshape(B, N, C)
    out = att @ ref_params["w_proj"] + ref_params["b_proj"]
    return jnp.transpose(out.reshape(B, H, W, C), (0, 3, 1, 2))


# ------------------------------------ main ------------------------------------

if __name__ == "__main__":
    key = jax.random.PRNGKey(0)
    # Attention(dim=128, num_heads=2, attn_ratio=0.5) on an 8x8 feature map.
    B, dim, H, W = 2, 128, 8, 8
    num_heads = 2
    head_dim = dim // num_heads          # 64
    key_dim = head_dim // 2              # attn_ratio = 0.5 -> 32
    h_total = dim + 2 * key_dim * num_heads

    kx, kqkv, kpe, kproj = jax.random.split(key, 4)
    x = jax.random.normal(kx, (B, dim, H, W), jnp.float32)

    w_qkv, b_qkv = _conv1x1_folded(kqkv, dim, h_total)
    w_pe, b_pe = _dwconv3x3_folded(kpe, dim)
    w_proj, b_proj = _conv1x1_folded(kproj, dim, dim)
    ref_params = dict(w_qkv=w_qkv, b_qkv=b_qkv, w_pe=w_pe, b_pe=b_pe,
                      w_proj=w_proj, b_proj=b_proj)
    kparams = make_kernel_params(ref_params, num_heads=num_heads,
                                 key_dim=key_dim, head_dim=head_dim)

    out = attention_forward(x, kparams, num_heads=num_heads,
                            key_dim=key_dim, head_dim=head_dim)
    out = jax.block_until_ready(out)

    ref = attention_reference(x, ref_params, num_heads=num_heads,
                              key_dim=key_dim, head_dim=head_dim)
    assert out.shape == (B, dim, H, W)
    # bf16 MXU operands (f32 accumulation) introduce ~1e-2-level noise relative
    # to the f32 reference; use a normalized max-error check.
    rel_err = float(jnp.max(jnp.abs(out - ref)) / (jnp.max(jnp.abs(ref)) + 1e-6))
    assert rel_err < 3e-2, f"normalized max err too large: {rel_err}"
    print("KERNEL_OK")
</pallas_src>

<mosaic_0001>
module attributes {stable_mosaic.version = 11 : i64} {
  func.func @_attention_kernel(%arg0: i32, %arg1: memref<2x64x128xbf16, #tpu.memory_space<vmem>>, %arg2: memref<128x256xbf16, #tpu.memory_space<vmem>>, %arg3: memref<1x256xf32, #tpu.memory_space<vmem>>, %arg4: memref<9x128xf32, #tpu.memory_space<vmem>>, %arg5: memref<1x128xf32, #tpu.memory_space<vmem>>, %arg6: memref<128x128xbf16, #tpu.memory_space<vmem>>, %arg7: memref<1x128xf32, #tpu.memory_space<vmem>>, %arg8: memref<2x64x128xf32, #tpu.memory_space<vmem>>, %arg9: memref<128x256xf32, #tpu.memory_space<vmem>>, %arg10: memref<128x128xbf16, #tpu.memory_space<vmem>>) attributes {dimension_semantics = [#tpu.dimension_semantics<parallel>], iteration_bounds = array<i64: 1>, scalar_prefetch = 0 : i64, scratch_operands = 2 : i64, tpu.core_type = #tpu.core_type<tc>, window_params = [{transform_indices = @transform_0, window_bounds = array<i64: 2, 64, 128>}, {pipeline_mode = #tpu.pipeline_mode<synchronous>, transform_indices = @transform_1, window_bounds = array<i64: 128, 256>}, {pipeline_mode = #tpu.pipeline_mode<synchronous>, transform_indices = @transform_2, window_bounds = array<i64: 1, 256>}, {pipeline_mode = #tpu.pipeline_mode<synchronous>, transform_indices = @transform_3, window_bounds = array<i64: 9, 128>}, {pipeline_mode = #tpu.pipeline_mode<synchronous>, transform_indices = @transform_4, window_bounds = array<i64: 1, 128>}, {pipeline_mode = #tpu.pipeline_mode<synchronous>, transform_indices = @transform_5, window_bounds = array<i64: 128, 128>}, {pipeline_mode = #tpu.pipeline_mode<synchronous>, transform_indices = @transform_6, window_bounds = array<i64: 1, 128>}, {transform_indices = @transform_7, window_bounds = array<i64: 2, 64, 128>}]} {
    %c0 = arith.constant 0 : index
    %c0_0 = arith.constant 0 : index
    %c0_1 = arith.constant 0 : index
    %0 = vector.load %arg1[%c0, %c0_0, %c0_1] : memref<2x64x128xbf16, #tpu.memory_space<vmem>>, vector<2x64x128xbf16>
    %1 = vector.shape_cast %0 : vector<2x64x128xbf16> to vector<128x128xbf16>
    %c0_2 = arith.constant 0 : index
    %c0_3 = arith.constant 0 : index
    %2 = vector.load %arg2[%c0_2, %c0_3] : memref<128x256xbf16, #tpu.memory_space<vmem>>, vector<128x256xbf16>
    %cst = arith.constant dense<0.000000e+00> : vector<128x256xf32>
    %3 = tpu.matmul %1, %2, %cst {dimension_numbers = #tpu.dot_dimension_numbers<[1], [0], [0], [1], [0, 0, 1, 1], [], []>} : vector<128x128xbf16>, vector<128x256xbf16>, vector<128x256xf32> -> vector<128x256xf32>
    %c0_4 = arith.constant 0 : index
    %c0_5 = arith.constant 0 : index
    %4 = vector.load %arg3[%c0_4, %c0_5] : memref<1x256xf32, #tpu.memory_space<vmem>>, vector<1x256xf32>
    %5 = vector.broadcast %4 : vector<1x256xf32> to vector<128x256xf32>
    %6 = arith.addf %3, %5 : vector<128x256xf32>
    %c0_6 = arith.constant 0 : index
    %c0_7 = arith.constant 0 : index
    %7 = vector.load %arg9[%c0_6, %c0_7] : memref<128x256xf32, #tpu.memory_space<vmem>>, vector<128x256xf32>
    tpu.vector_store %arg9[%c0_6, %c0_7], %6 {strides = array<i32>} : memref<128x256xf32, #tpu.memory_space<vmem>>, vector<128x256xf32>,
    %c0_8 = arith.constant 0 : index
    %c128 = arith.constant 128 : index
    %8 = vector.load %arg9[%c0_8, %c128] : memref<128x256xf32, #tpu.memory_space<vmem>>, vector<128x128xf32>
    %9 = tpu.iota {dimensions = array<i32: 0>} : vector<128x1xi32>
    %c64_i32 = arith.constant 64 : i32
    %c0_i32 = arith.constant 0 : i32
    %10 = arith.cmpi eq, %c64_i32, %c0_i32 : i32
    %c1_i32 = arith.constant 1 : i32
    %11 = arith.select %10, %c1_i32, %c64_i32 : i32
    %12 = vector.broadcast %11 : i32 to vector<128x1xi32>
    %13 = arith.remsi %9, %12 : vector<128x1xi32>
    %c0_i32_9 = arith.constant 0 : i32
    %14 = vector.broadcast %c0_i32_9 : i32 to vector<128x1xi32>
    %15 = arith.cmpi ne, %13, %14 : vector<128x1xi32>
    %c0_i32_10 = arith.constant 0 : i32
    %16 = vector.broadcast %c0_i32_10 : i32 to vector<128x1xi32>
    %17 = arith.cmpi slt, %13, %16 : vector<128x1xi32>
    %c0_i32_11 = arith.constant 0 : i32
    %18 = arith.cmpi slt, %11, %c0_i32_11 : i32
    %19 = vector.broadcast %18 : i1 to vector<128x1xi1>
    %20 = vector.broadcast %19 : vector<128x1xi1> to vector<128x1xi1>
    %21 = arith.xori %17, %20 : vector<128x1xi1>
    %22 = arith.andi %21, %15 : vector<128x1xi1>
    %23 = vector.broadcast %11 : i32 to vector<128x1xi32>
    %24 = arith.addi %13, %23 : vector<128x1xi32>
    %25 = arith.select %22, %24, %13 : vector<128x1xi1>, vector<128x1xi32>
    %c8_i32 = arith.constant 8 : i32
    %c0_i32_12 = arith.constant 0 : i32
    %26 = arith.cmpi eq, %c8_i32, %c0_i32_12 : i32
    %c1_i32_13 = arith.constant 1 : i32
    %27 = arith.select %26, %c1_i32_13, %c8_i32 : i32
    %28 = vector.broadcast %27 : i32 to vector<128x1xi32>
    %29 = arith.remsi %25, %28 : vector<128x1xi32>
    %c0_i32_14 = arith.constant 0 : i32
    %30 = vector.broadcast %c0_i32_14 : i32 to vector<128x1xi32>
    %31 = arith.cmpi ne, %29, %30 : vector<128x1xi32>
    %c0_i32_15 = arith.constant 0 : i32
    %32 = vector.broadcast %c0_i32_15 : i32 to vector<128x1xi32>
    %33 = arith.cmpi slt, %29, %32 : vector<128x1xi32>
    %c0_i32_16 = arith.constant 0 : i32
    %34 = arith.cmpi slt, %27, %c0_i32_16 : i32
    %35 = vector.broadcast %34 : i1 to vector<128x1xi1>
    %36 = vector.broadcast %35 : vector<128x1xi1> to vector<128x1xi1>
    %37 = arith.xori %33, %36 : vector<128x1xi1>
    %38 = arith.andi %37, %31 : vector<128x1xi1>
    %39 = vector.broadcast %27 : i32 to vector<128x1xi32>
    %40 = arith.addi %29, %39 : vector<128x1xi32>
    %41 = arith.select %38, %40, %29 : vector<128x1xi1>, vector<128x1xi32>
    %c8_i32_17 = arith.constant 8 : i32
    %42 = vector.broadcast %c8_i32_17 : i32 to vector<128x1xi32>
    %43 = arith.cmpi sge, %25, %42 : vector<128x1xi32>
    %c56_i32 = arith.constant 56 : i32
    %44 = vector.broadcast %c56_i32 : i32 to vector<128x1xi32>
    %45 = arith.cmpi slt, %25, %44 : vector<128x1xi32>
    %c1_i32_18 = arith.constant 1 : i32
    %46 = vector.broadcast %c1_i32_18 : i32 to vector<128x1xi32>
    %47 = arith.cmpi sge, %41, %46 : vector<128x1xi32>
    %c6_i32 = arith.constant 6 : i32
    %48 = vector.broadcast %c6_i32 : i32 to vector<128x1xi32>
    %49 = arith.cmpi sle, %41, %48 : vector<128x1xi32>
    %c0_19 = arith.constant 0 : index
    %c0_20 = arith.constant 0 : index
    %50 = vector.load %arg4[%c0_19, %c0_20] : memref<9x128xf32, #tpu.memory_space<vmem>>, vector<9x128xf32>
    %cst_21 = arith.constant 0.000000e+00 : f32
    %51 = vector.broadcast %cst_21 : f32 to vector<128x128xf32>
    %c9_i32 = arith.constant 9 : i32
    %52 = tpu.dynamic_rotate %8 by %c9_i32 dim 0 : vector<128x128xf32>, i32 -> vector<128x128xf32>
    %53 = vector.extract_strided_slice %50 {offsets = [0, 0], sizes = [1, 128], strides = [1, 1]} : vector<9x128xf32> to vector<1x128xf32>
    %54 = vector.broadcast %53 : vector<1x128xf32> to vector<128x128xf32>
    %55 = arith.mulf %52, %54 : vector<128x128xf32>
    %56 = arith.andi %43, %47 : vector<128x1xi1>
    %cst_22 = arith.constant 0.000000e+00 : f32
    %57 = vector.shape_cast %56 : vector<128x1xi1> to vector<128x1xi1>
    %58 = vector.broadcast %57 : vector<128x1xi1> to vector<128x128xi1>
    %59 = vector.broadcast %cst_22 : f32 to vector<128x128xf32>
    %60 = arith.select %58, %55, %59 : vector<128x128xi1>, vector<128x128xf32>
    %61 = arith.addf %51, %60 : vector<128x128xf32>
    %c8_i32_23 = arith.constant 8 : i32
    %62 = tpu.dynamic_rotate %8 by %c8_i32_23 dim 0 : vector<128x128xf32>, i32 -> vector<128x128xf32>
    %63 = vector.extract_strided_slice %50 {offsets = [1, 0], sizes = [1, 128], strides = [1, 1]} : vector<9x128xf32> to vector<1x128xf32>
    %64 = vector.broadcast %63 : vector<1x128xf32> to vector<128x128xf32>
    %65 = arith.mulf %62, %64 : vector<128x128xf32>
    %cst_24 = arith.constant 0.000000e+00 : f32
    %66 = vector.shape_cast %43 : vector<128x1xi1> to vector<128x1xi1>
    %67 = vector.broadcast %66 : vector<128x1xi1> to vector<128x128xi1>
    %68 = vector.broadcast %cst_24 : f32 to vector<128x128xf32>
    %69 = arith.select %67, %65, %68 : vector<128x128xi1>, vector<128x128xf32>
    %70 = arith.addf %61, %69 : vector<128x128xf32>
    %c7_i32 = arith.constant 7 : i32
    %71 = tpu.dynamic_rotate %8 by %c7_i32 dim 0 : vector<128x128xf32>, i32 -> vector<128x128xf32>
    %72 = vector.extract_strided_slice %50 {offsets = [2, 0], sizes = [1, 128], strides = [1, 1]} : vector<9x128xf32> to vector<1x128xf32>
    %73 = vector.broadcast %72 : vector<1x128xf32> to vector<128x128xf32>
    %74 = arith.mulf %71, %73 : vector<128x128xf32>
    %75 = arith.andi %43, %49 : vector<128x1xi1>
    %cst_25 = arith.constant 0.000000e+00 : f32
    %76 = vector.shape_cast %75 : vector<128x1xi1> to vector<128x1xi1>
    %77 = vector.broadcast %76 : vector<128x1xi1> to vector<128x128xi1>
    %78 = vector.broadcast %cst_25 : f32 to vector<128x128xf32>
    %79 = arith.select %77, %74, %78 : vector<128x128xi1>, vector<128x128xf32>
    %80 = arith.addf %70, %79 : vector<128x128xf32>
    %c1_i32_26 = arith.constant 1 : i32
    %81 = tpu.dynamic_rotate %8 by %c1_i32_26 dim 0 : vector<128x128xf32>, i32 -> vector<128x128xf32>
    %82 = vector.extract_strided_slice %50 {offsets = [3, 0], sizes = [1, 128], strides = [1, 1]} : vector<9x128xf32> to vector<1x128xf32>
    %83 = vector.broadcast %82 : vector<1x128xf32> to vector<128x128xf32>
    %84 = arith.mulf %81, %83 : vector<128x128xf32>
    %cst_27 = arith.constant 0.000000e+00 : f32
    %85 = vector.shape_cast %47 : vector<128x1xi1> to vector<128x1xi1>
    %86 = vector.broadcast %85 : vector<128x1xi1> to vector<128x128xi1>
    %87 = vector.broadcast %cst_27 : f32 to vector<128x128xf32>
    %88 = arith.select %86, %84, %87 : vector<128x128xi1>, vector<128x128xf32>
    %89 = arith.addf %80, %88 : vector<128x128xf32>
    %90 = vector.extract_strided_slice %50 {offsets = [4, 0], sizes = [1, 128], strides = [1, 1]} : vector<9x128xf32> to vector<1x128xf32>
    %91 = vector.broadcast %90 : vector<1x128xf32> to vector<128x128xf32>
    %92 = arith.mulf %8, %91 : vector<128x128xf32>
    %93 = arith.addf %89, %92 : vector<128x128xf32>
    %c127_i32 = arith.constant 127 : i32
    %94 = tpu.dynamic_rotate %8 by %c127_i32 dim 0 : vector<128x128xf32>, i32 -> vector<128x128xf32>
    %95 = vector.extract_strided_slice %50 {offsets = [5, 0], sizes = [1, 128], strides = [1, 1]} : vector<9x128xf32> to vector<1x128xf32>
    %96 = vector.broadcast %95 : vector<1x128xf32> to vector<128x128xf32>
    %97 = arith.mulf %94, %96 : vector<128x128xf32>
    %cst_28 = arith.constant 0.000000e+00 : f32
    %98 = vector.shape_cast %49 : vector<128x1xi1> to vector<128x1xi1>
    %99 = vector.broadcast %98 : vector<128x1xi1> to vector<128x128xi1>
    %100 = vector.broadcast %cst_28 : f32 to vector<128x128xf32>
    %101 = arith.select %99, %97, %100 : vector<128x128xi1>, vector<128x128xf32>
    %102 = arith.addf %93, %101 : vector<128x128xf32>
    %c121_i32 = arith.constant 121 : i32
    %103 = tpu.dynamic_rotate %8 by %c121_i32 dim 0 : vector<128x128xf32>, i32 -> vector<128x128xf32>
    %104 = vector.extract_strided_slice %50 {offsets = [6, 0], sizes = [1, 128], strides = [1, 1]} : vector<9x128xf32> to vector<1x128xf32>
    %105 = vector.broadcast %104 : vector<1x128xf32> to vector<128x128xf32>
    %106 = arith.mulf %103, %105 : vector<128x128xf32>
    %107 = arith.andi %45, %47 : vector<128x1xi1>
    %cst_29 = arith.constant 0.000000e+00 : f32
    %108 = vector.shape_cast %107 : vector<128x1xi1> to vector<128x1xi1>
    %109 = vector.broadcast %108 : vector<128x1xi1> to vector<128x128xi1>
    %110 = vector.broadcast %cst_29 : f32 to vector<128x128xf32>
    %111 = arith.select %109, %106, %110 : vector<128x128xi1>, vector<128x128xf32>
    %112 = arith.addf %102, %111 : vector<128x128xf32>
    %c120_i32 = arith.constant 120 : i32
    %113 = tpu.dynamic_rotate %8 by %c120_i32 dim 0 : vector<128x128xf32>, i32 -> vector<128x128xf32>
    %114 = vector.extract_strided_slice %50 {offsets = [7, 0], sizes = [1, 128], strides = [1, 1]} : vector<9x128xf32> to vector<1x128xf32>
    %115 = vector.broadcast %114 : vector<1x128xf32> to vector<128x128xf32>
    %116 = arith.mulf %113, %115 : vector<128x128xf32>
    %cst_30 = arith.constant 0.000000e+00 : f32
    %117 = vector.shape_cast %45 : vector<128x1xi1> to vector<128x1xi1>
    %118 = vector.broadcast %117 : vector<128x1xi1> to vector<128x128xi1>
    %119 = vector.broadcast %cst_30 : f32 to vector<128x128xf32>
    %120 = arith.select %118, %116, %119 : vector<128x128xi1>, vector<128x128xf32>
    %121 = arith.addf %112, %120 : vector<128x128xf32>
    %c119_i32 = arith.constant 119 : i32
    %122 = tpu.dynamic_rotate %8 by %c119_i32 dim 0 : vector<128x128xf32>, i32 -> vector<128x128xf32>
    %123 = vector.extract_strided_slice %50 {offsets = [8, 0], sizes = [1, 128], strides = [1, 1]} : vector<9x128xf32> to vector<1x128xf32>
    %124 = vector.broadcast %123 : vector<1x128xf32> to vector<128x128xf32>
    %125 = arith.mulf %122, %124 : vector<128x128xf32>
    %126 = arith.andi %45, %49 : vector<128x1xi1>
    %cst_31 = arith.constant 0.000000e+00 : f32
    %127 = vector.shape_cast %126 : vector<128x1xi1> to vector<128x1xi1>
    %128 = vector.broadcast %127 : vector<128x1xi1> to vector<128x128xi1>
    %129 = vector.broadcast %cst_31 : f32 to vector<128x128xf32>
    %130 = arith.select %128, %125, %129 : vector<128x128xi1>, vector<128x128xf32>
    %131 = arith.addf %121, %130 : vector<128x128xf32>
    %c0_32 = arith.constant 0 : index
    %c0_33 = arith.constant 0 : index
    %132 = vector.load %arg5[%c0_32, %c0_33] : memref<1x128xf32, #tpu.memory_space<vmem>>, vector<1x128xf32>
    %133 = vector.broadcast %132 : vector<1x128xf32> to vector<128x128xf32>
    %134 = arith.addf %131, %133 : vector<128x128xf32>
    %135 = arith.truncf %134 : vector<128x128xf32> to vector<128x128xbf16>
    %c0_34 = arith.constant 0 : index
    %c0_35 = arith.constant 0 : index
    %136 = vector.load %arg10[%c0_34, %c0_35] : memref<128x128xbf16, #tpu.memory_space<vmem>>, vector<128x128xbf16>
    tpu.vector_store %arg10[%c0_34, %c0_35], %135 {strides = array<i32>} : memref<128x128xbf16, #tpu.memory_space<vmem>>, vector<128x128xbf16>,
    %c0_36 = arith.constant 0 : index
    %c0_37 = arith.constant 0 : index
    %137 = vector.load %arg9[%c0_36, %c0_37] : memref<128x256xf32, #tpu.memory_space<vmem>>, vector<64x64xf32>
    %138 = vector.extract_strided_slice %137 {offsets = [0, 0], sizes = [64, 32], strides = [1, 1]} : vector<64x64xf32> to vector<64x32xf32>
    %139 = arith.truncf %138 : vector<64x32xf32> to vector<64x32xbf16>
    %140 = vector.extract_strided_slice %137 {offsets = [0, 32], sizes = [64, 32], strides = [1, 1]} : vector<64x64xf32> to vector<64x32xf32>
    %141 = arith.truncf %140 : vector<64x32xf32> to vector<64x32xbf16>
    %c0_38 = arith.constant 0 : index
    %c128_39 = arith.constant 128 : index
    %142 = vector.load %arg9[%c0_38, %c128_39] : memref<128x256xf32, #tpu.memory_space<vmem>>, vector<64x64xf32>
    %cst_40 = arith.constant dense<0.000000e+00> : vector<64x64xf32>
    %143 = tpu.matmul %139, %141, %cst_40 {dimension_numbers = #tpu.dot_dimension_numbers<[1], [1], [0], [0], [0, 0, 1, 0], [], []>} : vector<64x32xbf16>, vector<64x32xbf16>, vector<64x64xf32> -> vector<64x64xf32>
    %cst_41 = arith.constant dense<0xFF800000> : vector<64xf32>
    %144 = vector.multi_reduction <maximumf>, %143, %cst_41 [1] : vector<64x64xf32> to vector<64xf32>
    %145 = vector.shape_cast %144 : vector<64xf32> to vector<64x1xf32>
    %146 = vector.broadcast %145 : vector<64x1xf32> to vector<64x64xf32>
    %147 = arith.subf %143, %146 : vector<64x64xf32>
    %148 = math.exp %147 : vector<64x64xf32>
    %cst_42 = arith.constant dense<0.000000e+00> : vector<64xf32>
    %149 = vector.multi_reduction <add>, %148, %cst_42 [1] : vector<64x64xf32> to vector<64xf32>
    %150 = vector.shape_cast %149 : vector<64xf32> to vector<64x1xf32>
    %151 = arith.truncf %148 : vector<64x64xf32> to vector<64x64xbf16>
    %152 = arith.truncf %142 : vector<64x64xf32> to vector<64x64xbf16>
    %cst_43 = arith.constant dense<0.000000e+00> : vector<64x64xf32>
    %153 = tpu.matmul %151, %152, %cst_43 {dimension_numbers = #tpu.dot_dimension_numbers<[1], [0], [0], [1], [0, 0, 1, 1], [], []>} : vector<64x64xbf16>, vector<64x64xbf16>, vector<64x64xf32> -> vector<64x64xf32>
    %154 = tpu.reciprocal %150 {approx = true} : vector<64x1xf32> -> vector<64x1xf32>
    %155 = vector.broadcast %154 : vector<64x1xf32> to vector<64x64xf32>
    %156 = arith.mulf %153, %155 : vector<64x64xf32>
    %c0_44 = arith.constant 0 : index
    %c0_45 = arith.constant 0 : index
    %157 = vector.load %arg10[%c0_44, %c0_45] : memref<128x128xbf16, #tpu.memory_space<vmem>>, vector<64x64xbf16>
    %158 = arith.extf %157 : vector<64x64xbf16> to vector<64x64xf32>
    %159 = arith.addf %158, %156 : vector<64x64xf32>
    %160 = arith.truncf %159 : vector<64x64xf32> to vector<64x64xbf16>
    %c0_46 = arith.constant 0 : index
    %c0_47 = arith.constant 0 : index
    %161 = vector.load %arg10[%c0_46, %c0_47] : memref<128x128xbf16, #tpu.memory_space<vmem>>, vector<64x64xbf16>
    tpu.vector_store %arg10[%c0_46, %c0_47], %160 {strides = array<i32>} : memref<128x128xbf16, #tpu.memory_space<vmem>>, vector<64x64xbf16>,
    %c0_48 = arith.constant 0 : index
    %c64 = arith.constant 64 : index
    %162 = vector.load %arg9[%c0_48, %c64] : memref<128x256xf32, #tpu.memory_space<vmem>>, vector<64x64xf32>
    %163 = vector.extract_strided_slice %162 {offsets = [0, 0], sizes = [64, 32], strides = [1, 1]} : vector<64x64xf32> to vector<64x32xf32>
    %164 = arith.truncf %163 : vector<64x32xf32> to vector<64x32xbf16>
    %165 = vector.extract_strided_slice %162 {offsets = [0, 32], sizes = [64, 32], strides = [1, 1]} : vector<64x64xf32> to vector<64x32xf32>
    %166 = arith.truncf %165 : vector<64x32xf32> to vector<64x32xbf16>
    %c0_49 = arith.constant 0 : index
    %c192 = arith.constant 192 : index
    %167 = vector.load %arg9[%c0_49, %c192] : memref<128x256xf32, #tpu.memory_space<vmem>>, vector<64x64xf32>
    %cst_50 = arith.constant dense<0.000000e+00> : vector<64x64xf32>
    %168 = tpu.matmul %164, %166, %cst_50 {dimension_numbers = #tpu.dot_dimension_numbers<[1], [1], [0], [0], [0, 0, 1, 0], [], []>} : vector<64x32xbf16>, vector<64x32xbf16>, vector<64x64xf32> -> vector<64x64xf32>
    %cst_51 = arith.constant dense<0xFF800000> : vector<64xf32>
    %169 = vector.multi_reduction <maximumf>, %168, %cst_51 [1] : vector<64x64xf32> to vector<64xf32>
    %170 = vector.shape_cast %169 : vector<64xf32> to vector<64x1xf32>
    %171 = vector.broadcast %170 : vector<64x1xf32> to vector<64x64xf32>
    %172 = arith.subf %168, %171 : vector<64x64xf32>
    %173 = math.exp %172 : vector<64x64xf32>
    %cst_52 = arith.constant dense<0.000000e+00> : vector<64xf32>
    %174 = vector.multi_reduction <add>, %173, %cst_52 [1] : vector<64x64xf32> to vector<64xf32>
    %175 = vector.shape_cast %174 : vector<64xf32> to vector<64x1xf32>
    %176 = arith.truncf %173 : vector<64x64xf32> to vector<64x64xbf16>
    %177 = arith.truncf %167 : vector<64x64xf32> to vector<64x64xbf16>
    %cst_53 = arith.constant dense<0.000000e+00> : vector<64x64xf32>
    %178 = tpu.matmul %176, %177, %cst_53 {dimension_numbers = #tpu.dot_dimension_numbers<[1], [0], [0], [1], [0, 0, 1, 1], [], []>} : vector<64x64xbf16>, vector<64x64xbf16>, vector<64x64xf32> -> vector<64x64xf32>
    %179 = tpu.reciprocal %175 {approx = true} : vector<64x1xf32> -> vector<64x1xf32>
    %180 = vector.broadcast %179 : vector<64x1xf32> to vector<64x64xf32>
    %181 = arith.mulf %178, %180 : vector<64x64xf32>
    %c0_54 = arith.constant 0 : index
    %c64_55 = arith.constant 64 : index
    %182 = vector.load %arg10[%c0_54, %c64_55] : memref<128x128xbf16, #tpu.memory_space<vmem>>, vector<64x64xbf16>
    %183 = arith.extf %182 : vector<64x64xbf16> to vector<64x64xf32>
    %184 = arith.addf %183, %181 : vector<64x64xf32>
    %185 = arith.truncf %184 : vector<64x64xf32> to vector<64x64xbf16>
    %c0_56 = arith.constant 0 : index
    %c64_57 = arith.constant 64 : index
    %186 = vector.load %arg10[%c0_56, %c64_57] : memref<128x128xbf16, #tpu.memory_space<vmem>>, vector<64x64xbf16>
    tpu.vector_store %arg10[%c0_56, %c64_57], %185 {strides = array<i32>} : memref<128x128xbf16, #tpu.memory_space<vmem>>, vector<64x64xbf16>,
    %c64_58 = arith.constant 64 : index
    %c0_59 = arith.constant 0 : index
    %187 = vector.load %arg9[%c64_58, %c0_59] : memref<128x256xf32, #tpu.memory_space<vmem>>, vector<64x64xf32>
    %188 = vector.extract_strided_slice %187 {offsets = [0, 0], sizes = [64, 32], strides = [1, 1]} : vector<64x64xf32> to vector<64x32xf32>
    %189 = arith.truncf %188 : vector<64x32xf32> to vector<64x32xbf16>
    %190 = vector.extract_strided_slice %187 {offsets = [0, 32], sizes = [64, 32], strides = [1, 1]} : vector<64x64xf32> to vector<64x32xf32>
    %191 = arith.truncf %190 : vector<64x32xf32> to vector<64x32xbf16>
    %c64_60 = arith.constant 64 : index
    %c128_61 = arith.constant 128 : index
    %192 = vector.load %arg9[%c64_60, %c128_61] : memref<128x256xf32, #tpu.memory_space<vmem>>, vector<64x64xf32>
    %cst_62 = arith.constant dense<0.000000e+00> : vector<64x64xf32>
    %193 = tpu.matmul %189, %191, %cst_62 {dimension_numbers = #tpu.dot_dimension_numbers<[1], [1], [0], [0], [0, 0, 1, 0], [], []>} : vector<64x32xbf16>, vector<64x32xbf16>, vector<64x64xf32> -> vector<64x64xf32>
    %cst_63 = arith.constant dense<0xFF800000> : vector<64xf32>
    %194 = vector.multi_reduction <maximumf>, %193, %cst_63 [1] : vector<64x64xf32> to vector<64xf32>
    %195 = vector.shape_cast %194 : vector<64xf32> to vector<64x1xf32>
    %196 = vector.broadcast %195 : vector<64x1xf32> to vector<64x64xf32>
    %197 = arith.subf %193, %196 : vector<64x64xf32>
    %198 = math.exp %197 : vector<64x64xf32>
    %cst_64 = arith.constant dense<0.000000e+00> : vector<64xf32>
    %199 = vector.multi_reduction <add>, %198, %cst_64 [1] : vector<64x64xf32> to vector<64xf32>
    %200 = vector.shape_cast %199 : vector<64xf32> to vector<64x1xf32>
    %201 = arith.truncf %198 : vector<64x64xf32> to vector<64x64xbf16>
    %202 = arith.truncf %192 : vector<64x64xf32> to vector<64x64xbf16>
    %cst_65 = arith.constant dense<0.000000e+00> : vector<64x64xf32>
    %203 = tpu.matmul %201, %202, %cst_65 {dimension_numbers = #tpu.dot_dimension_numbers<[1], [0], [0], [1], [0, 0, 1, 1], [], []>} : vector<64x64xbf16>, vector<64x64xbf16>, vector<64x64xf32> -> vector<64x64xf32>
    %204 = tpu.reciprocal %200 {approx = true} : vector<64x1xf32> -> vector<64x1xf32>
    %205 = vector.broadcast %204 : vector<64x1xf32> to vector<64x64xf32>
    %206 = arith.mulf %203, %205 : vector<64x64xf32>
    %c64_66 = arith.constant 64 : index
    %c0_67 = arith.constant 0 : index
    %207 = vector.load %arg10[%c64_66, %c0_67] : memref<128x128xbf16, #tpu.memory_space<vmem>>, vector<64x64xbf16>
    %208 = arith.extf %207 : vector<64x64xbf16> to vector<64x64xf32>
    %209 = arith.addf %208, %206 : vector<64x64xf32>
    %210 = arith.truncf %209 : vector<64x64xf32> to vector<64x64xbf16>
    %c64_68 = arith.constant 64 : index
    %c0_69 = arith.constant 0 : index
    %211 = vector.load %arg10[%c64_68, %c0_69] : memref<128x128xbf16, #tpu.memory_space<vmem>>, vector<64x64xbf16>
    tpu.vector_store %arg10[%c64_68, %c0_69], %210 {strides = array<i32>} : memref<128x128xbf16, #tpu.memory_space<vmem>>, vector<64x64xbf16>,
    %c64_70 = arith.constant 64 : index
    %c64_71 = arith.constant 64 : index
    %212 = vector.load %arg9[%c64_70, %c64_71] : memref<128x256xf32, #tpu.memory_space<vmem>>, vector<64x64xf32>
    %213 = vector.extract_strided_slice %212 {offsets = [0, 0], sizes = [64, 32], strides = [1, 1]} : vector<64x64xf32> to vector<64x32xf32>
    %214 = arith.truncf %213 : vector<64x32xf32> to vector<64x32xbf16>
    %215 = vector.extract_strided_slice %212 {offsets = [0, 32], sizes = [64, 32], strides = [1, 1]} : vector<64x64xf32> to vector<64x32xf32>
    %216 = arith.truncf %215 : vector<64x32xf32> to vector<64x32xbf16>
    %c64_72 = arith.constant 64 : index
    %c192_73 = arith.constant 192 : index
    %217 = vector.load %arg9[%c64_72, %c192_73] : memref<128x256xf32, #tpu.memory_space<vmem>>, vector<64x64xf32>
    %cst_74 = arith.constant dense<0.000000e+00> : vector<64x64xf32>
    %218 = tpu.matmul %214, %216, %cst_74 {dimension_numbers = #tpu.dot_dimension_numbers<[1], [1], [0], [0], [0, 0, 1, 0], [], []>} : vector<64x32xbf16>, vector<64x32xbf16>, vector<64x64xf32> -> vector<64x64xf32>
    %cst_75 = arith.constant dense<0xFF800000> : vector<64xf32>
    %219 = vector.multi_reduction <maximumf>, %218, %cst_75 [1] : vector<64x64xf32> to vector<64xf32>
    %220 = vector.shape_cast %219 : vector<64xf32> to vector<64x1xf32>
    %221 = vector.broadcast %220 : vector<64x1xf32> to vector<64x64xf32>
    %222 = arith.subf %218, %221 : vector<64x64xf32>
    %223 = math.exp %222 : vector<64x64xf32>
    %cst_76 = arith.constant dense<0.000000e+00> : vector<64xf32>
    %224 = vector.multi_reduction <add>, %223, %cst_76 [1] : vector<64x64xf32> to vector<64xf32>
    %225 = vector.shape_cast %224 : vector<64xf32> to vector<64x1xf32>
    %226 = arith.truncf %223 : vector<64x64xf32> to vector<64x64xbf16>
    %227 = arith.truncf %217 : vector<64x64xf32> to vector<64x64xbf16>
    %cst_77 = arith.constant dense<0.000000e+00> : vector<64x64xf32>
    %228 = tpu.matmul %226, %227, %cst_77 {dimension_numbers = #tpu.dot_dimension_numbers<[1], [0], [0], [1], [0, 0, 1, 1], [], []>} : vector<64x64xbf16>, vector<64x64xbf16>, vector<64x64xf32> -> vector<64x64xf32>
    %229 = tpu.reciprocal %225 {approx = true} : vector<64x1xf32> -> vector<64x1xf32>
    %230 = vector.broadcast %229 : vector<64x1xf32> to vector<64x64xf32>
    %231 = arith.mulf %228, %230 : vector<64x64xf32>
    %c64_78 = arith.constant 64 : index
    %c64_79 = arith.constant 64 : index
    %232 = vector.load %arg10[%c64_78, %c64_79] : memref<128x128xbf16, #tpu.memory_space<vmem>>, vector<64x64xbf16>
    %233 = arith.extf %232 : vector<64x64xbf16> to vector<64x64xf32>
    %234 = arith.addf %233, %231 : vector<64x64xf32>
    %235 = arith.truncf %234 : vector<64x64xf32> to vector<64x64xbf16>
    %c64_80 = arith.constant 64 : index
    %c64_81 = arith.constant 64 : index
    %236 = vector.load %arg10[%c64_80, %c64_81] : memref<128x128xbf16, #tpu.memory_space<vmem>>, vector<64x64xbf16>
    tpu.vector_store %arg10[%c64_80, %c64_81], %235 {strides = array<i32>} : memref<128x128xbf16, #tpu.memory_space<vmem>>, vector<64x64xbf16>,
    %c0_82 = arith.constant 0 : index
    %c0_83 = arith.constant 0 : index
    %237 = vector.load %arg10[%c0_82, %c0_83] : memref<128x128xbf16, #tpu.memory_space<vmem>>, vector<128x128xbf16>
    %c0_84 = arith.constant 0 : index
    %c0_85 = arith.constant 0 : index
    %238 = vector.load %arg6[%c0_84, %c0_85] : memref<128x128xbf16, #tpu.memory_space<vmem>>, vector<128x128xbf16>
    %cst_86 = arith.constant dense<0.000000e+00> : vector<128x128xf32>
    %239 = tpu.matmul %237, %238, %cst_86 {dimension_numbers = #tpu.dot_dimension_numbers<[1], [0], [0], [1], [0, 0, 1, 1], [], []>} : vector<128x128xbf16>, vector<128x128xbf16>, vector<128x128xf32> -> vector<128x128xf32>
    %c0_87 = arith.constant 0 : index
    %c0_88 = arith.constant 0 : index
    %240 = vector.load %arg7[%c0_87, %c0_88] : memref<1x128xf32, #tpu.memory_space<vmem>>, vector<1x128xf32>
    %241 = vector.broadcast %240 : vector<1x128xf32> to vector<128x128xf32>
    %242 = arith.addf %239, %241 : vector<128x128xf32>
    %243 = vector.shape_cast %242 : vector<128x128xf32> to vector<2x64x128xf32>
    %c0_89 = arith.constant 0 : index
    %c0_90 = arith.constant 0 : index
    %c0_91 = arith.constant 0 : index
    %244 = vector.load %arg8[%c0_89, %c0_90, %c0_91] : memref<2x64x128xf32, #tpu.memory_space<vmem>>, vector<2x64x128xf32>
    tpu.vector_store %arg8[%c0_89, %c0_90, %c0_91], %243 {strides = array<i32>} : memref<2x64x128xf32, #tpu.memory_space<vmem>>, vector<2x64x128xf32>,
    return
  }
  func.func @transform_0(%arg0: i32) -> (i32, i32, i32) {
    %c0_i32 = arith.constant 0 : i32
    %c0_i32_0 = arith.constant 0 : i32
    %c0_i32_1 = arith.constant 0 : i32
    return %arg0, %c0_i32, %c0_i32_0 : i32, i32, i32
  }
  func.func @transform_1(%arg0: i32) -> (i32, i32) {
    %c0_i32 = arith.constant 0 : i32
    %c0_i32_0 = arith.constant 0 : i32
    %c0_i32_1 = arith.constant 0 : i32
    return %c0_i32, %c0_i32_0 : i32, i32
  }
  func.func @transform_2(%arg0: i32) -> (i32, i32) {
    %c0_i32 = arith.constant 0 : i32
    %c0_i32_0 = arith.constant 0 : i32
    %c0_i32_1 = arith.constant 0 : i32
    return %c0_i32, %c0_i32_0 : i32, i32
  }
  func.func @transform_3(%arg0: i32) -> (i32, i32) {
    %c0_i32 = arith.constant 0 : i32
    %c0_i32_0 = arith.constant 0 : i32
    %c0_i32_1 = arith.constant 0 : i32
    return %c0_i32, %c0_i32_0 : i32, i32
  }
  func.func @transform_4(%arg0: i32) -> (i32, i32) {
    %c0_i32 = arith.constant 0 : i32
    %c0_i32_0 = arith.constant 0 : i32
    %c0_i32_1 = arith.constant 0 : i32
    return %c0_i32, %c0_i32_0 : i32, i32
  }
  func.func @transform_5(%arg0: i32) -> (i32, i32) {
    %c0_i32 = arith.constant 0 : i32
    %c0_i32_0 = arith.constant 0 : i32
    %c0_i32_1 = arith.constant 0 : i32
    return %c0_i32, %c0_i32_0 : i32, i32
  }
  func.func @transform_6(%arg0: i32) -> (i32, i32) {
    %c0_i32 = arith.constant 0 : i32
    %c0_i32_0 = arith.constant 0 : i32
    %c0_i32_1 = arith.constant 0 : i32
    return %c0_i32, %c0_i32_0 : i32, i32
  }
  func.func @transform_7(%arg0: i32) -> (i32, i32, i32) {
    %c0_i32 = arith.constant 0 : i32
    %c0_i32_0 = arith.constant 0 : i32
    %c0_i32_1 = arith.constant 0 : i32
    return %arg0, %c0_i32, %c0_i32_0 : i32, i32, i32
  }
}

</mosaic_0001>

<llo_original>
// kernel: tpu_custom_call.1
$region0: #{tpu_custom_call.1}
  #allocation0 [shape = 'u32[]', space=smem, size = 0x4, offset = 0x4, fixed_abs, tag = 'smem constant byte address 0x4 - core index']
  #allocation1 [shape = 'u32[144,128]{1,0:T(1,128)}', space=vmem, size = 0x12000, scoped, tag = 'internal scratch']
  #allocation2 [shape = 'f32[128,256]{1,0:T(8,128)}', space=vmem, size = 0x20000, scoped, tag = 'scratch operand']
  #allocation3 [shape = 'bf16[128,128]{1,0:T(16,128)(2,1)}', space=vmem, size = 0x8000, scoped, tag = 'scratch operand']
  %s0 = inlined_call_operand.hbm [shape: bf16[2,64,128], index: 0, kind: input, shape index: {}]
  %s1 = inlined_call_operand.hbm [shape: bf16[128,256], index: 1, kind: input, shape index: {}]
  %s2 = inlined_call_operand.vmem [shape: f32[1,256], index: 2, kind: input, shape index: {}]
  %s3 = inlined_call_operand.hbm [shape: f32[9,128], index: 3, kind: input, shape index: {}]
  %s4 = inlined_call_operand.vmem [shape: f32[1,128], index: 4, kind: input, shape index: {}]
  %s5 = inlined_call_operand.hbm [shape: bf16[128,128], index: 5, kind: input, shape index: {}]
  %s6 = inlined_call_operand.vmem [shape: f32[1,128], index: 6, kind: input, shape index: {}]
  %s7 = inlined_call_operand.hbm [shape: f32[2,64,128], index: 7, kind: output, shape index: {}]
  %s8 = sld [smem:[#allocation0]]
  $region54: #{tpu_custom_call.1} parent=0
    _
  %s10 = ssub.s32 1, %s8
  %s11 = scalar_select 0, %s10, %s8
  $region1: #{tpu_custom_call.1} parent=0
    #allocation4 [shape = 'u8[32768]{0}', space=vmem, size = 0x8000, scoped, tag = 'input window, operand 0, single buffered']
    #allocation5 [shape = 's32[1]{0}', space=sflag, size = 0x4, scoped, tag = 'scoped memory for tpu_custom_call.1']
    #allocation6 [shape = 's32[1]{0}', space=sflag, size = 0x4, scoped, tag = 'scoped memory for tpu_custom_call.1']
    #allocation7 [shape = 'u8[65536]{0}', space=vmem, size = 0x10000, scoped, tag = 'input window, operand 1, single buffered']
    #allocation8 [shape = 's32[1]{0}', space=sflag, size = 0x4, scoped, tag = 'scoped memory for tpu_custom_call.1']
    #allocation9 [shape = 'u8[8192]{0}', space=vmem, size = 0x2000, scoped, tag = 'input window, operand 3, single buffered']
    #allocation10 [shape = 'u8[32768]{0}', space=vmem, size = 0x8000, scoped, tag = 'input window, operand 5, single buffered']
    #allocation11 [shape = 's32[1]{0}', space=sflag, size = 0x4, scoped, tag = 'scoped memory for tpu_custom_call.1']
    #allocation12 [shape = 'u8[65536]{0}', space=vmem, size = 0x10000, scoped, tag = 'output window, operand 0, single buffered']
    %12 = vsyncpa [#allocation5], 0
    %13 = vsyncpa [#allocation8], 0
    %14 = vsyncpa [#allocation11], 0
    %15 = vsyncpa [#allocation6], 0
    // Predicated region
    $region2: #{tpu_custom_call.1} parent=1 // pred_check
      _
    $region3: #{tpu_custom_call.1} parent=1 // pred_check_branch
      %17 = sbr.rel (0) target = $region5
    $region4: #{tpu_custom_call.1} parent=1 // pred_region
      %s19 = ssub.s32 1024, 1024
      %20 = vsyncadd [#allocation5], %s19
      %s21 = sshll.u32 [#allocation4], 4
      %s22 = int_to_ptr.vmem [resolvable:$true] %s21
      %27 = dma.hbm_to_vmem [thread:$0]  %s0, 1024, %s22, [#allocation5], 64, 64, 4
    $region5: #{tpu_custom_call.1} parent=1 // pred_fallthru
      _
    // Predicated region
    $region6: #{tpu_custom_call.1} parent=1 // pred_check
      _
    $region7: #{tpu_custom_call.1} parent=1 // pred_check_branch
      %29 = sbr.rel (0) target = $region9
    $region8: #{tpu_custom_call.1} parent=1 // pred_region
      %s31 = ssub.s32 2048, 2048
      %32 = vsyncadd [#allocation8], %s31
      %s33 = sshll.u32 [#allocation7], 4
      %s34 = int_to_ptr.vmem [resolvable:$true] %s33
      %39 = dma.hbm_to_vmem [thread:$0]  %s1, 2048, %s34, [#allocation8], 128, 128, 8
    $region9: #{tpu_custom_call.1} parent=1 // pred_fallthru
      _
    // Predicated region
    $region10: #{tpu_custom_call.1} parent=1 // pred_check
      _
    $region11: #{tpu_custom_call.1} parent=1 // pred_check_branch
      %41 = sbr.rel (0) target = $region13
    $region12: #{tpu_custom_call.1} parent=1 // pred_region
      _
    $region13: #{tpu_custom_call.1} parent=1 // pred_fallthru
      _
    // Predicated region
    $region14: #{tpu_custom_call.1} parent=1 // pred_check
      _
    $region15: #{tpu_custom_call.1} parent=1 // pred_check_branch
      %43 = sbr.rel (0) target = $region17
    $region16: #{tpu_custom_call.1} parent=1 // pred_region
      %s45 = ssub.s32 256, 256
      %46 = vsyncadd [#allocation8], %s45
      %s47 = sshll.u32 [#allocation9], 4
      %s48 = int_to_ptr.vmem [resolvable:$true] %s47
      %53 = dma.hbm_to_vmem [thread:$0]  %s3, 256, %s48, [#allocation8], 128, 128, 8
    $region17: #{tpu_custom_call.1} parent=1 // pred_fallthru
      _
    // Predicated region
    $region18: #{tpu_custom_call.1} parent=1 // pred_check
      _
    $region19: #{tpu_custom_call.1} parent=1 // pred_check_branch
      %55 = sbr.rel (0) target = $region21
    $region20: #{tpu_custom_call.1} parent=1 // pred_region
      _
    $region21: #{tpu_custom_call.1} parent=1 // pred_fallthru
      _
    // Predicated region
    $region22: #{tpu_custom_call.1} parent=1 // pred_check
      _
    $region23: #{tpu_custom_call.1} parent=1 // pred_check_branch
      %57 = sbr.rel (0) target = $region25
    $region24: #{tpu_custom_call.1} parent=1 // pred_region
      %s59 = ssub.s32 1024, 1024
      %60 = vsyncadd [#allocation11], %s59
      %s61 = sshll.u32 [#allocation10], 4
      %s62 = int_to_ptr.vmem [resolvable:$true] %s61
      %67 = dma.hbm_to_vmem [thread:$0]  %s5, 1024, %s62, [#allocation11], 64, 64, 4
    $region25: #{tpu_custom_call.1} parent=1 // pred_fallthru
      _
    // Predicated region
    $region26: #{tpu_custom_call.1} parent=1 // pred_check
      _
    $region27: #{tpu_custom_call.1} parent=1 // pred_check_branch
      %69 = sbr.rel (0) target = $region29
    $region28: #{tpu_custom_call.1} parent=1 // pred_region
      _
    $region29: #{tpu_custom_call.1} parent=1 // pred_fallthru
      _
    // Predicated region
    $region30: #{tpu_custom_call.1} parent=1 // pred_check
      _
    $region31: #{tpu_custom_call.1} parent=1 // pred_check_branch
      %71 = sbr.rel (0) target = $region33
    $region32: #{tpu_custom_call.1} parent=1 // pred_region
      %72 = dma.done [#allocation5], 1024
    $region33: #{tpu_custom_call.1} parent=1 // pred_fallthru
      _
    // Predicated region
    $region34: #{tpu_custom_call.1} parent=1 // pred_check
      _
    $region35: #{tpu_custom_call.1} parent=1 // pred_check_branch
      %74 = sbr.rel (0) target = $region37
    $region36: #{tpu_custom_call.1} parent=1 // pred_region
      %75 = dma.done [#allocation8], 2048
    $region37: #{tpu_custom_call.1} parent=1 // pred_fallthru
      _
    // Predicated region
    $region38: #{tpu_custom_call.1} parent=1 // pred_check
      _
    $region39: #{tpu_custom_call.1} parent=1 // pred_check_branch
      %77 = sbr.rel (0) target = $region41
    $region40: #{tpu_custom_call.1} parent=1 // pred_region
      %78 = dma.done [#allocation8], 256
    $region41: #{tpu_custom_call.1} parent=1 // pred_fallthru
      _
    // Predicated region
    $region42: #{tpu_custom_call.1} parent=1 // pred_check
      _
    $region43: #{tpu_custom_call.1} parent=1 // pred_check_branch
      %80 = sbr.rel (0) target = $region45
    $region44: #{tpu_custom_call.1} parent=1 // pred_region
      %81 = dma.done [#allocation11], 1024
    $region45: #{tpu_custom_call.1} parent=1 // pred_fallthru
      _
    %v83 = vld [vmem:[#allocation4] sm:$0xf]
    %v84 = vld [vmem:[#allocation4 + $0x4] sm:$0xf]
    %v85 = vld [vmem:[#allocation4 + $0x8] sm:$0xf]
    %v86 = vld [vmem:[#allocation4 + $0xc] sm:$0xf]
    %v87 = vld [vmem:[#allocation4 + $0x10] sm:$0xf]
    %v88 = vld [vmem:[#allocation4 + $0x14] sm:$0xf]
    %v89 = vld [vmem:[#allocation4 + $0x18] sm:$0xf]
    %v90 = vld [vmem:[#allocation4 + $0x1c] sm:$0xf]
    %v91 = vld [vmem:[#allocation4 + $0x20] sm:$0xf]
    %v92 = vld [vmem:[#allocation4 + $0x24] sm:$0xf]
    %v93 = vld [vmem:[#allocation4 + $0x28] sm:$0xf]
    %v94 = vld [vmem:[#allocation4 + $0x2c] sm:$0xf]
    %v95 = vld [vmem:[#allocation4 + $0x30] sm:$0xf]
    %v96 = vld [vmem:[#allocation4 + $0x34] sm:$0xf]
    %v97 = vld [vmem:[#allocation4 + $0x38] sm:$0xf]
    %v98 = vld [vmem:[#allocation4 + $0x3c] sm:$0xf]
    %v99 = vld [vmem:[#allocation7] sm:$0xff]
    %v100 = vld [vmem:[#allocation7 + $0x8] sm:$0xff]
    %v101 = vld [vmem:[#allocation7 + $0x10] sm:$0xff]
    %v102 = vld [vmem:[#allocation7 + $0x18] sm:$0xff]
    %v103 = vld [vmem:[#allocation7 + $0x20] sm:$0xff]
    %v104 = vld [vmem:[#allocation7 + $0x28] sm:$0xff]
    %v105 = vld [vmem:[#allocation7 + $0x30] sm:$0xff]
    %v106 = vld [vmem:[#allocation7 + $0x38] sm:$0xff]
    %v107 = vld [vmem:[#allocation7 + $0x40] sm:$0xff]
    %v108 = vld [vmem:[#allocation7 + $0x48] sm:$0xff]
    %v109 = vld [vmem:[#allocation7 + $0x50] sm:$0xff]
    %v110 = vld [vmem:[#allocation7 + $0x58] sm:$0xff]
    %v111 = vld [vmem:[#allocation7 + $0x60] sm:$0xff]
    %v112 = vld [vmem:[#allocation7 + $0x68] sm:$0xff]
    %v113 = vld [vmem:[#allocation7 + $0x70] sm:$0xff]
    %v114 = vld [vmem:[#allocation7 + $0x78] sm:$0xff]
    %v115 = vld [vmem:[%s2] sm:$0x3]
    %v117 = vlaneseq
    %v118 = vshrl.u32 %v117, 7
    %v119 = vsub.s32 0, %v118
    %v120 = vrot.slane %v115, %v119
    %v121 = vlaneseq
    %v122 = vshrl.u32 %v121, 7
    %v123 = vsub.s32 1, %v122
    %v124 = vrot.slane %v115, %v123
    %v143 = vunpack.c.l.b16 %v83
    %v144 = vunpack.c.l.b16 %v84
    %v145 = vunpack.c.l.b16 %v85
    %v146 = vunpack.c.l.b16 %v86
    %v147 = vunpack.c.l.b16 %v87
    %v148 = vunpack.c.l.b16 %v88
    %v149 = vunpack.c.l.b16 %v89
    %v150 = vunpack.c.l.b16 %v90
    %v151 = vunpack.c.l.b16 %v91
    %v152 = vunpack.c.l.b16 %v92
    %v153 = vunpack.c.l.b16 %v93
    %v154 = vunpack.c.l.b16 %v94
    %v155 = vunpack.c.l.b16 %v95
    %v156 = vunpack.c.l.b16 %v96
    %v157 = vunpack.c.l.b16 %v97
    %v158 = vunpack.c.l.b16 %v98
    %v159 = vpack.c.b16 %v144, %v143
    %v160 = vpack.c.b16 %v146, %v145
    %v161 = vpack.c.b16 %v148, %v147
    %v162 = vpack.c.b16 %v150, %v149
    %v163 = vpack.c.b16 %v152, %v151
    %v164 = vpack.c.b16 %v154, %v153
    %v165 = vpack.c.b16 %v156, %v155
    %v166 = vpack.c.b16 %v158, %v157
    %v191 = vunpack.c.l.b16 %v99
    %v192 = vunpack.c.h.b16 %v99
    %v193 = vunpack.c.l.b16 %v100
    %v194 = vunpack.c.h.b16 %v100
    %v195 = vunpack.c.l.b16 %v101
    %v196 = vunpack.c.h.b16 %v101
    %v197 = vunpack.c.l.b16 %v102
    %v198 = vunpack.c.h.b16 %v102
    %v199 = vunpack.c.l.b16 %v103
    %v200 = vunpack.c.h.b16 %v103
    %v201 = vunpack.c.l.b16 %v104
    %v202 = vunpack.c.h.b16 %v104
    %v203 = vunpack.c.l.b16 %v105
    %v204 = vunpack.c.h.b16 %v105
    %v205 = vunpack.c.l.b16 %v106
    %v206 = vunpack.c.h.b16 %v106
    %v207 = vunpack.c.l.b16 %v107
    %v208 = vunpack.c.h.b16 %v107
    %v209 = vunpack.c.l.b16 %v108
    %v210 = vunpack.c.h.b16 %v108
    %v211 = vunpack.c.l.b16 %v109
    %v212 = vunpack.c.h.b16 %v109
    %v213 = vunpack.c.l.b16 %v110
    %v214 = vunpack.c.h.b16 %v110
    %v215 = vunpack.c.l.b16 %v111
    %v216 = vunpack.c.h.b16 %v111
    %v217 = vunpack.c.l.b16 %v112
    %v218 = vunpack.c.h.b16 %v112
    %v219 = vunpack.c.l.b16 %v113
    %v220 = vunpack.c.h.b16 %v113
    %v221 = vunpack.c.l.b16 %v114
    %v222 = vunpack.c.h.b16 %v114
    %v223 = vpack.c.b16 %v193, %v191
    %v224 = vpack.c.b16 %v194, %v192
    %v225 = vpack.c.b16 %v197, %v195
    %v226 = vpack.c.b16 %v198, %v196
    %v227 = vpack.c.b16 %v201, %v199
    %v228 = vpack.c.b16 %v202, %v200
    %v229 = vpack.c.b16 %v205, %v203
    %v230 = vpack.c.b16 %v206, %v204
    %v231 = vpack.c.b16 %v209, %v207
    %v232 = vpack.c.b16 %v210, %v208
    %v233 = vpack.c.b16 %v213, %v211
    %v234 = vpack.c.b16 %v214, %v212
    %v235 = vpack.c.b16 %v217, %v215
    %v236 = vpack.c.b16 %v218, %v216
    %v237 = vpack.c.b16 %v221, %v219
    %v238 = vpack.c.b16 %v222, %v220
    %255 = vmatprep.subr.bf16.mxu0 %v224
    %256 = vmatpush1.bf16.msra.mxu0 %v223
    %257 = vmatprep.subr.bf16.mxu0 %v226
    %258 = vmatpush1.bf16.msra.mxu0 %v225
    %259 = vmatprep.subr.bf16.mxu0 %v228
    %260 = vmatpush1.bf16.msra.mxu0 %v227
    %261 = vmatprep.subr.bf16.mxu0 %v230
    %262 = vmatpush1.bf16.msra.mxu0 %v229
    %263 = vmatprep.subr.bf16.mxu0 %v232
    %264 = vmatpush1.bf16.msra.mxu0 %v231
    %265 = vmatprep.subr.bf16.mxu0 %v234
    %266 = vmatpush1.bf16.msra.mxu0 %v233
    %267 = vmatprep.subr.bf16.mxu0 %v236
    %268 = vmatpush1.bf16.msra.mxu0 %v235
    %269 = vmatprep.subr.bf16.mxu0 %v238
    %270 = vmatpush1.bf16.msra.mxu0 %v237
    %271 = vmatprep.subr.bf16.mxu0 0
    %272 = vmatpush1.bf16.msra.mxu0 0
    %273 = vmatprep.subr.bf16.mxu0 0
    %274 = vmatpush1.bf16.msra.mxu0 0
    %275 = vmatprep.subr.bf16.mxu0 0
    %276 = vmatpush1.bf16.msra.mxu0 0
    %277 = vmatprep.subr.bf16.mxu0 0
    %278 = vmatpush1.bf16.msra.mxu0 0
    %279 = vmatprep.subr.bf16.mxu0 0
    %280 = vmatpush1.bf16.msra.mxu0 0
    %281 = vmatprep.subr.bf16.mxu0 0
    %282 = vmatpush1.bf16.msra.mxu0 0
    %283 = vmatprep.subr.bf16.mxu0 0
    %284 = vmatpush1.bf16.msra.mxu0 0
    %285 = vmatprep.subr.bf16.mxu0 0
    %286 = vmatpush1.bf16.msra.mxu0 0
    %287 = vmatprep.mubr.bf16.mxu0 0
    %288 = vmatmul.mubr.bf16.gmra.mrb[0].mxu0 %v159
    %v289 = vpop.f32.mrb[0].mxu0
    %v290 = vadd.f32 %v120, %v289
    %v291 = vpop.f32.mrb[0].mxu0
    %v292 = vadd.f32 %v124, %v291
    %v293 = vpop.f32.mrb[0].mxu0
    %v294 = vadd.f32 %v120, %v293
    %v295 = vpop.f32.mrb[0].mxu0
    %v296 = vadd.f32 %v124, %v295
    %297 = vmatprep.mubr.bf16.mxu0 0
    %298 = vmatmul.mubr.bf16.gmra.mrb[0].mxu0 %v160
    %v299 = vpop.f32.mrb[0].mxu0
    %v300 = vadd.f32 %v120, %v299
    %v301 = vpop.f32.mrb[0].mxu0
    %v302 = vadd.f32 %v124, %v301
    %v303 = vpop.f32.mrb[0].mxu0
    %v304 = vadd.f32 %v120, %v303
    %v305 = vpop.f32.mrb[0].mxu0
    %v306 = vadd.f32 %v124, %v305
    %307 = vmatprep.mubr.bf16.mxu0 0
    %308 = vmatmul.mubr.bf16.gmra.mrb[0].mxu0 %v161
    %v309 = vpop.f32.mrb[0].mxu0
    %v310 = vadd.f32 %v120, %v309
    %v311 = vpop.f32.mrb[0].mxu0
    %v312 = vadd.f32 %v124, %v311
    %v313 = vpop.f32.mrb[0].mxu0
    %v314 = vadd.f32 %v120, %v313
    %v315 = vpop.f32.mrb[0].mxu0
    %v316 = vadd.f32 %v124, %v315
    %317 = vmatprep.mubr.bf16.mxu0 0
    %318 = vmatmul.mubr.bf16.gmra.mrb[0].mxu0 %v162
    %v319 = vpop.f32.mrb[0].mxu0
    %v320 = vadd.f32 %v120, %v319
    %v321 = vpop.f32.mrb[0].mxu0
    %v322 = vadd.f32 %v124, %v321
    %v323 = vpop.f32.mrb[0].mxu0
    %v324 = vadd.f32 %v120, %v323
    %v325 = vpop.f32.mrb[0].mxu0
    %v326 = vadd.f32 %v124, %v325
    %327 = vmatprep.mubr.bf16.mxu0 0
    %328 = vmatmul.mubr.bf16.gmra.mrb[0].mxu0 %v163
    %v329 = vpop.f32.mrb[0].mxu0
    %v330 = vadd.f32 %v120, %v329
    %v331 = vpop.f32.mrb[0].mxu0
    %v332 = vadd.f32 %v124, %v331
    %v333 = vpop.f32.mrb[0].mxu0
    %v334 = vadd.f32 %v120, %v333
    %v335 = vpop.f32.mrb[0].mxu0
    %v336 = vadd.f32 %v124, %v335
    %337 = vmatprep.mubr.bf16.mxu0 0
    %338 = vmatmul.mubr.bf16.gmra.mrb[0].mxu0 %v164
    %v339 = vpop.f32.mrb[0].mxu0
    %v340 = vadd.f32 %v120, %v339
    %v341 = vpop.f32.mrb[0].mxu0
    %v342 = vadd.f32 %v124, %v341
    %v343 = vpop.f32.mrb[0].mxu0
    %v344 = vadd.f32 %v120, %v343
    %v345 = vpop.f32.mrb[0].mxu0
    %v346 = vadd.f32 %v124, %v345
    %347 = vmatprep.mubr.bf16.mxu0 0
    %348 = vmatmul.mubr.bf16.gmra.mrb[0].mxu0 %v165
    %v349 = vpop.f32.mrb[0].mxu0
    %v350 = vadd.f32 %v120, %v349
    %v351 = vpop.f32.mrb[0].mxu0
    %v352 = vadd.f32 %v124, %v351
    %v353 = vpop.f32.mrb[0].mxu0
    %v354 = vadd.f32 %v120, %v353
    %v355 = vpop.f32.mrb[0].mxu0
    %v356 = vadd.f32 %v124, %v355
    %357 = vmatprep.mubr.bf16.mxu0 0
    %358 = vmatmul.mubr.bf16.gmra.mrb[0].mxu0 %v166
    %v359 = vpop.f32.mrb[0].mxu0
    %v360 = vadd.f32 %v120, %v359
    %v361 = vpop.f32.mrb[0].mxu0
    %v362 = vadd.f32 %v124, %v361
    %v363 = vpop.f32.mrb[0].mxu0
    %v364 = vadd.f32 %v120, %v363
    %v365 = vpop.f32.mrb[0].mxu0
    %v366 = vadd.f32 %v124, %v365
    %367 = vdwg.mxu0
    %368 = vst [vmem:[#allocation2] sm:$0xff] %v290
    %369 = vst [vmem:[#allocation2 + $0x8] sm:$0xff] %v292
    %370 = vst [vmem:[#allocation2 + $0x10] sm:$0xff] %v294
    %371 = vst [vmem:[#allocation2 + $0x18] sm:$0xff] %v296
    %372 = vst [vmem:[#allocation2 + $0x20] sm:$0xff] %v300
    %373 = vst [vmem:[#allocation2 + $0x28] sm:$0xff] %v302
    %374 = vst [vmem:[#allocation2 + $0x30] sm:$0xff] %v304
    %375 = vst [vmem:[#allocation2 + $0x38] sm:$0xff] %v306
    %376 = vst [vmem:[#allocation2 + $0x40] sm:$0xff] %v310
    %377 = vst [vmem:[#allocation2 + $0x48] sm:$0xff] %v312
    %378 = vst [vmem:[#allocation2 + $0x50] sm:$0xff] %v314
    %379 = vst [vmem:[#allocation2 + $0x58] sm:$0xff] %v316
    %380 = vst [vmem:[#allocation2 + $0x60] sm:$0xff] %v320
    %381 = vst [vmem:[#allocation2 + $0x68] sm:$0xff] %v322
    %382 = vst [vmem:[#allocation2 + $0x70] sm:$0xff] %v324
    %383 = vst [vmem:[#allocation2 + $0x78] sm:$0xff] %v326
    %384 = vst [vmem:[#allocation2 + $0x80] sm:$0xff] %v330
    %385 = vst [vmem:[#allocation2 + $0x88] sm:$0xff] %v332
    %386 = vst [vmem:[#allocation2 + $0x90] sm:$0xff] %v334
    %387 = vst [vmem:[#allocation2 + $0x98] sm:$0xff] %v336
    %388 = vst [vmem:[#allocation2 + $0xa0] sm:$0xff] %v340
    %389 = vst [vmem:[#allocation2 + $0xa8] sm:$0xff] %v342
    %390 = vst [vmem:[#allocation2 + $0xb0] sm:$0xff] %v344
    %391 = vst [vmem:[#allocation2 + $0xb8] sm:$0xff] %v346
    %392 = vst [vmem:[#allocation2 + $0xc0] sm:$0xff] %v350
    %393 = vst [vmem:[#allocation2 + $0xc8] sm:$0xff] %v352
    %394 = vst [vmem:[#allocation2 + $0xd0] sm:$0xff] %v354
    %395 = vst [vmem:[#allocation2 + $0xd8] sm:$0xff] %v356
    %396 = vst [vmem:[#allocation2 + $0xe0] sm:$0xff] %v360
    %397 = vst [vmem:[#allocation2 + $0xe8] sm:$0xff] %v362
    %398 = vst [vmem:[#allocation2 + $0xf0] sm:$0xff] %v364
    %399 = vst [vmem:[#allocation2 + $0xf8] sm:$0xff] %v366
    %v400 = vld [vmem:[#allocation2 + $0x8] sm:$0xff]
    %v401 = vld [vmem:[#allocation2 + $0x18] sm:$0xff]
    %v402 = vld [vmem:[#allocation2 + $0x28] sm:$0xff]
    %v403 = vld [vmem:[#allocation2 + $0x38] sm:$0xff]
    %v404 = vld [vmem:[#allocation2 + $0x48] sm:$0xff]
    %v405 = vld [vmem:[#allocation2 + $0x58] sm:$0xff]
    %v406 = vld [vmem:[#allocation2 + $0x68] sm:$0xff]
    %v407 = vld [vmem:[#allocation2 + $0x78] sm:$0xff]
    %v408 = vld [vmem:[#allocation2 + $0x88] sm:$0xff]
    %v409 = vld [vmem:[#allocation2 + $0x98] sm:$0xff]
    %v410 = vld [vmem:[#allocation2 + $0xa8] sm:$0xff]
    %v411 = vld [vmem:[#allocation2 + $0xb8] sm:$0xff]
    %v412 = vld [vmem:[#allocation2 + $0xc8] sm:$0xff]
    %v413 = vld [vmem:[#allocation2 + $0xd8] sm:$0xff]
    %v414 = vld [vmem:[#allocation2 + $0xe8] sm:$0xff]
    %v415 = vld [vmem:[#allocation2 + $0xf8] sm:$0xff]
    %v416 = vlaneseq
    %v417 = vshrl.u32 %v416, 7
    %v418 = vadd.s32 %v417, 8
    %v419 = vadd.s32 %v417, 16
    %v420 = vadd.s32 %v417, 24
    %v421 = vadd.s32 %v417, 32
    %v422 = vadd.s32 %v417, 40
    %v423 = vadd.s32 %v417, 48
    %v424 = vadd.s32 %v417, 56
    %v425 = vadd.s32 %v417, 64
    %v426 = vadd.s32 %v417, 72
    %v427 = vadd.s32 %v417, 80
    %v428 = vadd.s32 %v417, 88
    %v429 = vadd.s32 %v417, 96
    %v430 = vadd.s32 %v417, 104
    %v431 = vadd.s32 %v417, 112
    %v432 = vadd.s32 %v417, 120
    %vm433 = vcmp.lt.s32.totalorder %v417, 0
    %v434 = vsub.s32 0, %v417
    %v435 = vsel %vm433, %v434, %v417
    %v436 = vshrl.u32 %v435, 6
    %v437 = vand.u32 %v435, 63
    %v438 = vsub.s32 0, %v437
    %v439 = vsel %vm433, %v438, %v437
    %vm440 = vcmp.lt.s32.totalorder %v418, 0
    %v441 = vsub.s32 0, %v418
    %v442 = vsel %vm440, %v441, %v418
    %v443 = vshrl.u32 %v442, 6
    %v444 = vand.u32 %v442, 63
    %v445 = vsub.s32 0, %v444
    %v446 = vsel %vm440, %v445, %v444
    %vm447 = vcmp.lt.s32.totalorder %v419, 0
    %v448 = vsub.s32 0, %v419
    %v449 = vsel %vm447, %v448, %v419
    %v450 = vshrl.u32 %v449, 6
    %v451 = vand.u32 %v449, 63
    %v452 = vsub.s32 0, %v451
    %v453 = vsel %vm447, %v452, %v451
    %vm454 = vcmp.lt.s32.totalorder %v420, 0
    %v455 = vsub.s32 0, %v420
    %v456 = vsel %vm454, %v455, %v420
    %v457 = vshrl.u32 %v456, 6
    %v458 = vand.u32 %v456, 63
    %v459 = vsub.s32 0, %v458
    %v460 = vsel %vm454, %v459, %v458
    %vm461 = vcmp.lt.s32.totalorder %v421, 0
    %v462 = vsub.s32 0, %v421
    %v463 = vsel %vm461, %v462, %v421
    %v464 = vshrl.u32 %v463, 6
    %v465 = vand.u32 %v463, 63
    %v466 = vsub.s32 0, %v465
    %v467 = vsel %vm461, %v466, %v465
    %vm468 = vcmp.lt.s32.totalorder %v422, 0
    %v469 = vsub.s32 0, %v422
    %v470 = vsel %vm468, %v469, %v422
    %v471 = vshrl.u32 %v470, 6
    %v472 = vand.u32 %v470, 63
    %v473 = vsub.s32 0, %v472
    %v474 = vsel %vm468, %v473, %v472
    %vm475 = vcmp.lt.s32.totalorder %v423, 0
    %v476 = vsub.s32 0, %v423
    %v477 = vsel %vm475, %v476, %v423
    %v478 = vshrl.u32 %v477, 6
    %v479 = vand.u32 %v477, 63
    %v480 = vsub.s32 0, %v479
    %v481 = vsel %vm475, %v480, %v479
    %vm482 = vcmp.lt.s32.totalorder %v424, 0
    %v483 = vsub.s32 0, %v424
    %v484 = vsel %vm482, %v483, %v424
    %v485 = vshrl.u32 %v484, 6
    %v486 = vand.u32 %v484, 63
    %v487 = vsub.s32 0, %v486
    %v488 = vsel %vm482, %v487, %v486
    %vm489 = vcmp.lt.s32.totalorder %v425, 0
    %v490 = vsub.s32 0, %v425
    %v491 = vsel %vm489, %v490, %v425
    %v492 = vshrl.u32 %v491, 6
    %v493 = vand.u32 %v491, 63
    %v494 = vsub.s32 0, %v493
    %v495 = vsel %vm489, %v494, %v493
    %vm496 = vcmp.lt.s32.totalorder %v426, 0
    %v497 = vsub.s32 0, %v426
    %v498 = vsel %vm496, %v497, %v426
    %v499 = vshrl.u32 %v498, 6
    %v500 = vand.u32 %v498, 63
    %v501 = vsub.s32 0, %v500
    %v502 = vsel %vm496, %v501, %v500
    %vm503 = vcmp.lt.s32.totalorder %v427, 0
    %v504 = vsub.s32 0, %v427
    %v505 = vsel %vm503, %v504, %v427
    %v506 = vshrl.u32 %v505, 6
    %v507 = vand.u32 %v505, 63
    %v508 = vsub.s32 0, %v507
    %v509 = vsel %vm503, %v508, %v507
    %vm510 = vcmp.lt.s32.totalorder %v428, 0
    %v511 = vsub.s32 0, %v428
    %v512 = vsel %vm510, %v511, %v428
    %v513 = vshrl.u32 %v512, 6
    %v514 = vand.u32 %v512, 63
    %v515 = vsub.s32 0, %v514
    %v516 = vsel %vm510, %v515, %v514
    %vm517 = vcmp.lt.s32.totalorder %v429, 0
    %v518 = vsub.s32 0, %v429
    %v519 = vsel %vm517, %v518, %v429
    %v520 = vshrl.u32 %v519, 6
    %v521 = vand.u32 %v519, 63
    %v522 = vsub.s32 0, %v521
    %v523 = vsel %vm517, %v522, %v521
    %vm524 = vcmp.lt.s32.totalorder %v430, 0
    %v525 = vsub.s32 0, %v430
    %v526 = vsel %vm524, %v525, %v430
    %v527 = vshrl.u32 %v526, 6
    %v528 = vand.u32 %v526, 63
    %v529 = vsub.s32 0, %v528
    %v530 = vsel %vm524, %v529, %v528
    %vm531 = vcmp.lt.s32.totalorder %v431, 0
    %v532 = vsub.s32 0, %v431
    %v533 = vsel %vm531, %v532, %v431
    %v534 = vshrl.u32 %v533, 6
    %v535 = vand.u32 %v533, 63
    %v536 = vsub.s32 0, %v535
    %v537 = vsel %vm531, %v536, %v535
    %vm538 = vcmp.lt.s32.totalorder %v432, 0
    %v539 = vsub.s32 0, %v432
    %v540 = vsel %vm538, %v539, %v432
    %v541 = vshrl.u32 %v540, 6
    %v542 = vand.u32 %v540, 63
    %v543 = vsub.s32 0, %v542
    %v544 = vsel %vm538, %v543, %v542
    %vm545 = vcmp.ne.s32.totalorder %v439, 0
    %vm546 = vcmp.ne.s32.totalorder %v446, 0
    %vm547 = vcmp.ne.s32.totalorder %v453, 0
    %vm548 = vcmp.ne.s32.totalorder %v460, 0
    %vm549 = vcmp.ne.s32.totalorder %v467, 0
    %vm550 = vcmp.ne.s32.totalorder %v474, 0
    %vm551 = vcmp.ne.s32.totalorder %v481, 0
    %vm552 = vcmp.ne.s32.totalorder %v488, 0
    %vm553 = vcmp.ne.s32.totalorder %v495, 0
    %vm554 = vcmp.ne.s32.totalorder %v502, 0
    %vm555 = vcmp.ne.s32.totalorder %v509, 0
    %vm556 = vcmp.ne.s32.totalorder %v516, 0
    %vm557 = vcmp.ne.s32.totalorder %v523, 0
    %vm558 = vcmp.ne.s32.totalorder %v530, 0
    %vm559 = vcmp.ne.s32.totalorder %v537, 0
    %vm560 = vcmp.ne.s32.totalorder %v544, 0
    %vm561 = vcmp.lt.s32.totalorder %v439, 0
    %vm562 = vcmp.lt.s32.totalorder %v446, 0
    %vm563 = vcmp.lt.s32.totalorder %v453, 0
    %vm564 = vcmp.lt.s32.totalorder %v460, 0
    %vm565 = vcmp.lt.s32.totalorder %v467, 0
    %vm566 = vcmp.lt.s32.totalorder %v474, 0
    %vm567 = vcmp.lt.s32.totalorder %v481, 0
    %vm568 = vcmp.lt.s32.totalorder %v488, 0
    %vm569 = vcmp.lt.s32.totalorder %v495, 0
    %vm570 = vcmp.lt.s32.totalorder %v502, 0
    %vm571 = vcmp.lt.s32.totalorder %v509, 0
    %vm572 = vcmp.lt.s32.totalorder %v516, 0
    %vm573 = vcmp.lt.s32.totalorder %v523, 0
    %vm574 = vcmp.lt.s32.totalorder %v530, 0
    %vm575 = vcmp.lt.s32.totalorder %v537, 0
    %vm576 = vcmp.lt.s32.totalorder %v544, 0
    %vm577 = vmand %vm561, %vm545
    %vm578 = vmand %vm562, %vm546
    %vm579 = vmand %vm563, %vm547
    %vm580 = vmand %vm564, %vm548
    %vm581 = vmand %vm565, %vm549
    %vm582 = vmand %vm566, %vm550
    %vm583 = vmand %vm567, %vm551
    %vm584 = vmand %vm568, %vm552
    %vm585 = vmand %vm569, %vm553
    %vm586 = vmand %vm570, %vm554
    %vm587 = vmand %vm571, %vm555
    %vm588 = vmand %vm572, %vm556
    %vm589 = vmand %vm573, %vm557
    %vm590 = vmand %vm574, %vm558
    %vm591 = vmand %vm575, %vm559
    %vm592 = vmand %vm576, %vm560
    %v593 = vadd.s32 %v439, 64
    %v594 = vadd.s32 %v446, 64
    %v595 = vadd.s32 %v453, 64
    %v596 = vadd.s32 %v460, 64
    %v597 = vadd.s32 %v467, 64
    %v598 = vadd.s32 %v474, 64
    %v599 = vadd.s32 %v481, 64
    %v600 = vadd.s32 %v488, 64
    %v601 = vadd.s32 %v495, 64
    %v602 = vadd.s32 %v502, 64
    %v603 = vadd.s32 %v509, 64
    %v604 = vadd.s32 %v516, 64
    %v605 = vadd.s32 %v523, 64
    %v606 = vadd.s32 %v530, 64
    %v607 = vadd.s32 %v537, 64
    %v608 = vadd.s32 %v544, 64
    %v609 = vsel %vm577, %v593, %v439
    %v610 = vsel %vm578, %v594, %v446
    %v611 = vsel %vm579, %v595, %v453
    %v612 = vsel %vm580, %v596, %v460
    %v613 = vsel %vm581, %v597, %v467
    %v614 = vsel %vm582, %v598, %v474
    %v615 = vsel %vm583, %v599, %v481
    %v616 = vsel %vm584, %v600, %v488
    %v617 = vsel %vm585, %v601, %v495
    %v618 = vsel %vm586, %v602, %v502
    %v619 = vsel %vm587, %v603, %v509
    %v620 = vsel %vm588, %v604, %v516
    %v621 = vsel %vm589, %v605, %v523
    %v622 = vsel %vm590, %v606, %v530
    %v623 = vsel %vm591, %v607, %v537
    %v624 = vsel %vm592, %v608, %v544
    %vm625 = vcmp.lt.s32.totalorder %v609, 0
    %v626 = vsub.s32 0, %v609
    %v627 = vsel %vm625, %v626, %v609
    %v628 = vshrl.u32 %v627, 3
    %v629 = vand.u32 %v627, 7
    %v630 = vsub.s32 0, %v629
    %v631 = vsel %vm625, %v630, %v629
    %vm632 = vcmp.lt.s32.totalorder %v610, 0
    %v633 = vsub.s32 0, %v610
    %v634 = vsel %vm632, %v633, %v610
    %v635 = vshrl.u32 %v634, 3
    %v636 = vand.u32 %v634, 7
    %v637 = vsub.s32 0, %v636
    %v638 = vsel %vm632, %v637, %v636
    %vm639 = vcmp.lt.s32.totalorder %v611, 0
    %v640 = vsub.s32 0, %v611
    %v641 = vsel %vm639, %v640, %v611
    %v642 = vshrl.u32 %v641, 3
    %v643 = vand.u32 %v641, 7
    %v644 = vsub.s32 0, %v643
    %v645 = vsel %vm639, %v644, %v643
    %vm646 = vcmp.lt.s32.totalorder %v612, 0
    %v647 = vsub.s32 0, %v612
    %v648 = vsel %vm646, %v647, %v612
    %v649 = vshrl.u32 %v648, 3
    %v650 = vand.u32 %v648, 7
    %v651 = vsub.s32 0, %v650
    %v652 = vsel %vm646, %v651, %v650
    %vm653 = vcmp.lt.s32.totalorder %v613, 0
    %v654 = vsub.s32 0, %v613
    %v655 = vsel %vm653, %v654, %v613
    %v656 = vshrl.u32 %v655, 3
    %v657 = vand.u32 %v655, 7
    %v658 = vsub.s32 0, %v657
    %v659 = vsel %vm653, %v658, %v657
    %vm660 = vcmp.lt.s32.totalorder %v614, 0
    %v661 = vsub.s32 0, %v614
    %v662 = vsel %vm660, %v661, %v614
    %v663 = vshrl.u32 %v662, 3
    %v664 = vand.u32 %v662, 7
    %v665 = vsub.s32 0, %v664
    %v666 = vsel %vm660, %v665, %v664
    %vm667 = vcmp.lt.s32.totalorder %v615, 0
    %v668 = vsub.s32 0, %v615
    %v669 = vsel %vm667, %v668, %v615
    %v670 = vshrl.u32 %v669, 3
    %v671 = vand.u32 %v669, 7
    %v672 = vsub.s32 0, %v671
    %v673 = vsel %vm667, %v672, %v671
    %vm674 = vcmp.lt.s32.totalorder %v616, 0
    %v675 = vsub.s32 0, %v616
    %v676 = vsel %vm674, %v675, %v616
    %v677 = vshrl.u32 %v676, 3
    %v678 = vand.u32 %v676, 7
    %v679 = vsub.s32 0, %v678
    %v680 = vsel %vm674, %v679, %v678
    %vm681 = vcmp.lt.s32.totalorder %v617, 0
    %v682 = vsub.s32 0, %v617
    %v683 = vsel %vm681, %v682, %v617
    %v684 = vshrl.u32 %v683, 3
    %v685 = vand.u32 %v683, 7
    %v686 = vsub.s32 0, %v685
    %v687 = vsel %vm681, %v686, %v685
    %vm688 = vcmp.lt.s32.totalorder %v618, 0
    %v689 = vsub.s32 0, %v618
    %v690 = vsel %vm688, %v689, %v618
    %v691 = vshrl.u32 %v690, 3
    %v692 = vand.u32 %v690, 7
    %v693 = vsub.s32 0, %v692
    %v694 = vsel %vm688, %v693, %v692
    %vm695 = vcmp.lt.s32.totalorder %v619, 0
    %v696 = vsub.s32 0, %v619
    %v697 = vsel %vm695, %v696, %v619
    %v698 = vshrl.u32 %v697, 3
    %v699 = vand.u32 %v697, 7
    %v700 = vsub.s32 0, %v699
    %v701 = vsel %vm695, %v700, %v699
    %vm702 = vcmp.lt.s32.totalorder %v620, 0
    %v703 = vsub.s32 0, %v620
    %v704 = vsel %vm702, %v703, %v620
    %v705 = vshrl.u32 %v704, 3
    %v706 = vand.u32 %v704, 7
    %v707 = vsub.s32 0, %v706
    %v708 = vsel %vm702, %v707, %v706
    %vm709 = vcmp.lt.s32.totalorder %v621, 0
    %v710 = vsub.s32 0, %v621
    %v711 = vsel %vm709, %v710, %v621
    %v712 = vshrl.u32 %v711, 3
    %v713 = vand.u32 %v711, 7
    %v714 = vsub.s32 0, %v713
    %v715 = vsel %vm709, %v714, %v713
    %vm716 = vcmp.lt.s32.totalorder %v622, 0
    %v717 = vsub.s32 0, %v622
    %v718 = vsel %vm716, %v717, %v622
    %v719 = vshrl.u32 %v718, 3
    %v720 = vand.u32 %v718, 7
    %v721 = vsub.s32 0, %v720
    %v722 = vsel %vm716, %v721, %v720
    %vm723 = vcmp.lt.s32.totalorder %v623, 0
    %v724 = vsub.s32 0, %v623
    %v725 = vsel %vm723, %v724, %v623
    %v726 = vshrl.u32 %v725, 3
    %v727 = vand.u32 %v725, 7
    %v728 = vsub.s32 0, %v727
    %v729 = vsel %vm723, %v728, %v727
    %vm730 = vcmp.lt.s32.totalorder %v624, 0
    %v731 = vsub.s32 0, %v624
    %v732 = vsel %vm730, %v731, %v624
    %v733 = vshrl.u32 %v732, 3
    %v734 = vand.u32 %v732, 7
    %v735 = vsub.s32 0, %v734
    %v736 = vsel %vm730, %v735, %v734
    %vm737 = vcmp.ne.s32.totalorder %v631, 0
    %vm738 = vcmp.ne.s32.totalorder %v638, 0
    %vm739 = vcmp.ne.s32.totalorder %v645, 0
    %vm740 = vcmp.ne.s32.totalorder %v652, 0
    %vm741 = vcmp.ne.s32.totalorder %v659, 0
    %vm742 = vcmp.ne.s32.totalorder %v666, 0
    %vm743 = vcmp.ne.s32.totalorder %v673, 0
    %vm744 = vcmp.ne.s32.totalorder %v680, 0
    %vm745 = vcmp.ne.s32.totalorder %v687, 0
    %vm746 = vcmp.ne.s32.totalorder %v694, 0
    %vm747 = vcmp.ne.s32.totalorder %v701, 0
    %vm748 = vcmp.ne.s32.totalorder %v708, 0
    %vm749 = vcmp.ne.s32.totalorder %v715, 0
    %vm750 = vcmp.ne.s32.totalorder %v722, 0
    %vm751 = vcmp.ne.s32.totalorder %v729, 0
    %vm752 = vcmp.ne.s32.totalorder %v736, 0
    %vm753 = vcmp.lt.s32.totalorder %v631, 0
    %vm754 = vcmp.lt.s32.totalorder %v638, 0
    %vm755 = vcmp.lt.s32.totalorder %v645, 0
    %vm756 = vcmp.lt.s32.totalorder %v652, 0
    %vm757 = vcmp.lt.s32.totalorder %v659, 0
    %vm758 = vcmp.lt.s32.totalorder %v666, 0
    %vm759 = vcmp.lt.s32.totalorder %v673, 0
    %vm760 = vcmp.lt.s32.totalorder %v680, 0
    %vm761 = vcmp.lt.s32.totalorder %v687, 0
    %vm762 = vcmp.lt.s32.totalorder %v694, 0
    %vm763 = vcmp.lt.s32.totalorder %v701, 0
    %vm764 = vcmp.lt.s32.totalorder %v708, 0
    %vm765 = vcmp.lt.s32.totalorder %v715, 0
    %vm766 = vcmp.lt.s32.totalorder %v722, 0
    %vm767 = vcmp.lt.s32.totalorder %v729, 0
    %vm768 = vcmp.lt.s32.totalorder %v736, 0
    %vm769 = vmand %vm753, %vm737
    %vm770 = vmand %vm754, %vm738
    %vm771 = vmand %vm755, %vm739
    %vm772 = vmand %vm756, %vm740
    %vm773 = vmand %vm757, %vm741
    %vm774 = vmand %vm758, %vm742
    %vm775 = vmand %vm759, %vm743
    %vm776 = vmand %vm760, %vm744
    %vm777 = vmand %vm761, %vm745
    %vm778 = vmand %vm762, %vm746
    %vm779 = vmand %vm763, %vm747
    %vm780 = vmand %vm764, %vm748
    %vm781 = vmand %vm765, %vm749
    %vm782 = vmand %vm766, %vm750
    %vm783 = vmand %vm767, %vm751
    %vm784 = vmand %vm768, %vm752
    %v785 = vadd.s32 %v631, 8
    %v786 = vadd.s32 %v638, 8
    %v787 = vadd.s32 %v645, 8
    %v788 = vadd.s32 %v652, 8
    %v789 = vadd.s32 %v659, 8
    %v790 = vadd.s32 %v666, 8
    %v791 = vadd.s32 %v673, 8
    %v792 = vadd.s32 %v680, 8
    %v793 = vadd.s32 %v687, 8
    %v794 = vadd.s32 %v694, 8
    %v795 = vadd.s32 %v701, 8
    %v796 = vadd.s32 %v708, 8
    %v797 = vadd.s32 %v715, 8
    %v798 = vadd.s32 %v722, 8
    %v799 = vadd.s32 %v729, 8
    %v800 = vadd.s32 %v736, 8
    %v801 = vsel %vm769, %v785, %v631
    %v802 = vsel %vm770, %v786, %v638
    %v803 = vsel %vm771, %v787, %v645
    %v804 = vsel %vm772, %v788, %v652
    %v805 = vsel %vm773, %v789, %v659
    %v806 = vsel %vm774, %v790, %v666
    %v807 = vsel %vm775, %v791, %v673
    %v808 = vsel %vm776, %v792, %v680
    %v809 = vsel %vm777, %v793, %v687
    %v810 = vsel %vm778, %v794, %v694
    %v811 = vsel %vm779, %v795, %v701
    %v812 = vsel %vm780, %v796, %v708
    %v813 = vsel %vm781, %v797, %v715
    %v814 = vsel %vm782, %v798, %v722
    %v815 = vsel %vm783, %v799, %v729
    %v816 = vsel %vm784, %v800, %v736
    %vm817 = vcmp.ge.s32.totalorder %v609, 8
    %vm818 = vcmp.ge.s32.totalorder %v610, 8
    %vm819 = vcmp.ge.s32.totalorder %v611, 8
    %vm820 = vcmp.ge.s32.totalorder %v612, 8
    %vm821 = vcmp.ge.s32.totalorder %v613, 8
    %vm822 = vcmp.ge.s32.totalorder %v614, 8
    %vm823 = vcmp.ge.s32.totalorder %v615, 8
    %vm824 = vcmp.ge.s32.totalorder %v616, 8
    %vm825 = vcmp.ge.s32.totalorder %v617, 8
    %vm826 = vcmp.ge.s32.totalorder %v618, 8
    %vm827 = vcmp.ge.s32.totalorder %v619, 8
    %vm828 = vcmp.ge.s32.totalorder %v620, 8
    %vm829 = vcmp.ge.s32.totalorder %v621, 8
    %vm830 = vcmp.ge.s32.totalorder %v622, 8
    %vm831 = vcmp.ge.s32.totalorder %v623, 8
    %vm832 = vcmp.ge.s32.totalorder %v624, 8
    %vm833 = vcmp.lt.s32.totalorder %v609, 56
    %vm834 = vcmp.lt.s32.totalorder %v610, 56
    %vm835 = vcmp.lt.s32.totalorder %v611, 56
    %vm836 = vcmp.lt.s32.totalorder %v612, 56
    %vm837 = vcmp.lt.s32.totalorder %v613, 56
    %vm838 = vcmp.lt.s32.totalorder %v614, 56
    %vm839 = vcmp.lt.s32.totalorder %v615, 56
    %vm840 = vcmp.lt.s32.totalorder %v616, 56
    %vm841 = vcmp.lt.s32.totalorder %v617, 56
    %vm842 = vcmp.lt.s32.totalorder %v618, 56
    %vm843 = vcmp.lt.s32.totalorder %v619, 56
    %vm844 = vcmp.lt.s32.totalorder %v620, 56
    %vm845 = vcmp.lt.s32.totalorder %v621, 56
    %vm846 = vcmp.lt.s32.totalorder %v622, 56
    %vm847 = vcmp.lt.s32.totalorder %v623, 56
    %vm848 = vcmp.lt.s32.totalorder %v624, 56
    %vm849 = vcmp.ge.s32.totalorder %v801, 1
    %vm850 = vcmp.ge.s32.totalorder %v802, 1
    %vm851 = vcmp.ge.s32.totalorder %v803, 1
    %vm852 = vcmp.ge.s32.totalorder %v804, 1
    %vm853 = vcmp.ge.s32.totalorder %v805, 1
    %vm854 = vcmp.ge.s32.totalorder %v806, 1
    %vm855 = vcmp.ge.s32.totalorder %v807, 1
    %vm856 = vcmp.ge.s32.totalorder %v808, 1
    %vm857 = vcmp.ge.s32.totalorder %v809, 1
    %vm858 = vcmp.ge.s32.totalorder %v810, 1
    %vm859 = vcmp.ge.s32.totalorder %v811, 1
    %vm860 = vcmp.ge.s32.totalorder %v812, 1
    %vm861 = vcmp.ge.s32.totalorder %v813, 1
    %vm862 = vcmp.ge.s32.totalorder %v814, 1
    %vm863 = vcmp.ge.s32.totalorder %v815, 1
    %vm864 = vcmp.ge.s32.totalorder %v816, 1
    %vm865 = vcmp.le.s32.totalorder %v801, 6
    %vm866 = vcmp.le.s32.totalorder %v802, 6
    %vm867 = vcmp.le.s32.totalorder %v803, 6
    %vm868 = vcmp.le.s32.totalorder %v804, 6
    %vm869 = vcmp.le.s32.totalorder %v805, 6
    %vm870 = vcmp.le.s32.totalorder %v806, 6
    %vm871 = vcmp.le.s32.totalorder %v807, 6
    %vm872 = vcmp.le.s32.totalorder %v808, 6
    %vm873 = vcmp.le.s32.totalorder %v809, 6
    %vm874 = vcmp.le.s32.totalorder %v810, 6
    %vm875 = vcmp.le.s32.totalorder %v811, 6
    %vm876 = vcmp.le.s32.totalorder %v812, 6
    %vm877 = vcmp.le.s32.totalorder %v813, 6
    %vm878 = vcmp.le.s32.totalorder %v814, 6
    %vm879 = vcmp.le.s32.totalorder %v815, 6
    %vm880 = vcmp.le.s32.totalorder %v816, 6
    %v881 = vld [vmem:[#allocation9] sm:$0xff]
    %v882 = vld [vmem:[#allocation9 + $0x8] sm:$0x1]
    %v883 = vrot.slane %v400, 7
    %v884 = vrot.slane %v401, 7
    %v885 = vrot.slane %v402, 7
    %v886 = vrot.slane %v403, 7
    %v887 = vrot.slane %v404, 7
    %v888 = vrot.slane %v405, 7
    %v889 = vrot.slane %v406, 7
    %v890 = vrot.slane %v407, 7
    %v891 = vrot.slane %v408, 7
    %v892 = vrot.slane %v409, 7
    %v893 = vrot.slane %v410, 7
    %v894 = vrot.slane %v411, 7
    %v895 = vrot.slane %v412, 7
    %v896 = vrot.slane %v413, 7
    %v897 = vrot.slane %v414, 7
    %v898 = vrot.slane %v415, 7
    %vm899 = vcmp.lt.s32.totalorder %v417, 1
    %v900 = vsel %vm899, %v897, %v898
    %v901 = vsel %vm899, %v896, %v897
    %v902 = vsel %vm899, %v895, %v896
    %v903 = vsel %vm899, %v894, %v895
    %v904 = vsel %vm899, %v893, %v894
    %v905 = vsel %vm899, %v892, %v893
    %v906 = vsel %vm899, %v891, %v892
    %v907 = vsel %vm899, %v890, %v891
    %v908 = vsel %vm899, %v889, %v890
    %v909 = vsel %vm899, %v888, %v889
    %v910 = vsel %vm899, %v887, %v888
    %v911 = vsel %vm899, %v886, %v887
    %v912 = vsel %vm899, %v885, %v886
    %v913 = vsel %vm899, %v884, %v885
    %v914 = vsel %vm899, %v883, %v884
    %v915 = vsel %vm899, %v898, %v883
    %v916 = vlaneseq
    %v917 = vshrl.u32 %v916, 7
    %v918 = vsub.s32 0, %v917
    %v919 = vrot.slane %v881, %v918
    %v920 = vmul.f32 %v900, %v919
    %v921 = vmul.f32 %v915, %v919
    %v922 = vmul.f32 %v914, %v919
    %v923 = vmul.f32 %v913, %v919
    %v924 = vmul.f32 %v912, %v919
    %v925 = vmul.f32 %v911, %v919
    %v926 = vmul.f32 %v910, %v919
    %v927 = vmul.f32 %v909, %v919
    %v928 = vmul.f32 %v908, %v919
    %v929 = vmul.f32 %v907, %v919
    %v930 = vmul.f32 %v906, %v919
    %v931 = vmul.f32 %v905, %v919
    %v932 = vmul.f32 %v904, %v919
    %v933 = vmul.f32 %v903, %v919
    %v934 = vmul.f32 %v902, %v919
    %v935 = vmul.f32 %v901, %v919
    %vm936 = vmand %vm817, %vm849
    %vm937 = vmand %vm818, %vm850
    %vm938 = vmand %vm819, %vm851
    %vm939 = vmand %vm820, %vm852
    %vm940 = vmand %vm821, %vm853
    %vm941 = vmand %vm822, %vm854
    %vm942 = vmand %vm823, %vm855
    %vm943 = vmand %vm824, %vm856
    %vm944 = vmand %vm825, %vm857
    %vm945 = vmand %vm826, %vm858
    %vm946 = vmand %vm827, %vm859
    %vm947 = vmand %vm828, %vm860
    %vm948 = vmand %vm829, %vm861
    %vm949 = vmand %vm830, %vm862
    %vm950 = vmand %vm831, %vm863
    %vm951 = vmand %vm832, %vm864
    %v952 = vsel %vm936, 1, 0
    %v953 = vsel %vm937, 1, 0
    %v954 = vsel %vm938, 1, 0
    %v955 = vsel %vm939, 1, 0
    %v956 = vsel %vm940, 1, 0
    %v957 = vsel %vm941, 1, 0
    %v958 = vsel %vm942, 1, 0
    %v959 = vsel %vm943, 1, 0
    %v960 = vsel %vm944, 1, 0
    %v961 = vsel %vm945, 1, 0
    %v962 = vsel %vm946, 1, 0
    %v963 = vsel %vm947, 1, 0
    %v964 = vsel %vm948, 1, 0
    %v965 = vsel %vm949, 1, 0
    %v966 = vsel %vm950, 1, 0
    %v967 = vsel %vm951, 1, 0
    %vm968 = vcmp.eq.s32.totalorder %v952, 1
    %vm969 = vcmp.eq.s32.totalorder %v953, 1
    %vm970 = vcmp.eq.s32.totalorder %v954, 1
    %vm971 = vcmp.eq.s32.totalorder %v955, 1
    %vm972 = vcmp.eq.s32.totalorder %v956, 1
    %vm973 = vcmp.eq.s32.totalorder %v957, 1
    %vm974 = vcmp.eq.s32.totalorder %v958, 1
    %vm975 = vcmp.eq.s32.totalorder %v959, 1
    %vm976 = vcmp.eq.s32.totalorder %v960, 1
    %vm977 = vcmp.eq.s32.totalorder %v961, 1
    %vm978 = vcmp.eq.s32.totalorder %v962, 1
    %vm979 = vcmp.eq.s32.totalorder %v963, 1
    %vm980 = vcmp.eq.s32.totalorder %v964, 1
    %vm981 = vcmp.eq.s32.totalorder %v965, 1
    %vm982 = vcmp.eq.s32.totalorder %v966, 1
    %vm983 = vcmp.eq.s32.totalorder %v967, 1
    %v984 = vsel %vm968, %v920, 0.0
    %v985 = vsel %vm969, %v921, 0.0
    %v986 = vsel %vm970, %v922, 0.0
    %v987 = vsel %vm971, %v923, 0.0
    %v988 = vsel %vm972, %v924, 0.0
    %v989 = vsel %vm973, %v925, 0.0
    %v990 = vsel %vm974, %v926, 0.0
    %v991 = vsel %vm975, %v927, 0.0
    %v992 = vsel %vm976, %v928, 0.0
    %v993 = vsel %vm977, %v929, 0.0
    %v994 = vsel %vm978, %v930, 0.0
    %v995 = vsel %vm979, %v931, 0.0
    %v996 = vsel %vm980, %v932, 0.0
    %v997 = vsel %vm981, %v933, 0.0
    %v998 = vsel %vm982, %v934, 0.0
    %v999 = vsel %vm983, %v935, 0.0
    %v1000 = vadd.f32 %v984, 0.0
    %v1001 = vadd.f32 %v985, 0.0
    %v1002 = vadd.f32 %v986, 0.0
    %v1003 = vadd.f32 %v987, 0.0
    %v1004 = vadd.f32 %v988, 0.0
    %v1005 = vadd.f32 %v989, 0.0
    %v1006 = vadd.f32 %v990, 0.0
    %v1007 = vadd.f32 %v991, 0.0
    %v1008 = vadd.f32 %v992, 0.0
    %v1009 = vadd.f32 %v993, 0.0
    %v1010 = vadd.f32 %v994, 0.0
    %v1011 = vadd.f32 %v995, 0.0
    %v1012 = vadd.f32 %v996, 0.0
    %v1013 = vadd.f32 %v997, 0.0
    %v1014 = vadd.f32 %v998, 0.0
    %v1015 = vadd.f32 %v999, 0.0
    %v1016 = vlaneseq
    %v1017 = vshrl.u32 %v1016, 7
    %v1018 = vsub.s32 1, %v1017
    %v1019 = vrot.slane %v881, %v1018
    %v1020 = vmul.f32 %v415, %v1019
    %v1021 = vmul.f32 %v400, %v1019
    %v1022 = vmul.f32 %v401, %v1019
    %v1023 = vmul.f32 %v402, %v1019
    %v1024 = vmul.f32 %v403, %v1019
    %v1025 = vmul.f32 %v404, %v1019
    %v1026 = vmul.f32 %v405, %v1019
    %v1027 = vmul.f32 %v406, %v1019
    %v1028 = vmul.f32 %v407, %v1019
    %v1029 = vmul.f32 %v408, %v1019
    %v1030 = vmul.f32 %v409, %v1019
    %v1031 = vmul.f32 %v410, %v1019
    %v1032 = vmul.f32 %v411, %v1019
    %v1033 = vmul.f32 %v412, %v1019
    %v1034 = vmul.f32 %v413, %v1019
    %v1035 = vmul.f32 %v414, %v1019
    %v1036 = vsel %vm817, 1, 0
    %v1037 = vsel %vm818, 1, 0
    %v1038 = vsel %vm819, 1, 0
    %v1039 = vsel %vm820, 1, 0
    %v1040 = vsel %vm821, 1, 0
    %v1041 = vsel %vm822, 1, 0
    %v1042 = vsel %vm823, 1, 0
    %v1043 = vsel %vm824, 1, 0
    %v1044 = vsel %vm825, 1, 0
    %v1045 = vsel %vm826, 1, 0
    %v1046 = vsel %vm827, 1, 0
    %v1047 = vsel %vm828, 1, 0
    %v1048 = vsel %vm829, 1, 0
    %v1049 = vsel %vm830, 1, 0
    %v1050 = vsel %vm831, 1, 0
    %v1051 = vsel %vm832, 1, 0
    %vm1052 = vcmp.eq.s32.totalorder %v1036, 1
    %vm1053 = vcmp.eq.s32.totalorder %v1037, 1
    %vm1054 = vcmp.eq.s32.totalorder %v1038, 1
    %vm1055 = vcmp.eq.s32.totalorder %v1039, 1
    %vm1056 = vcmp.eq.s32.totalorder %v1040, 1
    %vm1057 = vcmp.eq.s32.totalorder %v1041, 1
    %vm1058 = vcmp.eq.s32.totalorder %v1042, 1
    %vm1059 = vcmp.eq.s32.totalorder %v1043, 1
    %vm1060 = vcmp.eq.s32.totalorder %v1044, 1
    %vm1061 = vcmp.eq.s32.totalorder %v1045, 1
    %vm1062 = vcmp.eq.s32.totalorder %v1046, 1
    %vm1063 = vcmp.eq.s32.totalorder %v1047, 1
    %vm1064 = vcmp.eq.s32.totalorder %v1048, 1
    %vm1065 = vcmp.eq.s32.totalorder %v1049, 1
    %vm1066 = vcmp.eq.s32.totalorder %v1050, 1
    %vm1067 = vcmp.eq.s32.totalorder %v1051, 1
    %v1068 = vsel %vm1052, %v1020, 0.0
    %v1069 = vsel %vm1053, %v1021, 0.0
    %v1070 = vsel %vm1054, %v1022, 0.0
    %v1071 = vsel %vm1055, %v1023, 0.0
    %v1072 = vsel %vm1056, %v1024, 0.0
    %v1073 = vsel %vm1057, %v1025, 0.0
    %v1074 = vsel %vm1058, %v1026, 0.0
    %v1075 = vsel %vm1059, %v1027, 0.0
    %v1076 = vsel %vm1060, %v1028, 0.0
    %v1077 = vsel %vm1061, %v1029, 0.0
    %v1078 = vsel %vm1062, %v1030, 0.0
    %v1079 = vsel %vm1063, %v1031, 0.0
    %v1080 = vsel %vm1064, %v1032, 0.0
    %v1081 = vsel %vm1065, %v1033, 0.0
    %v1082 = vsel %vm1066, %v1034, 0.0
    %v1083 = vsel %vm1067, %v1035, 0.0
    %v1084 = vadd.f32 %v1000, %v1068
    %v1085 = vadd.f32 %v1001, %v1069
    %v1086 = vadd.f32 %v1002, %v1070
    %v1087 = vadd.f32 %v1003, %v1071
    %v1088 = vadd.f32 %v1004, %v1072
    %v1089 = vadd.f32 %v1005, %v1073
    %v1090 = vadd.f32 %v1006, %v1074
    %v1091 = vadd.f32 %v1007, %v1075
    %v1092 = vadd.f32 %v1008, %v1076
    %v1093 = vadd.f32 %v1009, %v1077
    %v1094 = vadd.f32 %v1010, %v1078
    %v1095 = vadd.f32 %v1011, %v1079
    %v1096 = vadd.f32 %v1012, %v1080
    %v1097 = vadd.f32 %v1013, %v1081
    %v1098 = vadd.f32 %v1014, %v1082
    %v1099 = vadd.f32 %v1015, %v1083
    %v1100 = vrot.slane %v400, 1
    %v1101 = vrot.slane %v401, 1
    %v1102 = vrot.slane %v402, 1
    %v1103 = vrot.slane %v403, 1
    %v1104 = vrot.slane %v404, 1
    %v1105 = vrot.slane %v405, 1
    %v1106 = vrot.slane %v406, 1
    %v1107 = vrot.slane %v407, 1
    %v1108 = vrot.slane %v408, 1
    %v1109 = vrot.slane %v409, 1
    %v1110 = vrot.slane %v410, 1
    %v1111 = vrot.slane %v411, 1
    %v1112 = vrot.slane %v412, 1
    %v1113 = vrot.slane %v413, 1
    %v1114 = vrot.slane %v414, 1
    %v1115 = vrot.slane %v415, 1
    %vm1116 = vcmp.lt.s32.totalorder %v417, 7
    %v1117 = vsel %vm1116, %v1114, %v1115
    %v1118 = vsel %vm1116, %v1113, %v1114
    %v1119 = vsel %vm1116, %v1112, %v1113
    %v1120 = vsel %vm1116, %v1111, %v1112
    %v1121 = vsel %vm1116, %v1110, %v1111
    %v1122 = vsel %vm1116, %v1109, %v1110
    %v1123 = vsel %vm1116, %v1108, %v1109
    %v1124 = vsel %vm1116, %v1107, %v1108
    %v1125 = vsel %vm1116, %v1106, %v1107
    %v1126 = vsel %vm1116, %v1105, %v1106
    %v1127 = vsel %vm1116, %v1104, %v1105
    %v1128 = vsel %vm1116, %v1103, %v1104
    %v1129 = vsel %vm1116, %v1102, %v1103
    %v1130 = vsel %vm1116, %v1101, %v1102
    %v1131 = vsel %vm1116, %v1100, %v1101
    %v1132 = vsel %vm1116, %v1115, %v1100
    %v1133 = vlaneseq
    %v1134 = vshrl.u32 %v1133, 7
    %v1135 = vsub.s32 2, %v1134
    %v1136 = vrot.slane %v881, %v1135
    %v1137 = vmul.f32 %v1132, %v1136
    %v1138 = vmul.f32 %v1131, %v1136
    %v1139 = vmul.f32 %v1130, %v1136
    %v1140 = vmul.f32 %v1129, %v1136
    %v1141 = vmul.f32 %v1128, %v1136
    %v1142 = vmul.f32 %v1127, %v1136
    %v1143 = vmul.f32 %v1126, %v1136
    %v1144 = vmul.f32 %v1125, %v1136
    %v1145 = vmul.f32 %v1124, %v1136
    %v1146 = vmul.f32 %v1123, %v1136
    %v1147 = vmul.f32 %v1122, %v1136
    %v1148 = vmul.f32 %v1121, %v1136
    %v1149 = vmul.f32 %v1120, %v1136
    %v1150 = vmul.f32 %v1119, %v1136
    %v1151 = vmul.f32 %v1118, %v1136
    %v1152 = vmul.f32 %v1117, %v1136
    %vm1153 = vmand %vm817, %vm865
    %vm1154 = vmand %vm818, %vm866
    %vm1155 = vmand %vm819, %vm867
    %vm1156 = vmand %vm820, %vm868
    %vm1157 = vmand %vm821, %vm869
    %vm1158 = vmand %vm822, %vm870
    %vm1159 = vmand %vm823, %vm871
    %vm1160 = vmand %vm824, %vm872
    %vm1161 = vmand %vm825, %vm873
    %vm1162 = vmand %vm826, %vm874
    %vm1163 = vmand %vm827, %vm875
    %vm1164 = vmand %vm828, %vm876
    %vm1165 = vmand %vm829, %vm877
    %vm1166 = vmand %vm830, %vm878
    %vm1167 = vmand %vm831, %vm879
    %vm1168 = vmand %vm832, %vm880
    %v1169 = vsel %vm1153, 1, 0
    %v1170 = vsel %vm1154, 1, 0
    %v1171 = vsel %vm1155, 1, 0
    %v1172 = vsel %vm1156, 1, 0
    %v1173 = vsel %vm1157, 1, 0
    %v1174 = vsel %vm1158, 1, 0
    %v1175 = vsel %vm1159, 1, 0
    %v1176 = vsel %vm1160, 1, 0
    %v1177 = vsel %vm1161, 1, 0
    %v1178 = vsel %vm1162, 1, 0
    %v1179 = vsel %vm1163, 1, 0
    %v1180 = vsel %vm1164, 1, 0
    %v1181 = vsel %vm1165, 1, 0
    %v1182 = vsel %vm1166, 1, 0
    %v1183 = vsel %vm1167, 1, 0
    %v1184 = vsel %vm1168, 1, 0
    %vm1185 = vcmp.eq.s32.totalorder %v1169, 1
    %vm1186 = vcmp.eq.s32.totalorder %v1170, 1
    %vm1187 = vcmp.eq.s32.totalorder %v1171, 1
    %vm1188 = vcmp.eq.s32.totalorder %v1172, 1
    %vm1189 = vcmp.eq.s32.totalorder %v1173, 1
    %vm1190 = vcmp.eq.s32.totalorder %v1174, 1
    %vm1191 = vcmp.eq.s32.totalorder %v1175, 1
    %vm1192 = vcmp.eq.s32.totalorder %v1176, 1
    %vm1193 = vcmp.eq.s32.totalorder %v1177, 1
    %vm1194 = vcmp.eq.s32.totalorder %v1178, 1
    %vm1195 = vcmp.eq.s32.totalorder %v1179, 1
    %vm1196 = vcmp.eq.s32.totalorder %v1180, 1
    %vm1197 = vcmp.eq.s32.totalorder %v1181, 1
    %vm1198 = vcmp.eq.s32.totalorder %v1182, 1
    %vm1199 = vcmp.eq.s32.totalorder %v1183, 1
    %vm1200 = vcmp.eq.s32.totalorder %v1184, 1
    %v1201 = vsel %vm1185, %v1137, 0.0
    %v1202 = vsel %vm1186, %v1138, 0.0
    %v1203 = vsel %vm1187, %v1139, 0.0
    %v1204 = vsel %vm1188, %v1140, 0.0
    %v1205 = vsel %vm1189, %v1141, 0.0
    %v1206 = vsel %vm1190, %v1142, 0.0
    %v1207 = vsel %vm1191, %v1143, 0.0
    %v1208 = vsel %vm1192, %v1144, 0.0
    %v1209 = vsel %vm1193, %v1145, 0.0
    %v1210 = vsel %vm1194, %v1146, 0.0
    %v1211 = vsel %vm1195, %v1147, 0.0
    %v1212 = vsel %vm1196, %v1148, 0.0
    %v1213 = vsel %vm1197, %v1149, 0.0
    %v1214 = vsel %vm1198, %v1150, 0.0
    %v1215 = vsel %vm1199, %v1151, 0.0
    %v1216 = vsel %vm1200, %v1152, 0.0
    %v1217 = vadd.f32 %v1084, %v1201
    %v1218 = vadd.f32 %v1085, %v1202
    %v1219 = vadd.f32 %v1086, %v1203
    %v1220 = vadd.f32 %v1087, %v1204
    %v1221 = vadd.f32 %v1088, %v1205
    %v1222 = vadd.f32 %v1089, %v1206
    %v1223 = vadd.f32 %v1090, %v1207
    %v1224 = vadd.f32 %v1091, %v1208
    %v1225 = vadd.f32 %v1092, %v1209
    %v1226 = vadd.f32 %v1093, %v1210
    %v1227 = vadd.f32 %v1094, %v1211
    %v1228 = vadd.f32 %v1095, %v1212
    %v1229 = vadd.f32 %v1096, %v1213
    %v1230 = vadd.f32 %v1097, %v1214
    %v1231 = vadd.f32 %v1098, %v1215
    %v1232 = vadd.f32 %v1099, %v1216
    %v1233 = vlaneseq
    %v1234 = vshrl.u32 %v1233, 7
    %v1235 = vsub.s32 3, %v1234
    %v1236 = vrot.slane %v881, %v1235
    %v1237 = vmul.f32 %v915, %v1236
    %v1238 = vmul.f32 %v914, %v1236
    %v1239 = vmul.f32 %v913, %v1236
    %v1240 = vmul.f32 %v912, %v1236
    %v1241 = vmul.f32 %v911, %v1236
    %v1242 = vmul.f32 %v910, %v1236
    %v1243 = vmul.f32 %v909, %v1236
    %v1244 = vmul.f32 %v908, %v1236
    %v1245 = vmul.f32 %v907, %v1236
    %v1246 = vmul.f32 %v906, %v1236
    %v1247 = vmul.f32 %v905, %v1236
    %v1248 = vmul.f32 %v904, %v1236
    %v1249 = vmul.f32 %v903, %v1236
    %v1250 = vmul.f32 %v902, %v1236
    %v1251 = vmul.f32 %v901, %v1236
    %v1252 = vmul.f32 %v900, %v1236
    %v1253 = vsel %vm849, 1, 0
    %v1254 = vsel %vm850, 1, 0
    %v1255 = vsel %vm851, 1, 0
    %v1256 = vsel %vm852, 1, 0
    %v1257 = vsel %vm853, 1, 0
    %v1258 = vsel %vm854, 1, 0
    %v1259 = vsel %vm855, 1, 0
    %v1260 = vsel %vm856, 1, 0
    %v1261 = vsel %vm857, 1, 0
    %v1262 = vsel %vm858, 1, 0
    %v1263 = vsel %vm859, 1, 0
    %v1264 = vsel %vm860, 1, 0
    %v1265 = vsel %vm861, 1, 0
    %v1266 = vsel %vm862, 1, 0
    %v1267 = vsel %vm863, 1, 0
    %v1268 = vsel %vm864, 1, 0
    %vm1269 = vcmp.eq.s32.totalorder %v1253, 1
    %vm1270 = vcmp.eq.s32.totalorder %v1254, 1
    %vm1271 = vcmp.eq.s32.totalorder %v1255, 1
    %vm1272 = vcmp.eq.s32.totalorder %v1256, 1
    %vm1273 = vcmp.eq.s32.totalorder %v1257, 1
    %vm1274 = vcmp.eq.s32.totalorder %v1258, 1
    %vm1275 = vcmp.eq.s32.totalorder %v1259, 1
    %vm1276 = vcmp.eq.s32.totalorder %v1260, 1
    %vm1277 = vcmp.eq.s32.totalorder %v1261, 1
    %vm1278 = vcmp.eq.s32.totalorder %v1262, 1
    %vm1279 = vcmp.eq.s32.totalorder %v1263, 1
    %vm1280 = vcmp.eq.s32.totalorder %v1264, 1
    %vm1281 = vcmp.eq.s32.totalorder %v1265, 1
    %vm1282 = vcmp.eq.s32.totalorder %v1266, 1
    %vm1283 = vcmp.eq.s32.totalorder %v1267, 1
    %vm1284 = vcmp.eq.s32.totalorder %v1268, 1
    %v1285 = vsel %vm1269, %v1237, 0.0
    %v1286 = vsel %vm1270, %v1238, 0.0
    %v1287 = vsel %vm1271, %v1239, 0.0
    %v1288 = vsel %vm1272, %v1240, 0.0
    %v1289 = vsel %vm1273, %v1241, 0.0
    %v1290 = vsel %vm1274, %v1242, 0.0
    %v1291 = vsel %vm1275, %v1243, 0.0
    %v1292 = vsel %vm1276, %v1244, 0.0
    %v1293 = vsel %vm1277, %v1245, 0.0
    %v1294 = vsel %vm1278, %v1246, 0.0
    %v1295 = vsel %vm1279, %v1247, 0.0
    %v1296 = vsel %vm1280, %v1248, 0.0
    %v1297 = vsel %vm1281, %v1249, 0.0
    %v1298 = vsel %vm1282, %v1250, 0.0
    %v1299 = vsel %vm1283, %v1251, 0.0
    %v1300 = vsel %vm1284, %v1252, 0.0
    %v1301 = vadd.f32 %v1217, %v1285
    %v1302 = vadd.f32 %v1218, %v1286
    %v1303 = vadd.f32 %v1219, %v1287
    %v1304 = vadd.f32 %v1220, %v1288
    %v1305 = vadd.f32 %v1221, %v1289
    %v1306 = vadd.f32 %v1222, %v1290
    %v1307 = vadd.f32 %v1223, %v1291
    %v1308 = vadd.f32 %v1224, %v1292
    %v1309 = vadd.f32 %v1225, %v1293
    %v1310 = vadd.f32 %v1226, %v1294
    %v1311 = vadd.f32 %v1227, %v1295
    %v1312 = vadd.f32 %v1228, %v1296
    %v1313 = vadd.f32 %v1229, %v1297
    %v1314 = vadd.f32 %v1230, %v1298
    %v1315 = vadd.f32 %v1231, %v1299
    %v1316 = vadd.f32 %v1232, %v1300
    %v1317 = vlaneseq
    %v1318 = vshrl.u32 %v1317, 7
    %v1319 = vsub.s32 4, %v1318
    %v1320 = vrot.slane %v881, %v1319
    %v1321 = vmul.f32 %v400, %v1320
    %v1322 = vmul.f32 %v401, %v1320
    %v1323 = vmul.f32 %v402, %v1320
    %v1324 = vmul.f32 %v403, %v1320
    %v1325 = vmul.f32 %v404, %v1320
    %v1326 = vmul.f32 %v405, %v1320
    %v1327 = vmul.f32 %v406, %v1320
    %v1328 = vmul.f32 %v407, %v1320
    %v1329 = vmul.f32 %v408, %v1320
    %v1330 = vmul.f32 %v409, %v1320
    %v1331 = vmul.f32 %v410, %v1320
    %v1332 = vmul.f32 %v411, %v1320
    %v1333 = vmul.f32 %v412, %v1320
    %v1334 = vmul.f32 %v413, %v1320
    %v1335 = vmul.f32 %v414, %v1320
    %v1336 = vmul.f32 %v415, %v1320
    %v1337 = vadd.f32 %v1301, %v1321
    %v1338 = vadd.f32 %v1302, %v1322
    %v1339 = vadd.f32 %v1303, %v1323
    %v1340 = vadd.f32 %v1304, %v1324
    %v1341 = vadd.f32 %v1305, %v1325
    %v1342 = vadd.f32 %v1306, %v1326
    %v1343 = vadd.f32 %v1307, %v1327
    %v1344 = vadd.f32 %v1308, %v1328
    %v1345 = vadd.f32 %v1309, %v1329
    %v1346 = vadd.f32 %v1310, %v1330
    %v1347 = vadd.f32 %v1311, %v1331
    %v1348 = vadd.f32 %v1312, %v1332
    %v1349 = vadd.f32 %v1313, %v1333
    %v1350 = vadd.f32 %v1314, %v1334
    %v1351 = vadd.f32 %v1315, %v1335
    %v1352 = vadd.f32 %v1316, %v1336
    %v1353 = vlaneseq
    %v1354 = vshrl.u32 %v1353, 7
    %v1355 = vsub.s32 5, %v1354
    %v1356 = vrot.slane %v881, %v1355
    %v1357 = vmul.f32 %v1131, %v1356
    %v1358 = vmul.f32 %v1130, %v1356
    %v1359 = vmul.f32 %v1129, %v1356
    %v1360 = vmul.f32 %v1128, %v1356
    %v1361 = vmul.f32 %v1127, %v1356
    %v1362 = vmul.f32 %v1126, %v1356
    %v1363 = vmul.f32 %v1125, %v1356
    %v1364 = vmul.f32 %v1124, %v1356
    %v1365 = vmul.f32 %v1123, %v1356
    %v1366 = vmul.f32 %v1122, %v1356
    %v1367 = vmul.f32 %v1121, %v1356
    %v1368 = vmul.f32 %v1120, %v1356
    %v1369 = vmul.f32 %v1119, %v1356
    %v1370 = vmul.f32 %v1118, %v1356
    %v1371 = vmul.f32 %v1117, %v1356
    %v1372 = vmul.f32 %v1132, %v1356
    %v1373 = vsel %vm865, 1, 0
    %v1374 = vsel %vm866, 1, 0
    %v1375 = vsel %vm867, 1, 0
    %v1376 = vsel %vm868, 1, 0
    %v1377 = vsel %vm869, 1, 0
    %v1378 = vsel %vm870, 1, 0
    %v1379 = vsel %vm871, 1, 0
    %v1380 = vsel %vm872, 1, 0
    %v1381 = vsel %vm873, 1, 0
    %v1382 = vsel %vm874, 1, 0
    %v1383 = vsel %vm875, 1, 0
    %v1384 = vsel %vm876, 1, 0
    %v1385 = vsel %vm877, 1, 0
    %v1386 = vsel %vm878, 1, 0
    %v1387 = vsel %vm879, 1, 0
    %v1388 = vsel %vm880, 1, 0
    %vm1389 = vcmp.eq.s32.totalorder %v1373, 1
    %vm1390 = vcmp.eq.s32.totalorder %v1374, 1
    %vm1391 = vcmp.eq.s32.totalorder %v1375, 1
    %vm1392 = vcmp.eq.s32.totalorder %v1376, 1
    %vm1393 = vcmp.eq.s32.totalorder %v1377, 1
    %vm1394 = vcmp.eq.s32.totalorder %v1378, 1
    %vm1395 = vcmp.eq.s32.totalorder %v1379, 1
    %vm1396 = vcmp.eq.s32.totalorder %v1380, 1
    %vm1397 = vcmp.eq.s32.totalorder %v1381, 1
    %vm1398 = vcmp.eq.s32.totalorder %v1382, 1
    %vm1399 = vcmp.eq.s32.totalorder %v1383, 1
    %vm1400 = vcmp.eq.s32.totalorder %v1384, 1
    %vm1401 = vcmp.eq.s32.totalorder %v1385, 1
    %vm1402 = vcmp.eq.s32.totalorder %v1386, 1
    %vm1403 = vcmp.eq.s32.totalorder %v1387, 1
    %vm1404 = vcmp.eq.s32.totalorder %v1388, 1
    %v1405 = vsel %vm1389, %v1357, 0.0
    %v1406 = vsel %vm1390, %v1358, 0.0
    %v1407 = vsel %vm1391, %v1359, 0.0
    %v1408 = vsel %vm1392, %v1360, 0.0
    %v1409 = vsel %vm1393, %v1361, 0.0
    %v1410 = vsel %vm1394, %v1362, 0.0
    %v1411 = vsel %vm1395, %v1363, 0.0
    %v1412 = vsel %vm1396, %v1364, 0.0
    %v1413 = vsel %vm1397, %v1365, 0.0
    %v1414 = vsel %vm1398, %v1366, 0.0
    %v1415 = vsel %vm1399, %v1367, 0.0
    %v1416 = vsel %vm1400, %v1368, 0.0
    %v1417 = vsel %vm1401, %v1369, 0.0
    %v1418 = vsel %vm1402, %v1370, 0.0
    %v1419 = vsel %vm1403, %v1371, 0.0
    %v1420 = vsel %vm1404, %v1372, 0.0
    %v1421 = vadd.f32 %v1337, %v1405
    %v1422 = vadd.f32 %v1338, %v1406
    %v1423 = vadd.f32 %v1339, %v1407
    %v1424 = vadd.f32 %v1340, %v1408
    %v1425 = vadd.f32 %v1341, %v1409
    %v1426 = vadd.f32 %v1342, %v1410
    %v1427 = vadd.f32 %v1343, %v1411
    %v1428 = vadd.f32 %v1344, %v1412
    %v1429 = vadd.f32 %v1345, %v1413
    %v1430 = vadd.f32 %v1346, %v1414
    %v1431 = vadd.f32 %v1347, %v1415
    %v1432 = vadd.f32 %v1348, %v1416
    %v1433 = vadd.f32 %v1349, %v1417
    %v1434 = vadd.f32 %v1350, %v1418
    %v1435 = vadd.f32 %v1351, %v1419
    %v1436 = vadd.f32 %v1352, %v1420
    %v1437 = vlaneseq
    %v1438 = vshrl.u32 %v1437, 7
    %v1439 = vsub.s32 6, %v1438
    %v1440 = vrot.slane %v881, %v1439
    %v1441 = vmul.f32 %v914, %v1440
    %v1442 = vmul.f32 %v913, %v1440
    %v1443 = vmul.f32 %v912, %v1440
    %v1444 = vmul.f32 %v911, %v1440
    %v1445 = vmul.f32 %v910, %v1440
    %v1446 = vmul.f32 %v909, %v1440
    %v1447 = vmul.f32 %v908, %v1440
    %v1448 = vmul.f32 %v907, %v1440
    %v1449 = vmul.f32 %v906, %v1440
    %v1450 = vmul.f32 %v905, %v1440
    %v1451 = vmul.f32 %v904, %v1440
    %v1452 = vmul.f32 %v903, %v1440
    %v1453 = vmul.f32 %v902, %v1440
    %v1454 = vmul.f32 %v901, %v1440
    %v1455 = vmul.f32 %v900, %v1440
    %v1456 = vmul.f32 %v915, %v1440
    %vm1457 = vmand %vm833, %vm849
    %vm1458 = vmand %vm834, %vm850
    %vm1459 = vmand %vm835, %vm851
    %vm1460 = vmand %vm836, %vm852
    %vm1461 = vmand %vm837, %vm853
    %vm1462 = vmand %vm838, %vm854
    %vm1463 = vmand %vm839, %vm855
    %vm1464 = vmand %vm840, %vm856
    %vm1465 = vmand %vm841, %vm857
    %vm1466 = vmand %vm842, %vm858
    %vm1467 = vmand %vm843, %vm859
    %vm1468 = vmand %vm844, %vm860
    %vm1469 = vmand %vm845, %vm861
    %vm1470 = vmand %vm846, %vm862
    %vm1471 = vmand %vm847, %vm863
    %vm1472 = vmand %vm848, %vm864
    %v1473 = vsel %vm1457, 1, 0
    %v1474 = vsel %vm1458, 1, 0
    %v1475 = vsel %vm1459, 1, 0
    %v1476 = vsel %vm1460, 1, 0
    %v1477 = vsel %vm1461, 1, 0
    %v1478 = vsel %vm1462, 1, 0
    %v1479 = vsel %vm1463, 1, 0
    %v1480 = vsel %vm1464, 1, 0
    %v1481 = vsel %vm1465, 1, 0
    %v1482 = vsel %vm1466, 1, 0
    %v1483 = vsel %vm1467, 1, 0
    %v1484 = vsel %vm1468, 1, 0
    %v1485 = vsel %vm1469, 1, 0
    %v1486 = vsel %vm1470, 1, 0
    %v1487 = vsel %vm1471, 1, 0
    %v1488 = vsel %vm1472, 1, 0
    %vm1489 = vcmp.eq.s32.totalorder %v1473, 1
    %vm1490 = vcmp.eq.s32.totalorder %v1474, 1
    %vm1491 = vcmp.eq.s32.totalorder %v1475, 1
    %vm1492 = vcmp.eq.s32.totalorder %v1476, 1
    %vm1493 = vcmp.eq.s32.totalorder %v1477, 1
    %vm1494 = vcmp.eq.s32.totalorder %v1478, 1
    %vm1495 = vcmp.eq.s32.totalorder %v1479, 1
    %vm1496 = vcmp.eq.s32.totalorder %v1480, 1
    %vm1497 = vcmp.eq.s32.totalorder %v1481, 1
    %vm1498 = vcmp.eq.s32.totalorder %v1482, 1
    %vm1499 = vcmp.eq.s32.totalorder %v1483, 1
    %vm1500 = vcmp.eq.s32.totalorder %v1484, 1
    %vm1501 = vcmp.eq.s32.totalorder %v1485, 1
    %vm1502 = vcmp.eq.s32.totalorder %v1486, 1
    %vm1503 = vcmp.eq.s32.totalorder %v1487, 1
    %vm1504 = vcmp.eq.s32.totalorder %v1488, 1
    %v1505 = vsel %vm1489, %v1441, 0.0
    %v1506 = vsel %vm1490, %v1442, 0.0
    %v1507 = vsel %vm1491, %v1443, 0.0
    %v1508 = vsel %vm1492, %v1444, 0.0
    %v1509 = vsel %vm1493, %v1445, 0.0
    %v1510 = vsel %vm1494, %v1446, 0.0
    %v1511 = vsel %vm1495, %v1447, 0.0
    %v1512 = vsel %vm1496, %v1448, 0.0
    %v1513 = vsel %vm1497, %v1449, 0.0
    %v1514 = vsel %vm1498, %v1450, 0.0
    %v1515 = vsel %vm1499, %v1451, 0.0
    %v1516 = vsel %vm1500, %v1452, 0.0
    %v1517 = vsel %vm1501, %v1453, 0.0
    %v1518 = vsel %vm1502, %v1454, 0.0
    %v1519 = vsel %vm1503, %v1455, 0.0
    %v1520 = vsel %vm1504, %v1456, 0.0
    %v1521 = vadd.f32 %v1421, %v1505
    %v1522 = vadd.f32 %v1422, %v1506
    %v1523 = vadd.f32 %v1423, %v1507
    %v1524 = vadd.f32 %v1424, %v1508
    %v1525 = vadd.f32 %v1425, %v1509
    %v1526 = vadd.f32 %v1426, %v1510
    %v1527 = vadd.f32 %v1427, %v1511
    %v1528 = vadd.f32 %v1428, %v1512
    %v1529 = vadd.f32 %v1429, %v1513
    %v1530 = vadd.f32 %v1430, %v1514
    %v1531 = vadd.f32 %v1431, %v1515
    %v1532 = vadd.f32 %v1432, %v1516
    %v1533 = vadd.f32 %v1433, %v1517
    %v1534 = vadd.f32 %v1434, %v1518
    %v1535 = vadd.f32 %v1435, %v1519
    %v1536 = vadd.f32 %v1436, %v1520
    %v1537 = vlaneseq
    %v1538 = vshrl.u32 %v1537, 7
    %v1539 = vsub.s32 7, %v1538
    %v1540 = vrot.slane %v881, %v1539
    %v1541 = vmul.f32 %v401, %v1540
    %v1542 = vmul.f32 %v402, %v1540
    %v1543 = vmul.f32 %v403, %v1540
    %v1544 = vmul.f32 %v404, %v1540
    %v1545 = vmul.f32 %v405, %v1540
    %v1546 = vmul.f32 %v406, %v1540
    %v1547 = vmul.f32 %v407, %v1540
    %v1548 = vmul.f32 %v408, %v1540
    %v1549 = vmul.f32 %v409, %v1540
    %v1550 = vmul.f32 %v410, %v1540
    %v1551 = vmul.f32 %v411, %v1540
    %v1552 = vmul.f32 %v412, %v1540
    %v1553 = vmul.f32 %v413, %v1540
    %v1554 = vmul.f32 %v414, %v1540
    %v1555 = vmul.f32 %v415, %v1540
    %v1556 = vmul.f32 %v400, %v1540
    %v1557 = vsel %vm833, 1, 0
    %v1558 = vsel %vm834, 1, 0
    %v1559 = vsel %vm835, 1, 0
    %v1560 = vsel %vm836, 1, 0
    %v1561 = vsel %vm837, 1, 0
    %v1562 = vsel %vm838, 1, 0
    %v1563 = vsel %vm839, 1, 0
    %v1564 = vsel %vm840, 1, 0
    %v1565 = vsel %vm841, 1, 0
    %v1566 = vsel %vm842, 1, 0
    %v1567 = vsel %vm843, 1, 0
    %v1568 = vsel %vm844, 1, 0
    %v1569 = vsel %vm845, 1, 0
    %v1570 = vsel %vm846, 1, 0
    %v1571 = vsel %vm847, 1, 0
    %v1572 = vsel %vm848, 1, 0
    %vm1573 = vcmp.eq.s32.totalorder %v1557, 1
    %vm1574 = vcmp.eq.s32.totalorder %v1558, 1
    %vm1575 = vcmp.eq.s32.totalorder %v1559, 1
    %vm1576 = vcmp.eq.s32.totalorder %v1560, 1
    %vm1577 = vcmp.eq.s32.totalorder %v1561, 1
    %vm1578 = vcmp.eq.s32.totalorder %v1562, 1
    %vm1579 = vcmp.eq.s32.totalorder %v1563, 1
    %vm1580 = vcmp.eq.s32.totalorder %v1564, 1
    %vm1581 = vcmp.eq.s32.totalorder %v1565, 1
    %vm1582 = vcmp.eq.s32.totalorder %v1566, 1
    %vm1583 = vcmp.eq.s32.totalorder %v1567, 1
    %vm1584 = vcmp.eq.s32.totalorder %v1568, 1
    %vm1585 = vcmp.eq.s32.totalorder %v1569, 1
    %vm1586 = vcmp.eq.s32.totalorder %v1570, 1
    %vm1587 = vcmp.eq.s32.totalorder %v1571, 1
    %vm1588 = vcmp.eq.s32.totalorder %v1572, 1
    %v1589 = vsel %vm1573, %v1541, 0.0
    %v1590 = vsel %vm1574, %v1542, 0.0
    %v1591 = vsel %vm1575, %v1543, 0.0
    %v1592 = vsel %vm1576, %v1544, 0.0
    %v1593 = vsel %vm1577, %v1545, 0.0
    %v1594 = vsel %vm1578, %v1546, 0.0
    %v1595 = vsel %vm1579, %v1547, 0.0
    %v1596 = vsel %vm1580, %v1548, 0.0
    %v1597 = vsel %vm1581, %v1549, 0.0
    %v1598 = vsel %vm1582, %v1550, 0.0
    %v1599 = vsel %vm1583, %v1551, 0.0
    %v1600 = vsel %vm1584, %v1552, 0.0
    %v1601 = vsel %vm1585, %v1553, 0.0
    %v1602 = vsel %vm1586, %v1554, 0.0
    %v1603 = vsel %vm1587, %v1555, 0.0
    %v1604 = vsel %vm1588, %v1556, 0.0
    %v1605 = vadd.f32 %v1521, %v1589
    %v1606 = vadd.f32 %v1522, %v1590
    %v1607 = vadd.f32 %v1523, %v1591
    %v1608 = vadd.f32 %v1524, %v1592
    %v1609 = vadd.f32 %v1525, %v1593
    %v1610 = vadd.f32 %v1526, %v1594
    %v1611 = vadd.f32 %v1527, %v1595
    %v1612 = vadd.f32 %v1528, %v1596
    %v1613 = vadd.f32 %v1529, %v1597
    %v1614 = vadd.f32 %v1530, %v1598
    %v1615 = vadd.f32 %v1531, %v1599
    %v1616 = vadd.f32 %v1532, %v1600
    %v1617 = vadd.f32 %v1533, %v1601
    %v1618 = vadd.f32 %v1534, %v1602
    %v1619 = vadd.f32 %v1535, %v1603
    %v1620 = vadd.f32 %v1536, %v1604
    %v1621 = vlaneseq
    %v1622 = vshrl.u32 %v1621, 7
    %v1623 = vsub.s32 0, %v1622
    %v1624 = vrot.slane %v882, %v1623
    %v1625 = vmul.f32 %v1130, %v1624
    %v1626 = vmul.f32 %v1129, %v1624
    %v1627 = vmul.f32 %v1128, %v1624
    %v1628 = vmul.f32 %v1127, %v1624
    %v1629 = vmul.f32 %v1126, %v1624
    %v1630 = vmul.f32 %v1125, %v1624
    %v1631 = vmul.f32 %v1124, %v1624
    %v1632 = vmul.f32 %v1123, %v1624
    %v1633 = vmul.f32 %v1122, %v1624
    %v1634 = vmul.f32 %v1121, %v1624
    %v1635 = vmul.f32 %v1120, %v1624
    %v1636 = vmul.f32 %v1119, %v1624
    %v1637 = vmul.f32 %v1118, %v1624
    %v1638 = vmul.f32 %v1117, %v1624
    %v1639 = vmul.f32 %v1132, %v1624
    %v1640 = vmul.f32 %v1131, %v1624
    %vm1641 = vmand %vm833, %vm865
    %vm1642 = vmand %vm834, %vm866
    %vm1643 = vmand %vm835, %vm867
    %vm1644 = vmand %vm836, %vm868
    %vm1645 = vmand %vm837, %vm869
    %vm1646 = vmand %vm838, %vm870
    %vm1647 = vmand %vm839, %vm871
    %vm1648 = vmand %vm840, %vm872
    %vm1649 = vmand %vm841, %vm873
    %vm1650 = vmand %vm842, %vm874
    %vm1651 = vmand %vm843, %vm875
    %vm1652 = vmand %vm844, %vm876
    %vm1653 = vmand %vm845, %vm877
    %vm1654 = vmand %vm846, %vm878
    %vm1655 = vmand %vm847, %vm879
    %vm1656 = vmand %vm848, %vm880
    %v1657 = vsel %vm1641, 1, 0
    %v1658 = vsel %vm1642, 1, 0
    %v1659 = vsel %vm1643, 1, 0
    %v1660 = vsel %vm1644, 1, 0
    %v1661 = vsel %vm1645, 1, 0
    %v1662 = vsel %vm1646, 1, 0
    %v1663 = vsel %vm1647, 1, 0
    %v1664 = vsel %vm1648, 1, 0
    %v1665 = vsel %vm1649, 1, 0
    %v1666 = vsel %vm1650, 1, 0
    %v1667 = vsel %vm1651, 1, 0
    %v1668 = vsel %vm1652, 1, 0
    %v1669 = vsel %vm1653, 1, 0
    %v1670 = vsel %vm1654, 1, 0
    %v1671 = vsel %vm1655, 1, 0
    %v1672 = vsel %vm1656, 1, 0
    %vm1673 = vcmp.eq.s32.totalorder %v1657, 1
    %vm1674 = vcmp.eq.s32.totalorder %v1658, 1
    %vm1675 = vcmp.eq.s32.totalorder %v1659, 1
    %vm1676 = vcmp.eq.s32.totalorder %v1660, 1
    %vm1677 = vcmp.eq.s32.totalorder %v1661, 1
    %vm1678 = vcmp.eq.s32.totalorder %v1662, 1
    %vm1679 = vcmp.eq.s32.totalorder %v1663, 1
    %vm1680 = vcmp.eq.s32.totalorder %v1664, 1
    %vm1681 = vcmp.eq.s32.totalorder %v1665, 1
    %vm1682 = vcmp.eq.s32.totalorder %v1666, 1
    %vm1683 = vcmp.eq.s32.totalorder %v1667, 1
    %vm1684 = vcmp.eq.s32.totalorder %v1668, 1
    %vm1685 = vcmp.eq.s32.totalorder %v1669, 1
    %vm1686 = vcmp.eq.s32.totalorder %v1670, 1
    %vm1687 = vcmp.eq.s32.totalorder %v1671, 1
    %vm1688 = vcmp.eq.s32.totalorder %v1672, 1
    %v1689 = vsel %vm1673, %v1625, 0.0
    %v1690 = vsel %vm1674, %v1626, 0.0
    %v1691 = vsel %vm1675, %v1627, 0.0
    %v1692 = vsel %vm1676, %v1628, 0.0
    %v1693 = vsel %vm1677, %v1629, 0.0
    %v1694 = vsel %vm1678, %v1630, 0.0
    %v1695 = vsel %vm1679, %v1631, 0.0
    %v1696 = vsel %vm1680, %v1632, 0.0
    %v1697 = vsel %vm1681, %v1633, 0.0
    %v1698 = vsel %vm1682, %v1634, 0.0
    %v1699 = vsel %vm1683, %v1635, 0.0
    %v1700 = vsel %vm1684, %v1636, 0.0
    %v1701 = vsel %vm1685, %v1637, 0.0
    %v1702 = vsel %vm1686, %v1638, 0.0
    %v1703 = vsel %vm1687, %v1639, 0.0
    %v1704 = vsel %vm1688, %v1640, 0.0
    %v1705 = vadd.f32 %v1605, %v1689
    %v1706 = vadd.f32 %v1606, %v1690
    %v1707 = vadd.f32 %v1607, %v1691
    %v1708 = vadd.f32 %v1608, %v1692
    %v1709 = vadd.f32 %v1609, %v1693
    %v1710 = vadd.f32 %v1610, %v1694
    %v1711 = vadd.f32 %v1611, %v1695
    %v1712 = vadd.f32 %v1612, %v1696
    %v1713 = vadd.f32 %v1613, %v1697
    %v1714 = vadd.f32 %v1614, %v1698
    %v1715 = vadd.f32 %v1615, %v1699
    %v1716 = vadd.f32 %v1616, %v1700
    %v1717 = vadd.f32 %v1617, %v1701
    %v1718 = vadd.f32 %v1618, %v1702
    %v1719 = vadd.f32 %v1619, %v1703
    %v1720 = vadd.f32 %v1620, %v1704
    %v1721 = vld [vmem:[%s4] sm:$0x1]
    %v1723 = vlaneseq
    %v1724 = vshrl.u32 %v1723, 7
    %v1725 = vsub.s32 0, %v1724
    %v1726 = vrot.slane %v1721, %v1725
    %v1728 = vadd.f32 %v1705, %v1726
    %v1729 = vadd.f32 %v1706, %v1726
    %v1730 = vadd.f32 %v1707, %v1726
    %v1731 = vadd.f32 %v1708, %v1726
    %v1732 = vadd.f32 %v1709, %v1726
    %v1733 = vadd.f32 %v1710, %v1726
    %v1734 = vadd.f32 %v1711, %v1726
    %v1735 = vadd.f32 %v1712, %v1726
    %v1736 = vadd.f32 %v1713, %v1726
    %v1737 = vadd.f32 %v1714, %v1726
    %v1738 = vadd.f32 %v1715, %v1726
    %v1739 = vadd.f32 %v1716, %v1726
    %v1740 = vadd.f32 %v1717, %v1726
    %v1741 = vadd.f32 %v1718, %v1726
    %v1742 = vadd.f32 %v1719, %v1726
    %v1743 = vadd.f32 %v1720, %v1726
    %v1744 = vpack.c.bf16 %v1729, %v1728
    %v1745 = vpack.c.bf16 %v1731, %v1730
    %v1746 = vpack.c.bf16 %v1733, %v1732
    %v1747 = vpack.c.bf16 %v1735, %v1734
    %v1748 = vpack.c.bf16 %v1737, %v1736
    %v1749 = vpack.c.bf16 %v1739, %v1738
    %v1750 = vpack.c.bf16 %v1741, %v1740
    %v1751 = vpack.c.bf16 %v1743, %v1742
    %1752 = vst [vmem:[#allocation3] sm:$0xff] %v1744
    %1753 = vst [vmem:[#allocation3 + $0x8] sm:$0xff] %v1745
    %1754 = vst [vmem:[#allocation3 + $0x10] sm:$0xff] %v1746
    %1755 = vst [vmem:[#allocation3 + $0x18] sm:$0xff] %v1747
    %1756 = vst [vmem:[#allocation3 + $0x20] sm:$0xff] %v1748
    %1757 = vst [vmem:[#allocation3 + $0x28] sm:$0xff] %v1749
    %1758 = vst [vmem:[#allocation3 + $0x30] sm:$0xff] %v1750
    %1759 = vst [vmem:[#allocation3 + $0x38] sm:$0xff] %v1751
    %v1760 = vld [vmem:[#allocation2] sm:$0xff]
    %v1761 = vld [vmem:[#allocation2 + $0x10] sm:$0xff]
    %v1762 = vld [vmem:[#allocation2 + $0x20] sm:$0xff]
    %v1763 = vld [vmem:[#allocation2 + $0x30] sm:$0xff]
    %v1764 = vld [vmem:[#allocation2 + $0x40] sm:$0xff]
    %v1765 = vld [vmem:[#allocation2 + $0x50] sm:$0xff]
    %v1766 = vld [vmem:[#allocation2 + $0x60] sm:$0xff]
    %v1767 = vld [vmem:[#allocation2 + $0x70] sm:$0xff]
    %v1768 = vpack.c.bf16 %v1761, %v1760
    %v1769 = vpack.c.bf16 %v1763, %v1762
    %v1770 = vpack.c.bf16 %v1765, %v1764
    %v1771 = vpack.c.bf16 %v1767, %v1766
    %v1772 = vld [vmem:[#allocation2 + $0x8] sm:$0xff]
    %v1773 = vld [vmem:[#allocation2 + $0x18] sm:$0xff]
    %v1774 = vld [vmem:[#allocation2 + $0x28] sm:$0xff]
    %v1775 = vld [vmem:[#allocation2 + $0x38] sm:$0xff]
    %v1776 = vld [vmem:[#allocation2 + $0x48] sm:$0xff]
    %v1777 = vld [vmem:[#allocation2 + $0x58] sm:$0xff]
    %v1778 = vld [vmem:[#allocation2 + $0x68] sm:$0xff]
    %v1779 = vld [vmem:[#allocation2 + $0x78] sm:$0xff]
    %1784 = vrot.lane.b32.xlu0 %v1768, 96
    %v1785 = vpop.permute.xlu0 %1784
    %1786 = vrot.lane.b32.xlu0 %v1769, 96
    %v1787 = vpop.permute.xlu0 %1786
    %1788 = vrot.lane.b32.xlu0 %v1770, 96
    %v1789 = vpop.permute.xlu0 %1788
    %1790 = vrot.lane.b32.xlu0 %v1771, 96
    %v1791 = vpop.permute.xlu0 %1790
    %vm1792 = vcmask 261120
    %v1794 = vsel %vm1792, %v1768, 0
    %v1797 = vsel %vm1792, %v1769, 0
    %v1800 = vsel %vm1792, %v1770, 0
    %v1803 = vsel %vm1792, %v1771, 0
    %v1806 = vsel %vm1792, %v1785, 0
    %v1809 = vsel %vm1792, %v1787, 0
    %v1812 = vsel %vm1792, %v1789, 0
    %v1815 = vsel %vm1792, %v1791, 0
    %1817 = vmatprep.subr.bf16.mxu0 0
    %1818 = vmatpush1.bf16.xpose.msra.mxu0 %v1806
    %1819 = vmatprep.subr.bf16.mxu0 0
    %1820 = vmatpush1.bf16.xpose.msra.mxu0 %v1809
    %1821 = vmatprep.subr.bf16.mxu0 0
    %1822 = vmatpush1.bf16.xpose.msra.mxu0 %v1812
    %1823 = vmatprep.subr.bf16.mxu0 0
    %1824 = vmatpush1.bf16.xpose.msra.mxu0 %v1815
    %1825 = vmatprep.subr.bf16.mxu0 0
    %1826 = vmatpush1.bf16.xpose.msra.mxu0 0
    %1827 = vmatprep.subr.bf16.mxu0 0
    %1828 = vmatpush1.bf16.xpose.msra.mxu0 0
    %1829 = vmatprep.subr.bf16.mxu0 0
    %1830 = vmatpush1.bf16.xpose.msra.mxu0 0
    %1831 = vmatprep.subr.bf16.mxu0 0
    %1832 = vmatpush1.bf16.xpose.msra.mxu0 0
    %1833 = vmatprep.subr.bf16.mxu0 0
    %1834 = vmatpush1.bf16.xpose.msra.mxu0 0
    %1835 = vmatprep.subr.bf16.mxu0 0
    %1836 = vmatpush1.bf16.xpose.msra.mxu0 0
    %1837 = vmatprep.subr.bf16.mxu0 0
    %1838 = vmatpush1.bf16.xpose.msra.mxu0 0
    %1839 = vmatprep.subr.bf16.mxu0 0
    %1840 = vmatpush1.bf16.xpose.msra.mxu0 0
    %1841 = vmatprep.subr.bf16.mxu0 0
    %1842 = vmatpush1.bf16.xpose.msra.mxu0 0
    %1843 = vmatprep.subr.bf16.mxu0 0
    %1844 = vmatpush1.bf16.xpose.msra.mxu0 0
    %1845 = vmatprep.subr.bf16.mxu0 0
    %1846 = vmatpush1.bf16.xpose.msra.mxu0 0
    %1847 = vmatprep.subr.bf16.mxu0 0
    %1848 = vmatpush1.bf16.xpose.msra.mxu0 0
    %1849 = vmatprep.mubr.bf16.mxu0 0
    %1850 = vmatmul.mubr.bf16.gmra.mrb[0].mxu0 %v1794
    %v1851 = vpop.f32.mrb[0].mxu0
    %v1852 = vadd.f32 0.0, %v1851
    %v1853 = vpop.f32.mrb[0].mxu0
    %v1854 = vpop.f32.mrb[0].mxu0
    %v1855 = vadd.f32 0.0, %v1854
    %v1856 = vpop.f32.mrb[0].mxu0
    %1857 = vmatprep.mubr.bf16.mxu0 0
    %1858 = vmatmul.mubr.bf16.gmra.mrb[0].mxu0 %v1797
    %v1859 = vpop.f32.mrb[0].mxu0
    %v1860 = vadd.f32 0.0, %v1859
    %v1861 = vpop.f32.mrb[0].mxu0
    %v1862 = vpop.f32.mrb[0].mxu0
    %v1863 = vadd.f32 0.0, %v1862
    %v1864 = vpop.f32.mrb[0].mxu0
    %1865 = vmatprep.mubr.bf16.mxu0 0
    %1866 = vmatmul.mubr.bf16.gmra.mrb[0].mxu0 %v1800
    %v1867 = vpop.f32.mrb[0].mxu0
    %v1868 = vadd.f32 0.0, %v1867
    %v1869 = vpop.f32.mrb[0].mxu0
    %v1870 = vpop.f32.mrb[0].mxu0
    %v1871 = vadd.f32 0.0, %v1870
    %v1872 = vpop.f32.mrb[0].mxu0
    %1873 = vmatprep.mubr.bf16.mxu0 0
    %1874 = vmatmul.mubr.bf16.gmra.mrb[0].mxu0 %v1803
    %v1875 = vpop.f32.mrb[0].mxu0
    %v1876 = vadd.f32 0.0, %v1875
    %v1877 = vpop.f32.mrb[0].mxu0
    %v1878 = vpop.f32.mrb[0].mxu0
    %v1879 = vadd.f32 0.0, %v1878
    %v1880 = vpop.f32.mrb[0].mxu0
    %1881 = vdwg.mxu0
    %vm1882 = vcmask 523264
    %v1883 = vsel %vm1882, %v1852, -inf
    %1884 = vmax.xlane.f32.xlu0 %v1883
    %v1885 = vpop.xlane.xlu0 %1884
    %v1886 = vsel %vm1882, %v1855, -inf
    %1887 = vmax.xlane.f32.xlu0 %v1886
    %v1888 = vpop.xlane.xlu0 %1887
    %v1889 = vsel %vm1882, %v1860, -inf
    %1890 = vmax.xlane.f32.xlu0 %v1889
    %v1891 = vpop.xlane.xlu0 %1890
    %v1892 = vsel %vm1882, %v1863, -inf
    %1893 = vmax.xlane.f32.xlu0 %v1892
    %v1894 = vpop.xlane.xlu0 %1893
    %v1895 = vsel %vm1882, %v1868, -inf
    %1896 = vmax.xlane.f32.xlu0 %v1895
    %v1897 = vpop.xlane.xlu0 %1896
    %v1898 = vsel %vm1882, %v1871, -inf
    %1899 = vmax.xlane.f32.xlu0 %v1898
    %v1900 = vpop.xlane.xlu0 %1899
    %v1901 = vsel %vm1882, %v1876, -inf
    %1902 = vmax.xlane.f32.xlu0 %v1901
    %v1903 = vpop.xlane.xlu0 %1902
    %v1904 = vsel %vm1882, %v1879, -inf
    %1905 = vmax.xlane.f32.xlu0 %v1904
    %v1906 = vpop.xlane.xlu0 %1905
    %v1907 = vsub.f32 %v1852, %v1885
    %v1908 = vsub.f32 %v1855, %v1888
    %v1909 = vsub.f32 %v1860, %v1891
    %v1910 = vsub.f32 %v1863, %v1894
    %v1911 = vsub.f32 %v1868, %v1897
    %v1912 = vsub.f32 %v1871, %v1900
    %v1913 = vsub.f32 %v1876, %v1903
    %v1914 = vsub.f32 %v1879, %v1906
    %v1915 = vmul.f32 %v1907, 1.442695
    %v1916 = vpow.pop %v1915
    %v1917 = vmul.f32 %v1908, 1.442695
    %v1918 = vpow.pop %v1917
    %v1919 = vmul.f32 %v1909, 1.442695
    %v1920 = vpow.pop %v1919
    %v1921 = vmul.f32 %v1910, 1.442695
    %v1922 = vpow.pop %v1921
    %v1923 = vmul.f32 %v1911, 1.442695
    %v1924 = vpow.pop %v1923
    %v1925 = vmul.f32 %v1912, 1.442695
    %v1926 = vpow.pop %v1925
    %v1927 = vmul.f32 %v1913, 1.442695
    %v1928 = vpow.pop %v1927
    %v1929 = vmul.f32 %v1914, 1.442695
    %v1930 = vpow.pop %v1929
    %v1931 = vsel %vm1882, %v1916, 0.0
    %1932 = vadd.xlane.f32.xlu0 %v1931
    %v1933 = vpop.xlane.xlu0 %1932
    %v1934 = vsel %vm1882, %v1918, 0.0
    %1935 = vadd.xlane.f32.xlu0 %v1934
    %v1936 = vpop.xlane.xlu0 %1935
    %v1937 = vsel %vm1882, %v1920, 0.0
    %1938 = vadd.xlane.f32.xlu0 %v1937
    %v1939 = vpop.xlane.xlu0 %1938
    %v1940 = vsel %vm1882, %v1922, 0.0
    %1941 = vadd.xlane.f32.xlu0 %v1940
    %v1942 = vpop.xlane.xlu0 %1941
    %v1943 = vsel %vm1882, %v1924, 0.0
    %1944 = vadd.xlane.f32.xlu0 %v1943
    %v1945 = vpop.xlane.xlu0 %1944
    %v1946 = vsel %vm1882, %v1926, 0.0
    %1947 = vadd.xlane.f32.xlu0 %v1946
    %v1948 = vpop.xlane.xlu0 %1947
    %v1949 = vsel %vm1882, %v1928, 0.0
    %1950 = vadd.xlane.f32.xlu0 %v1949
    %v1951 = vpop.xlane.xlu0 %1950
    %v1952 = vsel %vm1882, %v1930, 0.0
    %1953 = vadd.xlane.f32.xlu0 %v1952
    %v1954 = vpop.xlane.xlu0 %1953
    %v1955 = vpack.c.bf16 %v1918, %v1916
    %v1956 = vpack.c.bf16 %v1922, %v1920
    %v1957 = vpack.c.bf16 %v1926, %v1924
    %v1958 = vpack.c.bf16 %v1930, %v1928
    %v1959 = vpack.c.bf16 %v1773, %v1772
    %v1960 = vpack.c.bf16 %v1775, %v1774
    %v1961 = vpack.c.bf16 %v1777, %v1776
    %v1962 = vpack.c.bf16 %v1779, %v1778
    %v1964 = vsel %vm1882, %v1955, 0
    %v1967 = vsel %vm1882, %v1956, 0
    %v1970 = vsel %vm1882, %v1957, 0
    %v1973 = vsel %vm1882, %v1958, 0
    %1975 = vmatprep.subr.bf16.mxu0 0
    %1976 = vmatpush1.bf16.msra.mxu0 %v1959
    %1977 = vmatprep.subr.bf16.mxu0 0
    %1978 = vmatpush1.bf16.msra.mxu0 %v1960
    %1979 = vmatprep.subr.bf16.mxu0 0
    %1980 = vmatpush1.bf16.msra.mxu0 %v1961
    %1981 = vmatprep.subr.bf16.mxu0 0
    %1982 = vmatpush1.bf16.msra.mxu0 %v1962
    %1983 = vmatprep.subr.bf16.mxu0 0
    %1984 = vmatpush1.bf16.msra.mxu0 0
    %1985 = vmatprep.subr.bf16.mxu0 0
    %1986 = vmatpush1.bf16.msra.mxu0 0
    %1987 = vmatprep.subr.bf16.mxu0 0
    %1988 = vmatpush1.bf16.msra.mxu0 0
    %1989 = vmatprep.subr.bf16.mxu0 0
    %1990 = vmatpush1.bf16.msra.mxu0 0
    %1991 = vmatprep.subr.bf16.mxu0 0
    %1992 = vmatpush1.bf16.msra.mxu0 0
    %1993 = vmatprep.subr.bf16.mxu0 0
    %1994 = vmatpush1.bf16.msra.mxu0 0
    %1995 = vmatprep.subr.bf16.mxu0 0
    %1996 = vmatpush1.bf16.msra.mxu0 0
    %1997 = vmatprep.subr.bf16.mxu0 0
    %1998 = vmatpush1.bf16.msra.mxu0 0
    %1999 = vmatprep.subr.bf16.mxu0 0
    %2000 = vmatpush1.bf16.msra.mxu0 0
    %2001 = vmatprep.subr.bf16.mxu0 0
    %2002 = vmatpush1.bf16.msra.mxu0 0
    %2003 = vmatprep.subr.bf16.mxu0 0
    %2004 = vmatpush1.bf16.msra.mxu0 0
    %2005 = vmatprep.subr.bf16.mxu0 0
    %2006 = vmatpush1.bf16.msra.mxu0 0
    %2007 = vmatprep.mubr.bf16.mxu0 0
    %2008 = vmatmul.mubr.bf16.gmra.mrb[0].mxu0 %v1964
    %v2009 = vpop.f32.mrb[0].mxu0
    %v2010 = vadd.f32 0.0, %v2009
    %v2011 = vpop.f32.mrb[0].mxu0
    %v2012 = vpop.f32.mrb[0].mxu0
    %v2013 = vadd.f32 0.0, %v2012
    %v2014 = vpop.f32.mrb[0].mxu0
    %2015 = vmatprep.mubr.bf16.mxu0 0
    %2016 = vmatmul.mubr.bf16.gmra.mrb[0].mxu0 %v1967
    %v2017 = vpop.f32.mrb[0].mxu0
    %v2018 = vadd.f32 0.0, %v2017
    %v2019 = vpop.f32.mrb[0].mxu0
    %v2020 = vpop.f32.mrb[0].mxu0
    %v2021 = vadd.f32 0.0, %v2020
    %v2022 = vpop.f32.mrb[0].mxu0
    %2023 = vmatprep.mubr.bf16.mxu0 0
    %2024 = vmatmul.mubr.bf16.gmra.mrb[0].mxu0 %v1970
    %v2025 = vpop.f32.mrb[0].mxu0
    %v2026 = vadd.f32 0.0, %v2025
    %v2027 = vpop.f32.mrb[0].mxu0
    %v2028 = vpop.f32.mrb[0].mxu0
    %v2029 = vadd.f32 0.0, %v2028
    %v2030 = vpop.f32.mrb[0].mxu0
    %2031 = vmatprep.mubr.bf16.mxu0 0
    %2032 = vmatmul.mubr.bf16.gmra.mrb[0].mxu0 %v1973
    %v2033 = vpop.f32.mrb[0].mxu0
    %v2034 = vadd.f32 0.0, %v2033
    %v2035 = vpop.f32.mrb[0].mxu0
    %v2036 = vpop.f32.mrb[0].mxu0
    %v2037 = vadd.f32 0.0, %v2036
    %v2038 = vpop.f32.mrb[0].mxu0
    %2039 = vdwg.mxu0
    %v2040 = vrcp.pop %v1933
    %v2041 = vrcp.pop %v1936
    %v2042 = vrcp.pop %v1939
    %v2043 = vrcp.pop %v1942
    %v2044 = vrcp.pop %v1945
    %v2045 = vrcp.pop %v1948
    %v2046 = vrcp.pop %v1951
    %v2047 = vrcp.pop %v1954
    %v2048 = vmul.f32 %v2010, %v2040
    %v2049 = vmul.f32 %v2013, %v2041
    %v2050 = vmul.f32 %v2018, %v2042
    %v2051 = vmul.f32 %v2021, %v2043
    %v2052 = vmul.f32 %v2026, %v2044
    %v2053 = vmul.f32 %v2029, %v2045
    %v2054 = vmul.f32 %v2034, %v2046
    %v2055 = vmul.f32 %v2037, %v2047
    %v2056 = vld [vmem:[#allocation3] sm:$0xff]
    %v2057 = vld [vmem:[#allocation3 + $0x8] sm:$0xff]
    %v2058 = vld [vmem:[#allocation3 + $0x10] sm:$0xff]
    %v2059 = vld [vmem:[#allocation3 + $0x18] sm:$0xff]
    %v2060 = vunpack.c.l.bf16 %v2056
    %v2061 = vunpack.c.h.bf16 %v2056
    %v2062 = vunpack.c.l.bf16 %v2057
    %v2063 = vunpack.c.h.bf16 %v2057
    %v2064 = vunpack.c.l.bf16 %v2058
    %v2065 = vunpack.c.h.bf16 %v2058
    %v2066 = vunpack.c.l.bf16 %v2059
    %v2067 = vunpack.c.h.bf16 %v2059
    %v2068 = vadd.f32 %v2060, %v2048
    %v2069 = vadd.f32 %v2061, %v2049
    %v2070 = vadd.f32 %v2062, %v2050
    %v2071 = vadd.f32 %v2063, %v2051
    %v2072 = vadd.f32 %v2064, %v2052
    %v2073 = vadd.f32 %v2065, %v2053
    %v2074 = vadd.f32 %v2066, %v2054
    %v2075 = vadd.f32 %v2067, %v2055
    %v2076 = vpack.c.bf16 %v2069, %v2068
    %v2077 = vpack.c.bf16 %v2071, %v2070
    %v2078 = vpack.c.bf16 %v2073, %v2072
    %v2079 = vpack.c.bf16 %v2075, %v2074
    %2080 = vst.msk [vmem:[#allocation3] sm:$0xff] %vm1882, %v2076
    %2081 = vst.msk [vmem:[#allocation3 + $0x8] sm:$0xff] %vm1882, %v2077
    %2082 = vst.msk [vmem:[#allocation3 + $0x10] sm:$0xff] %vm1882, %v2078
    %2083 = vst.msk [vmem:[#allocation3 + $0x18] sm:$0xff] %vm1882, %v2079
    %v2084 = vld [vmem:[#allocation2] sm:$0xff]
    %v2085 = vld [vmem:[#allocation2 + $0x10] sm:$0xff]
    %v2086 = vld [vmem:[#allocation2 + $0x20] sm:$0xff]
    %v2087 = vld [vmem:[#allocation2 + $0x30] sm:$0xff]
    %v2088 = vld [vmem:[#allocation2 + $0x40] sm:$0xff]
    %v2089 = vld [vmem:[#allocation2 + $0x50] sm:$0xff]
    %v2090 = vld [vmem:[#allocation2 + $0x60] sm:$0xff]
    %v2091 = vld [vmem:[#allocation2 + $0x70] sm:$0xff]
    %v2092 = vpack.c.bf16 %v2085, %v2084
    %v2093 = vpack.c.bf16 %v2087, %v2086
    %v2094 = vpack.c.bf16 %v2089, %v2088
    %v2095 = vpack.c.bf16 %v2091, %v2090
    %v2096 = vld [vmem:[#allocation2 + $0x8] sm:$0xff]
    %v2097 = vld [vmem:[#allocation2 + $0x18] sm:$0xff]
    %v2098 = vld [vmem:[#allocation2 + $0x28] sm:$0xff]
    %v2099 = vld [vmem:[#allocation2 + $0x38] sm:$0xff]
    %v2100 = vld [vmem:[#allocation2 + $0x48] sm:$0xff]
    %v2101 = vld [vmem:[#allocation2 + $0x58] sm:$0xff]
    %v2102 = vld [vmem:[#allocation2 + $0x68] sm:$0xff]
    %v2103 = vld [vmem:[#allocation2 + $0x78] sm:$0xff]
    %2108 = vrot.lane.b32.xlu0 %v2092, 64
    %v2109 = vpop.permute.xlu0 %2108
    %2110 = vrot.lane.b32.xlu0 %v2093, 64
    %v2111 = vpop.permute.xlu0 %2110
    %2112 = vrot.lane.b32.xlu0 %v2094, 64
    %v2113 = vpop.permute.xlu0 %2112
    %2114 = vrot.lane.b32.xlu0 %v2095, 64
    %v2115 = vpop.permute.xlu0 %2114
    %2116 = vrot.lane.b32.xlu0 %v2092, 32
    %v2117 = vpop.permute.xlu0 %2116
    %2118 = vrot.lane.b32.xlu0 %v2093, 32
    %v2119 = vpop.permute.xlu0 %2118
    %2120 = vrot.lane.b32.xlu0 %v2094, 32
    %v2121 = vpop.permute.xlu0 %2120
    %2122 = vrot.lane.b32.xlu0 %v2095, 32
    %v2123 = vpop.permute.xlu0 %2122
    %v2125 = vsel %vm1792, %v2109, 0
    %v2128 = vsel %vm1792, %v2111, 0
    %v2131 = vsel %vm1792, %v2113, 0
    %v2134 = vsel %vm1792, %v2115, 0
    %v2137 = vsel %vm1792, %v2117, 0
    %v2140 = vsel %vm1792, %v2119, 0
    %v2143 = vsel %vm1792, %v2121, 0
    %v2146 = vsel %vm1792, %v2123, 0
    %2148 = vmatprep.subr.bf16.mxu0 0
    %2149 = vmatpush1.bf16.xpose.msra.mxu0 %v2137
    %2150 = vmatprep.subr.bf16.mxu0 0
    %2151 = vmatpush1.bf16.xpose.msra.mxu0 %v2140
    %2152 = vmatprep.subr.bf16.mxu0 0
    %2153 = vmatpush1.bf16.xpose.msra.mxu0 %v2143
    %2154 = vmatprep.subr.bf16.mxu0 0
    %2155 = vmatpush1.bf16.xpose.msra.mxu0 %v2146
    %2156 = vmatprep.subr.bf16.mxu0 0
    %2157 = vmatpush1.bf16.xpose.msra.mxu0 0
    %2158 = vmatprep.subr.bf16.mxu0 0
    %2159 = vmatpush1.bf16.xpose.msra.mxu0 0
    %2160 = vmatprep.subr.bf16.mxu0 0
    %2161 = vmatpush1.bf16.xpose.msra.mxu0 0
    %2162 = vmatprep.subr.bf16.mxu0 0
    %2163 = vmatpush1.bf16.xpose.msra.mxu0 0
    %2164 = vmatprep.subr.bf16.mxu0 0
    %2165 = vmatpush1.bf16.xpose.msra.mxu0 0
    %2166 = vmatprep.subr.bf16.mxu0 0
    %2167 = vmatpush1.bf16.xpose.msra.mxu0 0
    %2168 = vmatprep.subr.bf16.mxu0 0
    %2169 = vmatpush1.bf16.xpose.msra.mxu0 0
    %2170 = vmatprep.subr.bf16.mxu0 0
    %2171 = vmatpush1.bf16.xpose.msra.mxu0 0
    %2172 = vmatprep.subr.bf16.mxu0 0
    %2173 = vmatpush1.bf16.xpose.msra.mxu0 0
    %2174 = vmatprep.subr.bf16.mxu0 0
    %2175 = vmatpush1.bf16.xpose.msra.mxu0 0
    %2176 = vmatprep.subr.bf16.mxu0 0
    %2177 = vmatpush1.bf16.xpose.msra.mxu0 0
    %2178 = vmatprep.subr.bf16.mxu0 0
    %2179 = vmatpush1.bf16.xpose.msra.mxu0 0
    %2180 = vmatprep.mubr.bf16.mxu0 0
    %2181 = vmatmul.mubr.bf16.gmra.mrb[0].mxu0 %v2125
    %v2182 = vpop.f32.mrb[0].mxu0
    %v2183 = vadd.f32 0.0, %v2182
    %v2184 = vpop.f32.mrb[0].mxu0
    %v2185 = vpop.f32.mrb[0].mxu0
    %v2186 = vadd.f32 0.0, %v2185
    %v2187 = vpop.f32.mrb[0].mxu0
    %2188 = vmatprep.mubr.bf16.mxu0 0
    %2189 = vmatmul.mubr.bf16.gmra.mrb[0].mxu0 %v2128
    %v2190 = vpop.f32.mrb[0].mxu0
    %v2191 = vadd.f32 0.0, %v2190
    %v2192 = vpop.f32.mrb[0].mxu0
    %v2193 = vpop.f32.mrb[0].mxu0
    %v2194 = vadd.f32 0.0, %v2193
    %v2195 = vpop.f32.mrb[0].mxu0
    %2196 = vmatprep.mubr.bf16.mxu0 0
    %2197 = vmatmul.mubr.bf16.gmra.mrb[0].mxu0 %v2131
    %v2198 = vpop.f32.mrb[0].mxu0
    %v2199 = vadd.f32 0.0, %v2198
    %v2200 = vpop.f32.mrb[0].mxu0
    %v2201 = vpop.f32.mrb[0].mxu0
    %v2202 = vadd.f32 0.0, %v2201
    %v2203 = vpop.f32.mrb[0].mxu0
    %2204 = vmatprep.mubr.bf16.mxu0 0
    %2205 = vmatmul.mubr.bf16.gmra.mrb[0].mxu0 %v2134
    %v2206 = vpop.f32.mrb[0].mxu0
    %v2207 = vadd.f32 0.0, %v2206
    %v2208 = vpop.f32.mrb[0].mxu0
    %v2209 = vpop.f32.mrb[0].mxu0
    %v2210 = vadd.f32 0.0, %v2209
    %v2211 = vpop.f32.mrb[0].mxu0
    %2212 = vdwg.mxu0
    %v2213 = vsel %vm1882, %v2183, -inf
    %2214 = vmax.xlane.f32.xlu0 %v2213
    %v2215 = vpop.xlane.xlu0 %2214
    %v2216 = vsel %vm1882, %v2186, -inf
    %2217 = vmax.xlane.f32.xlu0 %v2216
    %v2218 = vpop.xlane.xlu0 %2217
    %v2219 = vsel %vm1882, %v2191, -inf
    %2220 = vmax.xlane.f32.xlu0 %v2219
    %v2221 = vpop.xlane.xlu0 %2220
    %v2222 = vsel %vm1882, %v2194, -inf
    %2223 = vmax.xlane.f32.xlu0 %v2222
    %v2224 = vpop.xlane.xlu0 %2223
    %v2225 = vsel %vm1882, %v2199, -inf
    %2226 = vmax.xlane.f32.xlu0 %v2225
    %v2227 = vpop.xlane.xlu0 %2226
    %v2228 = vsel %vm1882, %v2202, -inf
    %2229 = vmax.xlane.f32.xlu0 %v2228
    %v2230 = vpop.xlane.xlu0 %2229
    %v2231 = vsel %vm1882, %v2207, -inf
    %2232 = vmax.xlane.f32.xlu0 %v2231
    %v2233 = vpop.xlane.xlu0 %2232
    %v2234 = vsel %vm1882, %v2210, -inf
    %2235 = vmax.xlane.f32.xlu0 %v2234
    %v2236 = vpop.xlane.xlu0 %2235
    %v2237 = vsub.f32 %v2183, %v2215
    %v2238 = vsub.f32 %v2186, %v2218
    %v2239 = vsub.f32 %v2191, %v2221
    %v2240 = vsub.f32 %v2194, %v2224
    %v2241 = vsub.f32 %v2199, %v2227
    %v2242 = vsub.f32 %v2202, %v2230
    %v2243 = vsub.f32 %v2207, %v2233
    %v2244 = vsub.f32 %v2210, %v2236
    %v2245 = vmul.f32 %v2237, 1.442695
    %v2246 = vpow.pop %v2245
    %v2247 = vmul.f32 %v2238, 1.442695
    %v2248 = vpow.pop %v2247
    %v2249 = vmul.f32 %v2239, 1.442695
    %v2250 = vpow.pop %v2249
    %v2251 = vmul.f32 %v2240, 1.442695
    %v2252 = vpow.pop %v2251
    %v2253 = vmul.f32 %v2241, 1.442695
    %v2254 = vpow.pop %v2253
    %v2255 = vmul.f32 %v2242, 1.442695
    %v2256 = vpow.pop %v2255
    %v2257 = vmul.f32 %v2243, 1.442695
    %v2258 = vpow.pop %v2257
    %v2259 = vmul.f32 %v2244, 1.442695
    %v2260 = vpow.pop %v2259
    %v2261 = vsel %vm1882, %v2246, 0.0
    %2262 = vadd.xlane.f32.xlu0 %v2261
    %v2263 = vpop.xlane.xlu0 %2262
    %v2264 = vsel %vm1882, %v2248, 0.0
    %2265 = vadd.xlane.f32.xlu0 %v2264
    %v2266 = vpop.xlane.xlu0 %2265
    %v2267 = vsel %vm1882, %v2250, 0.0
    %2268 = vadd.xlane.f32.xlu0 %v2267
    %v2269 = vpop.xlane.xlu0 %2268
    %v2270 = vsel %vm1882, %v2252, 0.0
    %2271 = vadd.xlane.f32.xlu0 %v2270
    %v2272 = vpop.xlane.xlu0 %2271
    %v2273 = vsel %vm1882, %v2254, 0.0
    %2274 = vadd.xlane.f32.xlu0 %v2273
    %v2275 = vpop.xlane.xlu0 %2274
    %v2276 = vsel %vm1882, %v2256, 0.0
    %2277 = vadd.xlane.f32.xlu0 %v2276
    %v2278 = vpop.xlane.xlu0 %2277
    %v2279 = vsel %vm1882, %v2258, 0.0
    %2280 = vadd.xlane.f32.xlu0 %v2279
    %v2281 = vpop.xlane.xlu0 %2280
    %v2282 = vsel %vm1882, %v2260, 0.0
    %2283 = vadd.xlane.f32.xlu0 %v2282
    %v2284 = vpop.xlane.xlu0 %2283
    %v2285 = vpack.c.bf16 %v2248, %v2246
    %v2286 = vpack.c.bf16 %v2252, %v2250
    %v2287 = vpack.c.bf16 %v2256, %v2254
    %v2288 = vpack.c.bf16 %v2260, %v2258
    %v2289 = vpack.c.bf16 %v2097, %v2096
    %v2290 = vpack.c.bf16 %v2099, %v2098
    %v2291 = vpack.c.bf16 %v2101, %v2100
    %v2292 = vpack.c.bf16 %v2103, %v2102
    %2297 = vrot.lane.b32.xlu0 %v2289, 64
    %v2298 = vpop.permute.xlu0 %2297
    %2299 = vrot.lane.b32.xlu0 %v2290, 64
    %v2300 = vpop.permute.xlu0 %2299
    %2301 = vrot.lane.b32.xlu0 %v2291, 64
    %v2302 = vpop.permute.xlu0 %2301
    %2303 = vrot.lane.b32.xlu0 %v2292, 64
    %v2304 = vpop.permute.xlu0 %2303
    %v2310 = vsel %vm1882, %v2285, 0
    %v2313 = vsel %vm1882, %v2286, 0
    %v2316 = vsel %vm1882, %v2287, 0
    %v2319 = vsel %vm1882, %v2288, 0
    %2321 = vmatprep.subr.bf16.mxu0 0
    %2322 = vmatpush1.bf16.msra.mxu0 %v2298
    %2323 = vmatprep.subr.bf16.mxu0 0
    %2324 = vmatpush1.bf16.msra.mxu0 %v2300
    %2325 = vmatprep.subr.bf16.mxu0 0
    %2326 = vmatpush1.bf16.msra.mxu0 %v2302
    %2327 = vmatprep.subr.bf16.mxu0 0
    %2328 = vmatpush1.bf16.msra.mxu0 %v2304
    %2329 = vmatprep.subr.bf16.mxu0 0
    %2330 = vmatpush1.bf16.msra.mxu0 0
    %2331 = vmatprep.subr.bf16.mxu0 0
    %2332 = vmatpush1.bf16.msra.mxu0 0
    %2333 = vmatprep.subr.bf16.mxu0 0
    %2334 = vmatpush1.bf16.msra.mxu0 0
    %2335 = vmatprep.subr.bf16.mxu0 0
    %2336 = vmatpush1.bf16.msra.mxu0 0
    %2337 = vmatprep.subr.bf16.mxu0 0
    %2338 = vmatpush1.bf16.msra.mxu0 0
    %2339 = vmatprep.subr.bf16.mxu0 0
    %2340 = vmatpush1.bf16.msra.mxu0 0
    %2341 = vmatprep.subr.bf16.mxu0 0
    %2342 = vmatpush1.bf16.msra.mxu0 0
    %2343 = vmatprep.subr.bf16.mxu0 0
    %2344 = vmatpush1.bf16.msra.mxu0 0
    %2345 = vmatprep.subr.bf16.mxu0 0
    %2346 = vmatpush1.bf16.msra.mxu0 0
    %2347 = vmatprep.subr.bf16.mxu0 0
    %2348 = vmatpush1.bf16.msra.mxu0 0
    %2349 = vmatprep.subr.bf16.mxu0 0
    %2350 = vmatpush1.bf16.msra.mxu0 0
    %2351 = vmatprep.subr.bf16.mxu0 0
    %2352 = vmatpush1.bf16.msra.mxu0 0
    %2353 = vmatprep.mubr.bf16.mxu0 0
    %2354 = vmatmul.mubr.bf16.gmra.mrb[0].mxu0 %v2310
    %v2355 = vpop.f32.mrb[0].mxu0
    %v2356 = vadd.f32 0.0, %v2355
    %v2357 = vpop.f32.mrb[0].mxu0
    %v2358 = vpop.f32.mrb[0].mxu0
    %v2359 = vadd.f32 0.0, %v2358
    %v2360 = vpop.f32.mrb[0].mxu0
    %2361 = vmatprep.mubr.bf16.mxu0 0
    %2362 = vmatmul.mubr.bf16.gmra.mrb[0].mxu0 %v2313
    %v2363 = vpop.f32.mrb[0].mxu0
    %v2364 = vadd.f32 0.0, %v2363
    %v2365 = vpop.f32.mrb[0].mxu0
    %v2366 = vpop.f32.mrb[0].mxu0
    %v2367 = vadd.f32 0.0, %v2366
    %v2368 = vpop.f32.mrb[0].mxu0
    %2369 = vmatprep.mubr.bf16.mxu0 0
    %2370 = vmatmul.mubr.bf16.gmra.mrb[0].mxu0 %v2316
    %v2371 = vpop.f32.mrb[0].mxu0
    %v2372 = vadd.f32 0.0, %v2371
    %v2373 = vpop.f32.mrb[0].mxu0
    %v2374 = vpop.f32.mrb[0].mxu0
    %v2375 = vadd.f32 0.0, %v2374
    %v2376 = vpop.f32.mrb[0].mxu0
    %2377 = vmatprep.mubr.bf16.mxu0 0
    %2378 = vmatmul.mubr.bf16.gmra.mrb[0].mxu0 %v2319
    %v2379 = vpop.f32.mrb[0].mxu0
    %v2380 = vadd.f32 0.0, %v2379
    %v2381 = vpop.f32.mrb[0].mxu0
    %v2382 = vpop.f32.mrb[0].mxu0
    %v2383 = vadd.f32 0.0, %v2382
    %v2384 = vpop.f32.mrb[0].mxu0
    %2385 = vdwg.mxu0
    %v2386 = vrcp.pop %v2263
    %v2387 = vrcp.pop %v2266
    %v2388 = vrcp.pop %v2269
    %v2389 = vrcp.pop %v2272
    %v2390 = vrcp.pop %v2275
    %v2391 = vrcp.pop %v2278
    %v2392 = vrcp.pop %v2281
    %v2393 = vrcp.pop %v2284
    %v2394 = vmul.f32 %v2356, %v2386
    %v2395 = vmul.f32 %v2359, %v2387
    %v2396 = vmul.f32 %v2364, %v2388
    %v2397 = vmul.f32 %v2367, %v2389
    %v2398 = vmul.f32 %v2372, %v2390
    %v2399 = vmul.f32 %v2375, %v2391
    %v2400 = vmul.f32 %v2380, %v2392
    %v2401 = vmul.f32 %v2383, %v2393
    %v2402 = vld [vmem:[#allocation3] sm:$0xff]
    %v2403 = vld [vmem:[#allocation3 + $0x8] sm:$0xff]
    %v2404 = vld [vmem:[#allocation3 + $0x10] sm:$0xff]
    %v2405 = vld [vmem:[#allocation3 + $0x18] sm:$0xff]
    %v2406 = vunpack.c.l.bf16 %v2402
    %v2407 = vunpack.c.h.bf16 %v2402
    %v2408 = vunpack.c.l.bf16 %v2403
    %v2409 = vunpack.c.h.bf16 %v2403
    %v2410 = vunpack.c.l.bf16 %v2404
    %v2411 = vunpack.c.h.bf16 %v2404
    %v2412 = vunpack.c.l.bf16 %v2405
    %v2413 = vunpack.c.h.bf16 %v2405
    %2422 = vrot.lane.b32.xlu0 %v2394, 64
    %v2423 = vpop.permute.xlu0 %2422
    %2424 = vrot.lane.b32.xlu0 %v2395, 64
    %v2425 = vpop.permute.xlu0 %2424
    %2426 = vrot.lane.b32.xlu0 %v2396, 64
    %v2427 = vpop.permute.xlu0 %2426
    %2428 = vrot.lane.b32.xlu0 %v2397, 64
    %v2429 = vpop.permute.xlu0 %2428
    %2430 = vrot.lane.b32.xlu0 %v2398, 64
    %v2431 = vpop.permute.xlu0 %2430
    %2432 = vrot.lane.b32.xlu0 %v2399, 64
    %v2433 = vpop.permute.xlu0 %2432
    %2434 = vrot.lane.b32.xlu0 %v2400, 64
    %v2435 = vpop.permute.xlu0 %2434
    %2436 = vrot.lane.b32.xlu0 %v2401, 64
    %v2437 = vpop.permute.xlu0 %2436
    %v2446 = vadd.f32 %v2406, %v2423
    %v2447 = vadd.f32 %v2407, %v2425
    %v2448 = vadd.f32 %v2408, %v2427
    %v2449 = vadd.f32 %v2409, %v2429
    %v2450 = vadd.f32 %v2410, %v2431
    %v2451 = vadd.f32 %v2411, %v2433
    %v2452 = vadd.f32 %v2412, %v2435
    %v2453 = vadd.f32 %v2413, %v2437
    %v2454 = vpack.c.bf16 %v2447, %v2446
    %v2455 = vpack.c.bf16 %v2449, %v2448
    %v2456 = vpack.c.bf16 %v2451, %v2450
    %v2457 = vpack.c.bf16 %v2453, %v2452
    %vm2458 = vcmask 1048064
    %2459 = vst.msk [vmem:[#allocation3] sm:$0xff] %vm2458, %v2454
    %2460 = vst.msk [vmem:[#allocation3 + $0x8] sm:$0xff] %vm2458, %v2455
    %2461 = vst.msk [vmem:[#allocation3 + $0x10] sm:$0xff] %vm2458, %v2456
    %2462 = vst.msk [vmem:[#allocation3 + $0x18] sm:$0xff] %vm2458, %v2457
    %v2463 = vld [vmem:[#allocation2 + $0x80] sm:$0xff]
    %v2464 = vld [vmem:[#allocation2 + $0x90] sm:$0xff]
    %v2465 = vld [vmem:[#allocation2 + $0xa0] sm:$0xff]
    %v2466 = vld [vmem:[#allocation2 + $0xb0] sm:$0xff]
    %v2467 = vld [vmem:[#allocation2 + $0xc0] sm:$0xff]
    %v2468 = vld [vmem:[#allocation2 + $0xd0] sm:$0xff]
    %v2469 = vld [vmem:[#allocation2 + $0xe0] sm:$0xff]
    %v2470 = vld [vmem:[#allocation2 + $0xf0] sm:$0xff]
    %v2471 = vpack.c.bf16 %v2464, %v2463
    %v2472 = vpack.c.bf16 %v2466, %v2465
    %v2473 = vpack.c.bf16 %v2468, %v2467
    %v2474 = vpack.c.bf16 %v2470, %v2469
    %v2475 = vld [vmem:[#allocation2 + $0x88] sm:$0xff]
    %v2476 = vld [vmem:[#allocation2 + $0x98] sm:$0xff]
    %v2477 = vld [vmem:[#allocation2 + $0xa8] sm:$0xff]
    %v2478 = vld [vmem:[#allocation2 + $0xb8] sm:$0xff]
    %v2479 = vld [vmem:[#allocation2 + $0xc8] sm:$0xff]
    %v2480 = vld [vmem:[#allocation2 + $0xd8] sm:$0xff]
    %v2481 = vld [vmem:[#allocation2 + $0xe8] sm:$0xff]
    %v2482 = vld [vmem:[#allocation2 + $0xf8] sm:$0xff]
    %2487 = vrot.lane.b32.xlu0 %v2471, 96
    %v2488 = vpop.permute.xlu0 %2487
    %2489 = vrot.lane.b32.xlu0 %v2472, 96
    %v2490 = vpop.permute.xlu0 %2489
    %2491 = vrot.lane.b32.xlu0 %v2473, 96
    %v2492 = vpop.permute.xlu0 %2491
    %2493 = vrot.lane.b32.xlu0 %v2474, 96
    %v2494 = vpop.permute.xlu0 %2493
    %v2496 = vsel %vm1792, %v2471, 0
    %v2499 = vsel %vm1792, %v2472, 0
    %v2502 = vsel %vm1792, %v2473, 0
    %v2505 = vsel %vm1792, %v2474, 0
    %v2508 = vsel %vm1792, %v2488, 0
    %v2511 = vsel %vm1792, %v2490, 0
    %v2514 = vsel %vm1792, %v2492, 0
    %v2517 = vsel %vm1792, %v2494, 0
    %2519 = vmatprep.subr.bf16.mxu0 0
    %2520 = vmatpush1.bf16.xpose.msra.mxu0 %v2508
    %2521 = vmatprep.subr.bf16.mxu0 0
    %2522 = vmatpush1.bf16.xpose.msra.mxu0 %v2511
    %2523 = vmatprep.subr.bf16.mxu0 0
    %2524 = vmatpush1.bf16.xpose.msra.mxu0 %v2514
    %2525 = vmatprep.subr.bf16.mxu0 0
    %2526 = vmatpush1.bf16.xpose.msra.mxu0 %v2517
    %2527 = vmatprep.subr.bf16.mxu0 0
    %2528 = vmatpush1.bf16.xpose.msra.mxu0 0
    %2529 = vmatprep.subr.bf16.mxu0 0
    %2530 = vmatpush1.bf16.xpose.msra.mxu0 0
    %2531 = vmatprep.subr.bf16.mxu0 0
    %2532 = vmatpush1.bf16.xpose.msra.mxu0 0
    %2533 = vmatprep.subr.bf16.mxu0 0
    %2534 = vmatpush1.bf16.xpose.msra.mxu0 0
    %2535 = vmatprep.subr.bf16.mxu0 0
    %2536 = vmatpush1.bf16.xpose.msra.mxu0 0
    %2537 = vmatprep.subr.bf16.mxu0 0
    %2538 = vmatpush1.bf16.xpose.msra.mxu0 0
    %2539 = vmatprep.subr.bf16.mxu0 0
    %2540 = vmatpush1.bf16.xpose.msra.mxu0 0
    %2541 = vmatprep.subr.bf16.mxu0 0
    %2542 = vmatpush1.bf16.xpose.msra.mxu0 0
    %2543 = vmatprep.subr.bf16.mxu0 0
    %2544 = vmatpush1.bf16.xpose.msra.mxu0 0
    %2545 = vmatprep.subr.bf16.mxu0 0
    %2546 = vmatpush1.bf16.xpose.msra.mxu0 0
    %2547 = vmatprep.subr.bf16.mxu0 0
    %2548 = vmatpush1.bf16.xpose.msra.mxu0 0
    %2549 = vmatprep.subr.bf16.mxu0 0
    %2550 = vmatpush1.bf16.xpose.msra.mxu0 0
    %2551 = vmatprep.mubr.bf16.mxu0 0
    %2552 = vmatmul.mubr.bf16.gmra.mrb[0].mxu0 %v2496
    %v2553 = vpop.f32.mrb[0].mxu0
    %v2554 = vadd.f32 0.0, %v2553
    %v2555 = vpop.f32.mrb[0].mxu0
    %v2556 = vpop.f32.mrb[0].mxu0
    %v2557 = vadd.f32 0.0, %v2556
    %v2558 = vpop.f32.mrb[0].mxu0
    %2559 = vmatprep.mubr.bf16.mxu0 0
    %2560 = vmatmul.mubr.bf16.gmra.mrb[0].mxu0 %v2499
    %v2561 = vpop.f32.mrb[0].mxu0
    %v2562 = vadd.f32 0.0, %v2561
    %v2563 = vpop.f32.mrb[0].mxu0
    %v2564 = vpop.f32.mrb[0].mxu0
    %v2565 = vadd.f32 0.0, %v2564
    %v2566 = vpop.f32.mrb[0].mxu0
    %2567 = vmatprep.mubr.bf16.mxu0 0
    %2568 = vmatmul.mubr.bf16.gmra.mrb[0].mxu0 %v2502
    %v2569 = vpop.f32.mrb[0].mxu0
    %v2570 = vadd.f32 0.0, %v2569
    %v2571 = vpop.f32.mrb[0].mxu0
    %v2572 = vpop.f32.mrb[0].mxu0
    %v2573 = vadd.f32 0.0, %v2572
    %v2574 = vpop.f32.mrb[0].mxu0
    %2575 = vmatprep.mubr.bf16.mxu0 0
    %2576 = vmatmul.mubr.bf16.gmra.mrb[0].mxu0 %v2505
    %v2577 = vpop.f32.mrb[0].mxu0
    %v2578 = vadd.f32 0.0, %v2577
    %v2579 = vpop.f32.mrb[0].mxu0
    %v2580 = vpop.f32.mrb[0].mxu0
    %v2581 = vadd.f32 0.0, %v2580
    %v2582 = vpop.f32.mrb[0].mxu0
    %2583 = vdwg.mxu0
    %v2584 = vsel %vm1882, %v2554, -inf
    %2585 = vmax.xlane.f32.xlu0 %v2584
    %v2586 = vpop.xlane.xlu0 %2585
    %v2587 = vsel %vm1882, %v2557, -inf
    %2588 = vmax.xlane.f32.xlu0 %v2587
    %v2589 = vpop.xlane.xlu0 %2588
    %v2590 = vsel %vm1882, %v2562, -inf
    %2591 = vmax.xlane.f32.xlu0 %v2590
    %v2592 = vpop.xlane.xlu0 %2591
    %v2593 = vsel %vm1882, %v2565, -inf
    %2594 = vmax.xlane.f32.xlu0 %v2593
    %v2595 = vpop.xlane.xlu0 %2594
    %v2596 = vsel %vm1882, %v2570, -inf
    %2597 = vmax.xlane.f32.xlu0 %v2596
    %v2598 = vpop.xlane.xlu0 %2597
    %v2599 = vsel %vm1882, %v2573, -inf
    %2600 = vmax.xlane.f32.xlu0 %v2599
    %v2601 = vpop.xlane.xlu0 %2600
    %v2602 = vsel %vm1882, %v2578, -inf
    %2603 = vmax.xlane.f32.xlu0 %v2602
    %v2604 = vpop.xlane.xlu0 %2603
    %v2605 = vsel %vm1882, %v2581, -inf
    %2606 = vmax.xlane.f32.xlu0 %v2605
    %v2607 = vpop.xlane.xlu0 %2606
    %v2608 = vsub.f32 %v2554, %v2586
    %v2609 = vsub.f32 %v2557, %v2589
    %v2610 = vsub.f32 %v2562, %v2592
    %v2611 = vsub.f32 %v2565, %v2595
    %v2612 = vsub.f32 %v2570, %v2598
    %v2613 = vsub.f32 %v2573, %v2601
    %v2614 = vsub.f32 %v2578, %v2604
    %v2615 = vsub.f32 %v2581, %v2607
    %v2616 = vmul.f32 %v2608, 1.442695
    %v2617 = vpow.pop %v2616
    %v2618 = vmul.f32 %v2609, 1.442695
    %v2619 = vpow.pop %v2618
    %v2620 = vmul.f32 %v2610, 1.442695
    %v2621 = vpow.pop %v2620
    %v2622 = vmul.f32 %v2611, 1.442695
    %v2623 = vpow.pop %v2622
    %v2624 = vmul.f32 %v2612, 1.442695
    %v2625 = vpow.pop %v2624
    %v2626 = vmul.f32 %v2613, 1.442695
    %v2627 = vpow.pop %v2626
    %v2628 = vmul.f32 %v2614, 1.442695
    %v2629 = vpow.pop %v2628
    %v2630 = vmul.f32 %v2615, 1.442695
    %v2631 = vpow.pop %v2630
    %v2632 = vsel %vm1882, %v2617, 0.0
    %2633 = vadd.xlane.f32.xlu0 %v2632
    %v2634 = vpop.xlane.xlu0 %2633
    %v2635 = vsel %vm1882, %v2619, 0.0
    %2636 = vadd.xlane.f32.xlu0 %v2635
    %v2637 = vpop.xlane.xlu0 %2636
    %v2638 = vsel %vm1882, %v2621, 0.0
    %2639 = vadd.xlane.f32.xlu0 %v2638
    %v2640 = vpop.xlane.xlu0 %2639
    %v2641 = vsel %vm1882, %v2623, 0.0
    %2642 = vadd.xlane.f32.xlu0 %v2641
    %v2643 = vpop.xlane.xlu0 %2642
    %v2644 = vsel %vm1882, %v2625, 0.0
    %2645 = vadd.xlane.f32.xlu0 %v2644
    %v2646 = vpop.xlane.xlu0 %2645
    %v2647 = vsel %vm1882, %v2627, 0.0
    %2648 = vadd.xlane.f32.xlu0 %v2647
    %v2649 = vpop.xlane.xlu0 %2648
    %v2650 = vsel %vm1882, %v2629, 0.0
    %2651 = vadd.xlane.f32.xlu0 %v2650
    %v2652 = vpop.xlane.xlu0 %2651
    %v2653 = vsel %vm1882, %v2631, 0.0
    %2654 = vadd.xlane.f32.xlu0 %v2653
    %v2655 = vpop.xlane.xlu0 %2654
    %v2656 = vpack.c.bf16 %v2619, %v2617
    %v2657 = vpack.c.bf16 %v2623, %v2621
    %v2658 = vpack.c.bf16 %v2627, %v2625
    %v2659 = vpack.c.bf16 %v2631, %v2629
    %v2660 = vpack.c.bf16 %v2476, %v2475
    %v2661 = vpack.c.bf16 %v2478, %v2477
    %v2662 = vpack.c.bf16 %v2480, %v2479
    %v2663 = vpack.c.bf16 %v2482, %v2481
    %v2665 = vsel %vm1882, %v2656, 0
    %v2668 = vsel %vm1882, %v2657, 0
    %v2671 = vsel %vm1882, %v2658, 0
    %v2674 = vsel %vm1882, %v2659, 0
    %2676 = vmatprep.subr.bf16.mxu0 0
    %2677 = vmatpush1.bf16.msra.mxu0 %v2660
    %2678 = vmatprep.subr.bf16.mxu0 0
    %2679 = vmatpush1.bf16.msra.mxu0 %v2661
    %2680 = vmatprep.subr.bf16.mxu0 0
    %2681 = vmatpush1.bf16.msra.mxu0 %v2662
    %2682 = vmatprep.subr.bf16.mxu0 0
    %2683 = vmatpush1.bf16.msra.mxu0 %v2663
    %2684 = vmatprep.subr.bf16.mxu0 0
    %2685 = vmatpush1.bf16.msra.mxu0 0
    %2686 = vmatprep.subr.bf16.mxu0 0
    %2687 = vmatpush1.bf16.msra.mxu0 0
    %2688 = vmatprep.subr.bf16.mxu0 0
    %2689 = vmatpush1.bf16.msra.mxu0 0
    %2690 = vmatprep.subr.bf16.mxu0 0
    %2691 = vmatpush1.bf16.msra.mxu0 0
    %2692 = vmatprep.subr.bf16.mxu0 0
    %2693 = vmatpush1.bf16.msra.mxu0 0
    %2694 = vmatprep.subr.bf16.mxu0 0
    %2695 = vmatpush1.bf16.msra.mxu0 0
    %2696 = vmatprep.subr.bf16.mxu0 0
    %2697 = vmatpush1.bf16.msra.mxu0 0
    %2698 = vmatprep.subr.bf16.mxu0 0
    %2699 = vmatpush1.bf16.msra.mxu0 0
    %2700 = vmatprep.subr.bf16.mxu0 0
    %2701 = vmatpush1.bf16.msra.mxu0 0
    %2702 = vmatprep.subr.bf16.mxu0 0
    %2703 = vmatpush1.bf16.msra.mxu0 0
    %2704 = vmatprep.subr.bf16.mxu0 0
    %2705 = vmatpush1.bf16.msra.mxu0 0
    %2706 = vmatprep.subr.bf16.mxu0 0
    %2707 = vmatpush1.bf16.msra.mxu0 0
    %2708 = vmatprep.mubr.bf16.mxu0 0
    %2709 = vmatmul.mubr.bf16.gmra.mrb[0].mxu0 %v2665
    %v2710 = vpop.f32.mrb[0].mxu0
    %v2711 = vadd.f32 0.0, %v2710
    %v2712 = vpop.f32.mrb[0].mxu0
    %v2713 = vpop.f32.mrb[0].mxu0
    %v2714 = vadd.f32 0.0, %v2713
    %v2715 = vpop.f32.mrb[0].mxu0
    %2716 = vmatprep.mubr.bf16.mxu0 0
    %2717 = vmatmul.mubr.bf16.gmra.mrb[0].mxu0 %v2668
    %v2718 = vpop.f32.mrb[0].mxu0
    %v2719 = vadd.f32 0.0, %v2718
    %v2720 = vpop.f32.mrb[0].mxu0
    %v2721 = vpop.f32.mrb[0].mxu0
    %v2722 = vadd.f32 0.0, %v2721
    %v2723 = vpop.f32.mrb[0].mxu0
    %2724 = vmatprep.mubr.bf16.mxu0 0
    %2725 = vmatmul.mubr.bf16.gmra.mrb[0].mxu0 %v2671
    %v2726 = vpop.f32.mrb[0].mxu0
    %v2727 = vadd.f32 0.0, %v2726
    %v2728 = vpop.f32.mrb[0].mxu0
    %v2729 = vpop.f32.mrb[0].mxu0
    %v2730 = vadd.f32 0.0, %v2729
    %v2731 = vpop.f32.mrb[0].mxu0
    %2732 = vmatprep.mubr.bf16.mxu0 0
    %2733 = vmatmul.mubr.bf16.gmra.mrb[0].mxu0 %v2674
    %v2734 = vpop.f32.mrb[0].mxu0
    %v2735 = vadd.f32 0.0, %v2734
    %v2736 = vpop.f32.mrb[0].mxu0
    %v2737 = vpop.f32.mrb[0].mxu0
    %v2738 = vadd.f32 0.0, %v2737
    %v2739 = vpop.f32.mrb[0].mxu0
    %2740 = vdwg.mxu0
    %v2741 = vrcp.pop %v2634
    %v2742 = vrcp.pop %v2637
    %v2743 = vrcp.pop %v2640
    %v2744 = vrcp.pop %v2643
    %v2745 = vrcp.pop %v2646
    %v2746 = vrcp.pop %v2649
    %v2747 = vrcp.pop %v2652
    %v2748 = vrcp.pop %v2655
    %v2749 = vmul.f32 %v2711, %v2741
    %v2750 = vmul.f32 %v2714, %v2742
    %v2751 = vmul.f32 %v2719, %v2743
    %v2752 = vmul.f32 %v2722, %v2744
    %v2753 = vmul.f32 %v2727, %v2745
    %v2754 = vmul.f32 %v2730, %v2746
    %v2755 = vmul.f32 %v2735, %v2747
    %v2756 = vmul.f32 %v2738, %v2748
    %v2757 = vld [vmem:[#allocation3 + $0x20] sm:$0xff]
    %v2758 = vld [vmem:[#allocation3 + $0x28] sm:$0xff]
    %v2759 = vld [vmem:[#allocation3 + $0x30] sm:$0xff]
    %v2760 = vld [vmem:[#allocation3 + $0x38] sm:$0xff]
    %v2761 = vunpack.c.l.bf16 %v2757
    %v2762 = vunpack.c.h.bf16 %v2757
    %v2763 = vunpack.c.l.bf16 %v2758
    %v2764 = vunpack.c.h.bf16 %v2758
    %v2765 = vunpack.c.l.bf16 %v2759
    %v2766 = vunpack.c.h.bf16 %v2759
    %v2767 = vunpack.c.l.bf16 %v2760
    %v2768 = vunpack.c.h.bf16 %v2760
    %v2769 = vadd.f32 %v2761, %v2749
    %v2770 = vadd.f32 %v2762, %v2750
    %v2771 = vadd.f32 %v2763, %v2751
    %v2772 = vadd.f32 %v2764, %v2752
    %v2773 = vadd.f32 %v2765, %v2753
    %v2774 = vadd.f32 %v2766, %v2754
    %v2775 = vadd.f32 %v2767, %v2755
    %v2776 = vadd.f32 %v2768, %v2756
    %v2777 = vpack.c.bf16 %v2770, %v2769
    %v2778 = vpack.c.bf16 %v2772, %v2771
    %v2779 = vpack.c.bf16 %v2774, %v2773
    %v2780 = vpack.c.bf16 %v2776, %v2775
    %2781 = vst.msk [vmem:[#allocation3 + $0x20] sm:$0xff] %vm1882, %v2777
    %2782 = vst.msk [vmem:[#allocation3 + $0x28] sm:$0xff] %vm1882, %v2778
    %2783 = vst.msk [vmem:[#allocation3 + $0x30] sm:$0xff] %vm1882, %v2779
    %2784 = vst.msk [vmem:[#allocation3 + $0x38] sm:$0xff] %vm1882, %v2780
    %v2785 = vld [vmem:[#allocation2 + $0x80] sm:$0xff]
    %v2786 = vld [vmem:[#allocation2 + $0x90] sm:$0xff]
    %v2787 = vld [vmem:[#allocation2 + $0xa0] sm:$0xff]
    %v2788 = vld [vmem:[#allocation2 + $0xb0] sm:$0xff]
    %v2789 = vld [vmem:[#allocation2 + $0xc0] sm:$0xff]
    %v2790 = vld [vmem:[#allocation2 + $0xd0] sm:$0xff]
    %v2791 = vld [vmem:[#allocation2 + $0xe0] sm:$0xff]
    %v2792 = vld [vmem:[#allocation2 + $0xf0] sm:$0xff]
    %v2793 = vpack.c.bf16 %v2786, %v2785
    %v2794 = vpack.c.bf16 %v2788, %v2787
    %v2795 = vpack.c.bf16 %v2790, %v2789
    %v2796 = vpack.c.bf16 %v2792, %v2791
    %v2797 = vld [vmem:[#allocation2 + $0x88] sm:$0xff]
    %v2798 = vld [vmem:[#allocation2 + $0x98] sm:$0xff]
    %v2799 = vld [vmem:[#allocation2 + $0xa8] sm:$0xff]
    %v2800 = vld [vmem:[#allocation2 + $0xb8] sm:$0xff]
    %v2801 = vld [vmem:[#allocation2 + $0xc8] sm:$0xff]
    %v2802 = vld [vmem:[#allocation2 + $0xd8] sm:$0xff]
    %v2803 = vld [vmem:[#allocation2 + $0xe8] sm:$0xff]
    %v2804 = vld [vmem:[#allocation2 + $0xf8] sm:$0xff]
    %2809 = vrot.lane.b32.xlu0 %v2793, 64
    %v2810 = vpop.permute.xlu0 %2809
    %2811 = vrot.lane.b32.xlu0 %v2794, 64
    %v2812 = vpop.permute.xlu0 %2811
    %2813 = vrot.lane.b32.xlu0 %v2795, 64
    %v2814 = vpop.permute.xlu0 %2813
    %2815 = vrot.lane.b32.xlu0 %v2796, 64
    %v2816 = vpop.permute.xlu0 %2815
    %2817 = vrot.lane.b32.xlu0 %v2793, 32
    %v2818 = vpop.permute.xlu0 %2817
    %2819 = vrot.lane.b32.xlu0 %v2794, 32
    %v2820 = vpop.permute.xlu0 %2819
    %2821 = vrot.lane.b32.xlu0 %v2795, 32
    %v2822 = vpop.permute.xlu0 %2821
    %2823 = vrot.lane.b32.xlu0 %v2796, 32
    %v2824 = vpop.permute.xlu0 %2823
    %v2826 = vsel %vm1792, %v2810, 0
    %v2829 = vsel %vm1792, %v2812, 0
    %v2832 = vsel %vm1792, %v2814, 0
    %v2835 = vsel %vm1792, %v2816, 0
    %v2838 = vsel %vm1792, %v2818, 0
    %v2841 = vsel %vm1792, %v2820, 0
    %v2844 = vsel %vm1792, %v2822, 0
    %v2847 = vsel %vm1792, %v2824, 0
    %2849 = vmatprep.subr.bf16.mxu0 0
    %2850 = vmatpush1.bf16.xpose.msra.mxu0 %v2838
    %2851 = vmatprep.subr.bf16.mxu0 0
    %2852 = vmatpush1.bf16.xpose.msra.mxu0 %v2841
    %2853 = vmatprep.subr.bf16.mxu0 0
    %2854 = vmatpush1.bf16.xpose.msra.mxu0 %v2844
    %2855 = vmatprep.subr.bf16.mxu0 0
    %2856 = vmatpush1.bf16.xpose.msra.mxu0 %v2847
    %2857 = vmatprep.subr.bf16.mxu0 0
    %2858 = vmatpush1.bf16.xpose.msra.mxu0 0
    %2859 = vmatprep.subr.bf16.mxu0 0
    %2860 = vmatpush1.bf16.xpose.msra.mxu0 0
    %2861 = vmatprep.subr.bf16.mxu0 0
    %2862 = vmatpush1.bf16.xpose.msra.mxu0 0
    %2863 = vmatprep.subr.bf16.mxu0 0
    %2864 = vmatpush1.bf16.xpose.msra.mxu0 0
    %2865 = vmatprep.subr.bf16.mxu0 0
    %2866 = vmatpush1.bf16.xpose.msra.mxu0 0
    %2867 = vmatprep.subr.bf16.mxu0 0
    %2868 = vmatpush1.bf16.xpose.msra.mxu0 0
    %2869 = vmatprep.subr.bf16.mxu0 0
    %2870 = vmatpush1.bf16.xpose.msra.mxu0 0
    %2871 = vmatprep.subr.bf16.mxu0 0
    %2872 = vmatpush1.bf16.xpose.msra.mxu0 0
    %2873 = vmatprep.subr.bf16.mxu0 0
    %2874 = vmatpush1.bf16.xpose.msra.mxu0 0
    %2875 = vmatprep.subr.bf16.mxu0 0
    %2876 = vmatpush1.bf16.xpose.msra.mxu0 0
    %2877 = vmatprep.subr.bf16.mxu0 0
    %2878 = vmatpush1.bf16.xpose.msra.mxu0 0
    %2879 = vmatprep.subr.bf16.mxu0 0
    %2880 = vmatpush1.bf16.xpose.msra.mxu0 0
    %2881 = vmatprep.mubr.bf16.mxu0 0
    %2882 = vmatmul.mubr.bf16.gmra.mrb[0].mxu0 %v2826
    %v2883 = vpop.f32.mrb[0].mxu0
    %v2884 = vadd.f32 0.0, %v2883
    %v2885 = vpop.f32.mrb[0].mxu0
    %v2886 = vpop.f32.mrb[0].mxu0
    %v2887 = vadd.f32 0.0, %v2886
    %v2888 = vpop.f32.mrb[0].mxu0
    %2889 = vmatprep.mubr.bf16.mxu0 0
    %2890 = vmatmul.mubr.bf16.gmra.mrb[0].mxu0 %v2829
    %v2891 = vpop.f32.mrb[0].mxu0
    %v2892 = vadd.f32 0.0, %v2891
    %v2893 = vpop.f32.mrb[0].mxu0
    %v2894 = vpop.f32.mrb[0].mxu0
    %v2895 = vadd.f32 0.0, %v2894
    %v2896 = vpop.f32.mrb[0].mxu0
    %2897 = vmatprep.mubr.bf16.mxu0 0
    %2898 = vmatmul.mubr.bf16.gmra.mrb[0].mxu0 %v2832
    %v2899 = vpop.f32.mrb[0].mxu0
    %v2900 = vadd.f32 0.0, %v2899
    %v2901 = vpop.f32.mrb[0].mxu0
    %v2902 = vpop.f32.mrb[0].mxu0
    %v2903 = vadd.f32 0.0, %v2902
    %v2904 = vpop.f32.mrb[0].mxu0
    %2905 = vmatprep.mubr.bf16.mxu0 0
    %2906 = vmatmul.mubr.bf16.gmra.mrb[0].mxu0 %v2835
    %v2907 = vpop.f32.mrb[0].mxu0
    %v2908 = vadd.f32 0.0, %v2907
    %v2909 = vpop.f32.mrb[0].mxu0
    %v2910 = vpop.f32.mrb[0].mxu0
    %v2911 = vadd.f32 0.0, %v2910
    %v2912 = vpop.f32.mrb[0].mxu0
    %2913 = vdwg.mxu0
    %v2914 = vsel %vm1882, %v2884, -inf
    %2915 = vmax.xlane.f32.xlu0 %v2914
    %v2916 = vpop.xlane.xlu0 %2915
    %v2917 = vsel %vm1882, %v2887, -inf
    %2918 = vmax.xlane.f32.xlu0 %v2917
    %v2919 = vpop.xlane.xlu0 %2918
    %v2920 = vsel %vm1882, %v2892, -inf
    %2921 = vmax.xlane.f32.xlu0 %v2920
    %v2922 = vpop.xlane.xlu0 %2921
    %v2923 = vsel %vm1882, %v2895, -inf
    %2924 = vmax.xlane.f32.xlu0 %v2923
    %v2925 = vpop.xlane.xlu0 %2924
    %v2926 = vsel %vm1882, %v2900, -inf
    %2927 = vmax.xlane.f32.xlu0 %v2926
    %v2928 = vpop.xlane.xlu0 %2927
    %v2929 = vsel %vm1882, %v2903, -inf
    %2930 = vmax.xlane.f32.xlu0 %v2929
    %v2931 = vpop.xlane.xlu0 %2930
    %v2932 = vsel %vm1882, %v2908, -inf
    %2933 = vmax.xlane.f32.xlu0 %v2932
    %v2934 = vpop.xlane.xlu0 %2933
    %v2935 = vsel %vm1882, %v2911, -inf
    %2936 = vmax.xlane.f32.xlu0 %v2935
    %v2937 = vpop.xlane.xlu0 %2936
    %v2938 = vsub.f32 %v2884, %v2916
    %v2939 = vsub.f32 %v2887, %v2919
    %v2940 = vsub.f32 %v2892, %v2922
    %v2941 = vsub.f32 %v2895, %v2925
    %v2942 = vsub.f32 %v2900, %v2928
    %v2943 = vsub.f32 %v2903, %v2931
    %v2944 = vsub.f32 %v2908, %v2934
    %v2945 = vsub.f32 %v2911, %v2937
    %v2946 = vmul.f32 %v2938, 1.442695
    %v2947 = vpow.pop %v2946
    %v2948 = vmul.f32 %v2939, 1.442695
    %v2949 = vpow.pop %v2948
    %v2950 = vmul.f32 %v2940, 1.442695
    %v2951 = vpow.pop %v2950
    %v2952 = vmul.f32 %v2941, 1.442695
    %v2953 = vpow.pop %v2952
    %v2954 = vmul.f32 %v2942, 1.442695
    %v2955 = vpow.pop %v2954
    %v2956 = vmul.f32 %v2943, 1.442695
    %v2957 = vpow.pop %v2956
    %v2958 = vmul.f32 %v2944, 1.442695
    %v2959 = vpow.pop %v2958
    %v2960 = vmul.f32 %v2945, 1.442695
    %v2961 = vpow.pop %v2960
    %v2962 = vsel %vm1882, %v2947, 0.0
    %2963 = vadd.xlane.f32.xlu0 %v2962
    %v2964 = vpop.xlane.xlu0 %2963
    %v2965 = vsel %vm1882, %v2949, 0.0
    %2966 = vadd.xlane.f32.xlu0 %v2965
    %v2967 = vpop.xlane.xlu0 %2966
    %v2968 = vsel %vm1882, %v2951, 0.0
    %2969 = vadd.xlane.f32.xlu0 %v2968
    %v2970 = vpop.xlane.xlu0 %2969
    %v2971 = vsel %vm1882, %v2953, 0.0
    %2972 = vadd.xlane.f32.xlu0 %v2971
    %v2973 = vpop.xlane.xlu0 %2972
    %v2974 = vsel %vm1882, %v2955, 0.0
    %2975 = vadd.xlane.f32.xlu0 %v2974
    %v2976 = vpop.xlane.xlu0 %2975
    %v2977 = vsel %vm1882, %v2957, 0.0
    %2978 = vadd.xlane.f32.xlu0 %v2977
    %v2979 = vpop.xlane.xlu0 %2978
    %v2980 = vsel %vm1882, %v2959, 0.0
    %2981 = vadd.xlane.f32.xlu0 %v2980
    %v2982 = vpop.xlane.xlu0 %2981
    %v2983 = vsel %vm1882, %v2961, 0.0
    %2984 = vadd.xlane.f32.xlu0 %v2983
    %v2985 = vpop.xlane.xlu0 %2984
    %v2986 = vpack.c.bf16 %v2949, %v2947
    %v2987 = vpack.c.bf16 %v2953, %v2951
    %v2988 = vpack.c.bf16 %v2957, %v2955
    %v2989 = vpack.c.bf16 %v2961, %v2959
    %v2990 = vpack.c.bf16 %v2798, %v2797
    %v2991 = vpack.c.bf16 %v2800, %v2799
    %v2992 = vpack.c.bf16 %v2802, %v2801
    %v2993 = vpack.c.bf16 %v2804, %v2803
    %2998 = vrot.lane.b32.xlu0 %v2990, 64
    %v2999 = vpop.permute.xlu0 %2998
    %3000 = vrot.lane.b32.xlu0 %v2991, 64
    %v3001 = vpop.permute.xlu0 %3000
    %3002 = vrot.lane.b32.xlu0 %v2992, 64
    %v3003 = vpop.permute.xlu0 %3002
    %3004 = vrot.lane.b32.xlu0 %v2993, 64
    %v3005 = vpop.permute.xlu0 %3004
    %v3011 = vsel %vm1882, %v2986, 0
    %v3014 = vsel %vm1882, %v2987, 0
    %v3017 = vsel %vm1882, %v2988, 0
    %v3020 = vsel %vm1882, %v2989, 0
    %3022 = vmatprep.subr.bf16.mxu0 0
    %3023 = vmatpush1.bf16.msra.mxu0 %v2999
    %3024 = vmatprep.subr.bf16.mxu0 0
    %3025 = vmatpush1.bf16.msra.mxu0 %v3001
    %3026 = vmatprep.subr.bf16.mxu0 0
    %3027 = vmatpush1.bf16.msra.mxu0 %v3003
    %3028 = vmatprep.subr.bf16.mxu0 0
    %3029 = vmatpush1.bf16.msra.mxu0 %v3005
    %3030 = vmatprep.subr.bf16.mxu0 0
    %3031 = vmatpush1.bf16.msra.mxu0 0
    %3032 = vmatprep.subr.bf16.mxu0 0
    %3033 = vmatpush1.bf16.msra.mxu0 0
    %3034 = vmatprep.subr.bf16.mxu0 0
    %3035 = vmatpush1.bf16.msra.mxu0 0
    %3036 = vmatprep.subr.bf16.mxu0 0
    %3037 = vmatpush1.bf16.msra.mxu0 0
    %3038 = vmatprep.subr.bf16.mxu0 0
    %3039 = vmatpush1.bf16.msra.mxu0 0
    %3040 = vmatprep.subr.bf16.mxu0 0
    %3041 = vmatpush1.bf16.msra.mxu0 0
    %3042 = vmatprep.subr.bf16.mxu0 0
    %3043 = vmatpush1.bf16.msra.mxu0 0
    %3044 = vmatprep.subr.bf16.mxu0 0
    %3045 = vmatpush1.bf16.msra.mxu0 0
    %3046 = vmatprep.subr.bf16.mxu0 0
    %3047 = vmatpush1.bf16.msra.mxu0 0
    %3048 = vmatprep.subr.bf16.mxu0 0
    %3049 = vmatpush1.bf16.msra.mxu0 0
    %3050 = vmatprep.subr.bf16.mxu0 0
    %3051 = vmatpush1.bf16.msra.mxu0 0
    %3052 = vmatprep.subr.bf16.mxu0 0
    %3053 = vmatpush1.bf16.msra.mxu0 0
    %3054 = vmatprep.mubr.bf16.mxu0 0
    %3055 = vmatmul.mubr.bf16.gmra.mrb[0].mxu0 %v3011
    %v3056 = vpop.f32.mrb[0].mxu0
    %v3057 = vadd.f32 0.0, %v3056
    %v3058 = vpop.f32.mrb[0].mxu0
    %v3059 = vpop.f32.mrb[0].mxu0
    %v3060 = vadd.f32 0.0, %v3059
    %v3061 = vpop.f32.mrb[0].mxu0
    %3062 = vmatprep.mubr.bf16.mxu0 0
    %3063 = vmatmul.mubr.bf16.gmra.mrb[0].mxu0 %v3014
    %v3064 = vpop.f32.mrb[0].mxu0
    %v3065 = vadd.f32 0.0, %v3064
    %v3066 = vpop.f32.mrb[0].mxu0
    %v3067 = vpop.f32.mrb[0].mxu0
    %v3068 = vadd.f32 0.0, %v3067
    %v3069 = vpop.f32.mrb[0].mxu0
    %3070 = vmatprep.mubr.bf16.mxu0 0
    %3071 = vmatmul.mubr.bf16.gmra.mrb[0].mxu0 %v3017
    %v3072 = vpop.f32.mrb[0].mxu0
    %v3073 = vadd.f32 0.0, %v3072
    %v3074 = vpop.f32.mrb[0].mxu0
    %v3075 = vpop.f32.mrb[0].mxu0
    %v3076 = vadd.f32 0.0, %v3075
    %v3077 = vpop.f32.mrb[0].mxu0
    %3078 = vmatprep.mubr.bf16.mxu0 0
    %3079 = vmatmul.mubr.bf16.gmra.mrb[0].mxu0 %v3020
    %v3080 = vpop.f32.mrb[0].mxu0
    %v3081 = vadd.f32 0.0, %v3080
    %v3082 = vpop.f32.mrb[0].mxu0
    %v3083 = vpop.f32.mrb[0].mxu0
    %v3084 = vadd.f32 0.0, %v3083
    %v3085 = vpop.f32.mrb[0].mxu0
    %3086 = vdwg.mxu0
    %v3087 = vrcp.pop %v2964
    %v3088 = vrcp.pop %v2967
    %v3089 = vrcp.pop %v2970
    %v3090 = vrcp.pop %v2973
    %v3091 = vrcp.pop %v2976
    %v3092 = vrcp.pop %v2979
    %v3093 = vrcp.pop %v2982
    %v3094 = vrcp.pop %v2985
    %v3095 = vmul.f32 %v3057, %v3087
    %v3096 = vmul.f32 %v3060, %v3088
    %v3097 = vmul.f32 %v3065, %v3089
    %v3098 = vmul.f32 %v3068, %v3090
    %v3099 = vmul.f32 %v3073, %v3091
    %v3100 = vmul.f32 %v3076, %v3092
    %v3101 = vmul.f32 %v3081, %v3093
    %v3102 = vmul.f32 %v3084, %v3094
    %v3103 = vld [vmem:[#allocation3 + $0x20] sm:$0xff]
    %v3104 = vld [vmem:[#allocation3 + $0x28] sm:$0xff]
    %v3105 = vld [vmem:[#allocation3 + $0x30] sm:$0xff]
    %v3106 = vld [vmem:[#allocation3 + $0x38] sm:$0xff]
    %v3107 = vunpack.c.l.bf16 %v3103
    %v3108 = vunpack.c.h.bf16 %v3103
    %v3109 = vunpack.c.l.bf16 %v3104
    %v3110 = vunpack.c.h.bf16 %v3104
    %v3111 = vunpack.c.l.bf16 %v3105
    %v3112 = vunpack.c.h.bf16 %v3105
    %v3113 = vunpack.c.l.bf16 %v3106
    %v3114 = vunpack.c.h.bf16 %v3106
    %3123 = vrot.lane.b32.xlu0 %v3095, 64
    %v3124 = vpop.permute.xlu0 %3123
    %3125 = vrot.lane.b32.xlu0 %v3096, 64
    %v3126 = vpop.permute.xlu0 %3125
    %3127 = vrot.lane.b32.xlu0 %v3097, 64
    %v3128 = vpop.permute.xlu0 %3127
    %3129 = vrot.lane.b32.xlu0 %v3098, 64
    %v3130 = vpop.permute.xlu0 %3129
    %3131 = vrot.lane.b32.xlu0 %v3099, 64
    %v3132 = vpop.permute.xlu0 %3131
    %3133 = vrot.lane.b32.xlu0 %v3100, 64
    %v3134 = vpop.permute.xlu0 %3133
    %3135 = vrot.lane.b32.xlu0 %v3101, 64
    %v3136 = vpop.permute.xlu0 %3135
    %3137 = vrot.lane.b32.xlu0 %v3102, 64
    %v3138 = vpop.permute.xlu0 %3137
    %v3147 = vadd.f32 %v3107, %v3124
    %v3148 = vadd.f32 %v3108, %v3126
    %v3149 = vadd.f32 %v3109, %v3128
    %v3150 = vadd.f32 %v3110, %v3130
    %v3151 = vadd.f32 %v3111, %v3132
    %v3152 = vadd.f32 %v3112, %v3134
    %v3153 = vadd.f32 %v3113, %v3136
    %v3154 = vadd.f32 %v3114, %v3138
    %v3155 = vpack.c.bf16 %v3148, %v3147
    %v3156 = vpack.c.bf16 %v3150, %v3149
    %v3157 = vpack.c.bf16 %v3152, %v3151
    %v3158 = vpack.c.bf16 %v3154, %v3153
    %3159 = vst.msk [vmem:[#allocation3 + $0x20] sm:$0xff] %vm2458, %v3155
    %3160 = vst.msk [vmem:[#allocation3 + $0x28] sm:$0xff] %vm2458, %v3156
    %3161 = vst.msk [vmem:[#allocation3 + $0x30] sm:$0xff] %vm2458, %v3157
    %3162 = vst.msk [vmem:[#allocation3 + $0x38] sm:$0xff] %vm2458, %v3158
    %v3163 = vld [vmem:[#allocation3] sm:$0xff]
    %v3164 = vld [vmem:[#allocation3 + $0x8] sm:$0xff]
    %v3165 = vld [vmem:[#allocation3 + $0x10] sm:$0xff]
    %v3166 = vld [vmem:[#allocation3 + $0x18] sm:$0xff]
    %v3167 = vld [vmem:[#allocation3 + $0x20] sm:$0xff]
    %v3168 = vld [vmem:[#allocation3 + $0x28] sm:$0xff]
    %v3169 = vld [vmem:[#allocation3 + $0x30] sm:$0xff]
    %v3170 = vld [vmem:[#allocation3 + $0x38] sm:$0xff]
    %v3171 = vld [vmem:[#allocation10] sm:$0xf]
    %v3172 = vld [vmem:[#allocation10 + $0x4] sm:$0xf]
    %v3173 = vld [vmem:[#allocation10 + $0x8] sm:$0xf]
    %v3174 = vld [vmem:[#allocation10 + $0xc] sm:$0xf]
    %v3175 = vld [vmem:[#allocation10 + $0x10] sm:$0xf]
    %v3176 = vld [vmem:[#allocation10 + $0x14] sm:$0xf]
    %v3177 = vld [vmem:[#allocation10 + $0x18] sm:$0xf]
    %v3178 = vld [vmem:[#allocation10 + $0x1c] sm:$0xf]
    %v3179 = vld [vmem:[#allocation10 + $0x20] sm:$0xf]
    %v3180 = vld [vmem:[#allocation10 + $0x24] sm:$0xf]
    %v3181 = vld [vmem:[#allocation10 + $0x28] sm:$0xf]
    %v3182 = vld [vmem:[#allocation10 + $0x2c] sm:$0xf]
    %v3183 = vld [vmem:[#allocation10 + $0x30] sm:$0xf]
    %v3184 = vld [vmem:[#allocation10 + $0x34] sm:$0xf]
    %v3185 = vld [vmem:[#allocation10 + $0x38] sm:$0xf]
    %v3186 = vld [vmem:[#allocation10 + $0x3c] sm:$0xf]
    %v3187 = vld [vmem:[%s6] sm:$0x1]
    %v3189 = vlaneseq
    %v3190 = vshrl.u32 %v3189, 7
    %v3191 = vsub.s32 0, %v3190
    %v3192 = vrot.slane %v3187, %v3191
    %v3210 = vunpack.c.l.b16 %v3171
    %v3211 = vunpack.c.l.b16 %v3172
    %v3212 = vunpack.c.l.b16 %v3173
    %v3213 = vunpack.c.l.b16 %v3174
    %v3214 = vunpack.c.l.b16 %v3175
    %v3215 = vunpack.c.l.b16 %v3176
    %v3216 = vunpack.c.l.b16 %v3177
    %v3217 = vunpack.c.l.b16 %v3178
    %v3218 = vunpack.c.l.b16 %v3179
    %v3219 = vunpack.c.l.b16 %v3180
    %v3220 = vunpack.c.l.b16 %v3181
    %v3221 = vunpack.c.l.b16 %v3182
    %v3222 = vunpack.c.l.b16 %v3183
    %v3223 = vunpack.c.l.b16 %v3184
    %v3224 = vunpack.c.l.b16 %v3185
    %v3225 = vunpack.c.l.b16 %v3186
    %v3226 = vpack.c.b16 %v3211, %v3210
    %v3227 = vpack.c.b16 %v3213, %v3212
    %v3228 = vpack.c.b16 %v3215, %v3214
    %v3229 = vpack.c.b16 %v3217, %v3216
    %v3230 = vpack.c.b16 %v3219, %v3218
    %v3231 = vpack.c.b16 %v3221, %v3220
    %v3232 = vpack.c.b16 %v3223, %v3222
    %v3233 = vpack.c.b16 %v3225, %v3224
    %3242 = vmatprep.subr.bf16.mxu0 0
    %3243 = vmatpush1.bf16.msra.mxu0 %v3226
    %3244 = vmatprep.subr.bf16.mxu0 0
    %3245 = vmatpush1.bf16.msra.mxu0 %v3227
    %3246 = vmatprep.subr.bf16.mxu0 0
    %3247 = vmatpush1.bf16.msra.mxu0 %v3228
    %3248 = vmatprep.subr.bf16.mxu0 0
    %3249 = vmatpush1.bf16.msra.mxu0 %v3229
    %3250 = vmatprep.subr.bf16.mxu0 0
    %3251 = vmatpush1.bf16.msra.mxu0 %v3230
    %3252 = vmatprep.subr.bf16.mxu0 0
    %3253 = vmatpush1.bf16.msra.mxu0 %v3231
    %3254 = vmatprep.subr.bf16.mxu0 0
    %3255 = vmatpush1.bf16.msra.mxu0 %v3232
    %3256 = vmatprep.subr.bf16.mxu0 0
    %3257 = vmatpush1.bf16.msra.mxu0 %v3233
    %3258 = vmatprep.subr.bf16.mxu0 0
    %3259 = vmatpush1.bf16.msra.mxu0 0
    %3260 = vmatprep.subr.bf16.mxu0 0
    %3261 = vmatpush1.bf16.msra.mxu0 0
    %3262 = vmatprep.subr.bf16.mxu0 0
    %3263 = vmatpush1.bf16.msra.mxu0 0
    %3264 = vmatprep.subr.bf16.mxu0 0
    %3265 = vmatpush1.bf16.msra.mxu0 0
    %3266 = vmatprep.subr.bf16.mxu0 0
    %3267 = vmatpush1.bf16.msra.mxu0 0
    %3268 = vmatprep.subr.bf16.mxu0 0
    %3269 = vmatpush1.bf16.msra.mxu0 0
    %3270 = vmatprep.subr.bf16.mxu0 0
    %3271 = vmatpush1.bf16.msra.mxu0 0
    %3272 = vmatprep.subr.bf16.mxu0 0
    %3273 = vmatpush1.bf16.msra.mxu0 0
    %3274 = vmatprep.mubr.bf16.mxu0 0
    %3275 = vmatmul.mubr.bf16.gmra.mrb[0].mxu0 %v3163
    %v3276 = vpop.f32.mrb[0].mxu0
    %v3277 = vadd.f32 %v3192, %v3276
    %v3278 = vpop.f32.mrb[0].mxu0
    %v3279 = vpop.f32.mrb[0].mxu0
    %v3280 = vadd.f32 %v3192, %v3279
    %v3281 = vpop.f32.mrb[0].mxu0
    %3282 = vmatprep.mubr.bf16.mxu0 0
    %3283 = vmatmul.mubr.bf16.gmra.mrb[0].mxu0 %v3164
    %v3284 = vpop.f32.mrb[0].mxu0
    %v3285 = vadd.f32 %v3192, %v3284
    %v3286 = vpop.f32.mrb[0].mxu0
    %v3287 = vpop.f32.mrb[0].mxu0
    %v3288 = vadd.f32 %v3192, %v3287
    %v3289 = vpop.f32.mrb[0].mxu0
    %3290 = vmatprep.mubr.bf16.mxu0 0
    %3291 = vmatmul.mubr.bf16.gmra.mrb[0].mxu0 %v3165
    %v3292 = vpop.f32.mrb[0].mxu0
    %v3293 = vadd.f32 %v3192, %v3292
    %v3294 = vpop.f32.mrb[0].mxu0
    %v3295 = vpop.f32.mrb[0].mxu0
    %v3296 = vadd.f32 %v3192, %v3295
    %v3297 = vpop.f32.mrb[0].mxu0
    %3298 = vmatprep.mubr.bf16.mxu0 0
    %3299 = vmatmul.mubr.bf16.gmra.mrb[0].mxu0 %v3166
    %v3300 = vpop.f32.mrb[0].mxu0
    %v3301 = vadd.f32 %v3192, %v3300
    %v3302 = vpop.f32.mrb[0].mxu0
    %v3303 = vpop.f32.mrb[0].mxu0
    %v3304 = vadd.f32 %v3192, %v3303
    %v3305 = vpop.f32.mrb[0].mxu0
    %3306 = vmatprep.mubr.bf16.mxu0 0
    %3307 = vmatmul.mubr.bf16.gmra.mrb[0].mxu0 %v3167
    %v3308 = vpop.f32.mrb[0].mxu0
    %v3309 = vadd.f32 %v3192, %v3308
    %v3310 = vpop.f32.mrb[0].mxu0
    %v3311 = vpop.f32.mrb[0].mxu0
    %v3312 = vadd.f32 %v3192, %v3311
    %v3313 = vpop.f32.mrb[0].mxu0
    %3314 = vmatprep.mubr.bf16.mxu0 0
    %3315 = vmatmul.mubr.bf16.gmra.mrb[0].mxu0 %v3168
    %v3316 = vpop.f32.mrb[0].mxu0
    %v3317 = vadd.f32 %v3192, %v3316
    %v3318 = vpop.f32.mrb[0].mxu0
    %v3319 = vpop.f32.mrb[0].mxu0
    %v3320 = vadd.f32 %v3192, %v3319
    %v3321 = vpop.f32.mrb[0].mxu0
    %3322 = vmatprep.mubr.bf16.mxu0 0
    %3323 = vmatmul.mubr.bf16.gmra.mrb[0].mxu0 %v3169
    %v3324 = vpop.f32.mrb[0].mxu0
    %v3325 = vadd.f32 %v3192, %v3324
    %v3326 = vpop.f32.mrb[0].mxu0
    %v3327 = vpop.f32.mrb[0].mxu0
    %v3328 = vadd.f32 %v3192, %v3327
    %v3329 = vpop.f32.mrb[0].mxu0
    %3330 = vmatprep.mubr.bf16.mxu0 0
    %3331 = vmatmul.mubr.bf16.gmra.mrb[0].mxu0 %v3170
    %v3332 = vpop.f32.mrb[0].mxu0
    %v3333 = vadd.f32 %v3192, %v3332
    %v3334 = vpop.f32.mrb[0].mxu0
    %v3335 = vpop.f32.mrb[0].mxu0
    %v3336 = vadd.f32 %v3192, %v3335
    %v3337 = vpop.f32.mrb[0].mxu0
    %3338 = vdwg.mxu0
    %3339 = vst [vmem:[#allocation12] sm:$0xff] %v3277
    %3340 = vst [vmem:[#allocation12 + $0x8] sm:$0xff] %v3280
    %3341 = vst [vmem:[#allocation12 + $0x10] sm:$0xff] %v3285
    %3342 = vst [vmem:[#allocation12 + $0x18] sm:$0xff] %v3288
    %3343 = vst [vmem:[#allocation12 + $0x20] sm:$0xff] %v3293
    %3344 = vst [vmem:[#allocation12 + $0x28] sm:$0xff] %v3296
    %3345 = vst [vmem:[#allocation12 + $0x30] sm:$0xff] %v3301
    %3346 = vst [vmem:[#allocation12 + $0x38] sm:$0xff] %v3304
    %3347 = vst [vmem:[#allocation12 + $0x40] sm:$0xff] %v3309
    %3348 = vst [vmem:[#allocation12 + $0x48] sm:$0xff] %v3312
    %3349 = vst [vmem:[#allocation12 + $0x50] sm:$0xff] %v3317
    %3350 = vst [vmem:[#allocation12 + $0x58] sm:$0xff] %v3320
    %3351 = vst [vmem:[#allocation12 + $0x60] sm:$0xff] %v3325
    %3352 = vst [vmem:[#allocation12 + $0x68] sm:$0xff] %v3328
    %3353 = vst [vmem:[#allocation12 + $0x70] sm:$0xff] %v3333
    %3354 = vst [vmem:[#allocation12 + $0x78] sm:$0xff] %v3336
    // Predicated region
    $region46: #{tpu_custom_call.1} parent=1 // pred_check
      _
    $region47: #{tpu_custom_call.1} parent=1 // pred_check_branch
      %3356 = sbr.rel (0) target = $region49
    $region48: #{tpu_custom_call.1} parent=1 // pred_region
      %s3358 = ssub.s32 2048, 2048
      %3359 = vsyncadd [#allocation6], %s3358
      %s3360 = sshll.u32 [#allocation12], 4
      %s3361 = int_to_ptr.vmem [resolvable:$true] %s3360
      %3366 = dma.vmem_to_hbm [thread:$0]  %s3361, 2048, %s7, [#allocation6], 128, 128, 8
    $region49: #{tpu_custom_call.1} parent=1 // pred_fallthru
      _
    // Predicated region
    $region50: #{tpu_custom_call.1} parent=1 // pred_check
      _
    $region51: #{tpu_custom_call.1} parent=1 // pred_check_branch
      %3368 = sbr.rel (0) target = $region53
    $region52: #{tpu_custom_call.1} parent=1 // pred_region
      %3369 = dma.done [#allocation6], 2048
    $region53: #{tpu_custom_call.1} parent=1 // pred_fallthru
      _
    %3370 = vsyncpa [#allocation5], 1
    %3371 = vsyncpa [#allocation8], 1
    %3372 = vsyncpa [#allocation11], 1
    %3373 = vsyncpa [#allocation6], 1

</llo_original>
